<compile_context>
chip_gen: v6e
topology: v6e:2x2x1
jax: 0.10.0
libtpu: 0.0.40
codegen_flags: <defaults>
</compile_context>

<pallas_src>
import functools
import math

import jax
import jax.numpy as jnp
from jax.experimental import pallas as pl
from jax.experimental.pallas import tpu as pltpu

OCP = 128  # lane-dense padded width for every kernel output (channels / features)


# ----------------------------- Pallas kernels ------------------------------ #

def _conv_pool_kernel(qa_ref, qb_ref, qc_ref, qd_ref, w_ref, b_ref, o_ref):
    """Fused conv (as im2col matmul) + bias + ReLU + 2x2 maxpool.

    Each q*_ref holds the im2col rows of one pool-window quadrant; pooling is the
    elementwise max of the four quadrant results (max/ReLU commute)."""
    w = w_ref[...]
    b = b_ref[...]

    def branch(q_ref):
        y = jnp.dot(q_ref[...], w, preferred_element_type=jnp.float32) + b
        return jnp.maximum(y, 0.0)

    o_ref[...] = jnp.maximum(
        jnp.maximum(branch(qa_ref), branch(qb_ref)),
        jnp.maximum(branch(qc_ref), branch(qd_ref)),
    ).astype(o_ref.dtype)


def conv_relu_pool(quads, w_packed, b_packed):
    """quads: 4 arrays (M, K*K*C); w_packed: (K*K*C, 128); b_packed: (1, 128)."""
    M, KK = quads[0].shape
    ocp = w_packed.shape[1]
    tm = M if M <= 1024 else 512          # single full block at small batch
    grid = (pl.cdiv(M, tm),)
    q_spec = pl.BlockSpec((tm, KK), lambda i: (i, 0))
    return pl.pallas_call(
        _conv_pool_kernel,
        out_shape=jax.ShapeDtypeStruct((M, ocp), jnp.float32),
        grid=grid,
        in_specs=[q_spec, q_spec, q_spec, q_spec,
                  pl.BlockSpec((KK, ocp), lambda i: (0, 0)),
                  pl.BlockSpec((1, ocp), lambda i: (0, 0))],
        out_specs=pl.BlockSpec((tm, ocp), lambda i: (i, 0)),
        compiler_params=pltpu.CompilerParams(
            dimension_semantics=("parallel",)),
    )(*quads, w_packed, b_packed)


def _fc_stack_kernel(x_ref, w1_ref, b1_ref, w2_ref, b2_ref, w3_ref, b3_ref, o_ref):
    h = jnp.dot(x_ref[...], w1_ref[...], preferred_element_type=jnp.float32) + b1_ref[...]
    h = jnp.maximum(h, 0.0)
    h = jnp.dot(h, w2_ref[...], preferred_element_type=jnp.float32) + b2_ref[...]
    h = jnp.maximum(h, 0.0)
    o_ref[...] = (jnp.dot(h, w3_ref[...], preferred_element_type=jnp.float32)
                  + b3_ref[...]).astype(o_ref.dtype)


def fc_stack(x, w1, b1, w2, b2, w3, b3):
    M, K1 = x.shape
    H1, H2, H3 = w1.shape[1], w2.shape[1], w3.shape[1]
    return pl.pallas_call(
        _fc_stack_kernel,
        out_shape=jax.ShapeDtypeStruct((M, H3), jnp.float32),
        grid=(1,),
        in_specs=[pl.BlockSpec((M, K1), lambda i: (0, 0)),
                  pl.BlockSpec((K1, H1), lambda i: (0, 0)),
                  pl.BlockSpec((1, H1), lambda i: (0, 0)),
                  pl.BlockSpec((H1, H2), lambda i: (0, 0)),
                  pl.BlockSpec((1, H2), lambda i: (0, 0)),
                  pl.BlockSpec((H2, H3), lambda i: (0, 0)),
                  pl.BlockSpec((1, H3), lambda i: (0, 0))],
        out_specs=pl.BlockSpec((M, H3), lambda i: (0, 0)),
    )(x, w1, b1, w2, b2, w3, b3)


# ------------------------------- glue layers -------------------------------- #

def _quad_im2col(x, K):
    """x: NHWC (N, H, W, C) -> 4 quadrant im2col matrices, each (N*PH*PW, K*K*C).

    Quadrant (a, b) holds the patches of conv-output positions (2*ph+a, 2*pw+b),
    so the fused kernel's elementwise max over quadrants IS the 2x2 maxpool.
    Patch features are ordered (ki, kj, c) to match the packed weights."""
    N, H, W, C = x.shape
    OH, OW = H - K + 1, W - K + 1
    assert OH % 2 == 0 and OW % 2 == 0, "2x2 maxpool assumes even conv output dims"
    PH, PW = OH // 2, OW // 2
    quads = []
    for a in range(2):
        for b in range(2):
            patches = [
                x[:, a + ki: a + ki + 2 * PH: 2, b + kj: b + kj + 2 * PW: 2, :]
                for ki in range(K) for kj in range(K)
            ]                                           # each (N, PH, PW, C)
            cols = jnp.stack(patches, axis=3)           # (N, PH, PW, K*K, C)
            quads.append(cols.reshape(N * PH * PW, K * K * C))
    return quads, PH, PW


def net_forward(packed, x_nchw):
    """Forward pass matching PyTorch Net.forward. x_nchw: (N, 3, 32, 32) f32."""
    N = x_nchw.shape[0]
    x = jnp.transpose(x_nchw, (0, 2, 3, 1))             # NHWC internally

    # conv1 + bias + ReLU + 2x2 maxpool (one pallas_call)
    quads, ph, pw = _quad_im2col(x, 5)
    y = conv_relu_pool(quads, packed["conv1_w"], packed["conv1_b"])   # (N*14*14, 128)
    y = y.reshape(N, ph, pw, OCP)[..., :6]               # drop channel pad -> (N,14,14,6)

    # conv2 + bias + ReLU + 2x2 maxpool (one pallas_call)
    quads, ph, pw = _quad_im2col(y, 5)
    y = conv_relu_pool(quads, packed["conv2_w"], packed["conv2_b"])   # (N*5*5, 128)

    # fc1 -> ReLU -> fc2 -> ReLU -> fc3 (one pallas_call); fc1 weight is pre-permuted
    # for the channel-padded NHWC flatten, so this reshape is a pure view.
    y = y.reshape(N, ph * pw * OCP)                      # (N, 3200)
    out = fc_stack(y, packed["fc1_w"], packed["fc1_b"],
                   packed["fc2_w"], packed["fc2_b"],
                   packed["fc3_w"], packed["fc3_b"])     # (N, 128), cols 10..127 == 0
    return out[:, :10]


# --------------------------- parameter handling ------------------------------ #

def _uniform(key, shape, bound):
    return jax.random.uniform(key, shape, jnp.float32, -bound, bound)


def init_params(key):
    """Raw parameters in PyTorch layouts (Conv2d: (OC, C, K, K); Linear: (out, in))."""
    ks = jax.random.split(key, 10)
    p = {}
    b1 = 1.0 / math.sqrt(3 * 5 * 5)
    p["conv1_w"] = _uniform(ks[0], (6, 3, 5, 5), b1)
    p["conv1_b"] = _uniform(ks[1], (6,), b1)
    b2 = 1.0 / math.sqrt(6 * 5 * 5)
    p["conv2_w"] = _uniform(ks[2], (16, 6, 5, 5), b2)
    p["conv2_b"] = _uniform(ks[3], (16,), b2)
    b3 = 1.0 / math.sqrt(400)
    p["fc1_w"] = _uniform(ks[4], (120, 400), b3)
    p["fc1_b"] = _uniform(ks[5], (120,), b3)
    b4 = 1.0 / math.sqrt(120)
    p["fc2_w"] = _uniform(ks[6], (84, 120), b4)
    p["fc2_b"] = _uniform(ks[7], (84,), b4)
    b5 = 1.0 / math.sqrt(84)
    p["fc3_w"] = _uniform(ks[8], (10, 84), b5)
    p["fc3_b"] = _uniform(ks[9], (10,), b5)
    return p


def pack_params(raw):
    """One-time repack into TPU-friendly layouts (runs outside the forward pass).

    Conv:  (OC, C, K, K) -> (K*K*C, 128)  rows ordered (ki, kj, c), OC zero-padded.
    fc1:   (120, 400)    -> (5*5*128, 128) permuted to accept the (h, w, c_pad) flatten.
    fc2/3: (out, in)     -> (128, 128)     transposed + zero-padded (padding rows zero)."""

    def pack_conv(w, b):
        oc, c, k, _ = w.shape
        wm = jnp.transpose(w, (2, 3, 1, 0)).reshape(k * k * c, oc)   # (ki,kj,c) x oc
        wp = jnp.zeros((k * k * c, OCP), jnp.float32).at[:, :oc].set(wm)
        bp = jnp.zeros((1, OCP), jnp.float32).at[0, :oc].set(b)
        return wp, bp

    def pack_fc(w, b):
        out_f, in_f = w.shape
        wp = jnp.zeros((OCP, OCP), jnp.float32).at[:in_f, :out_f].set(w.T)
        bp = jnp.zeros((1, OCP), jnp.float32).at[0, :out_f].set(b)
        return wp, bp

    p = {}
    p["conv1_w"], p["conv1_b"] = pack_conv(raw["conv1_w"], raw["conv1_b"])
    p["conv2_w"], p["conv2_b"] = pack_conv(raw["conv2_w"], raw["conv2_b"])

    # fc1: torch flattens (c, h, w); our activation flatten is (h, w, c_padded_to_128).
    w1 = raw["fc1_w"].reshape(120, 16, 5, 5)             # (out, c, h, w)
    w1 = jnp.transpose(w1, (2, 3, 1, 0))                 # (h, w, c, out)
    w1p = jnp.zeros((5, 5, OCP, OCP), jnp.float32).at[:, :, :16, :120].set(w1)
    p["fc1_w"] = w1p.reshape(5 * 5 * OCP, OCP)
    p["fc1_b"] = jnp.zeros((1, OCP), jnp.float32).at[0, :120].set(raw["fc1_b"])

    p["fc2_w"], p["fc2_b"] = pack_fc(raw["fc2_w"], raw["fc2_b"])
    p["fc3_w"], p["fc3_b"] = pack_fc(raw["fc3_w"], raw["fc3_b"])
    return p


# ------------------------------ reference (JAX) ------------------------------ #

def _reference_forward(raw, x):
    """Pure-JAX reference with PyTorch semantics, for a correctness cross-check."""
    def conv(x, w, b):
        y = jax.lax.conv_general_dilated(
            x, w, window_strides=(1, 1), padding="VALID",
            dimension_numbers=("NCHW", "OIHW", "NCHW"))
        return y + b.reshape(1, -1, 1, 1)

    def pool(x):
        return jax.lax.reduce_window(x, -jnp.inf, jax.lax.max,
                                     (1, 1, 2, 2), (1, 1, 2, 2), "VALID")

    y = pool(jax.nn.relu(conv(x, raw["conv1_w"], raw["conv1_b"])))
    y = pool(jax.nn.relu(conv(y, raw["conv2_w"], raw["conv2_b"])))
    y = y.reshape(y.shape[0], -1)
    y = jax.nn.relu(y @ raw["fc1_w"].T + raw["fc1_b"])
    y = jax.nn.relu(y @ raw["fc2_w"].T + raw["fc2_b"])
    return y @ raw["fc3_w"].T + raw["fc3_b"]


if __name__ == "__main__":
    key = jax.random.PRNGKey(0)
    pkey, xkey = jax.random.split(key)
    raw = init_params(pkey)
    packed = pack_params(raw)                 # one-time weight repack (not per-forward)
    # fc1 expects 16*5*5 features -> 3x32x32 CIFAR-10 inputs; small batch = 2
    x = jax.random.normal(xkey, (2, 3, 32, 32), jnp.float32)

    out = jax.jit(net_forward)(packed, x)
    out = jax.block_until_ready(out)
    assert out.shape == (2, 10) and out.dtype == jnp.float32

    ref = _reference_forward(raw, x)
    max_err = float(jnp.max(jnp.abs(out - ref)))
    assert max_err < 5e-2, f"mismatch vs reference: max_err={max_err}"

    print("KERNEL_OK")
</pallas_src>

<mosaic_0001>
module attributes {stable_mosaic.version = 11 : i64} {
  func.func @_conv_pool_kernel(%arg0: i32, %arg1: memref<392x75xf32, #tpu.memory_space<vmem>>, %arg2: memref<392x75xf32, #tpu.memory_space<vmem>>, %arg3: memref<392x75xf32, #tpu.memory_space<vmem>>, %arg4: memref<392x75xf32, #tpu.memory_space<vmem>>, %arg5: memref<75x128xf32, #tpu.memory_space<vmem>>, %arg6: memref<1x128xf32, #tpu.memory_space<vmem>>, %arg7: memref<392x128xf32, #tpu.memory_space<vmem>>) attributes {dimension_semantics = [#tpu.dimension_semantics<parallel>], iteration_bounds = array<i64: 1>, scalar_prefetch = 0 : i64, scratch_operands = 0 : i64, tpu.core_type = #tpu.core_type<tc>, window_params = [{transform_indices = @transform_0, window_bounds = array<i64: 392, 75>}, {transform_indices = @transform_1, window_bounds = array<i64: 392, 75>}, {transform_indices = @transform_2, window_bounds = array<i64: 392, 75>}, {transform_indices = @transform_3, window_bounds = array<i64: 392, 75>}, {pipeline_mode = #tpu.pipeline_mode<synchronous>, transform_indices = @transform_4, window_bounds = array<i64: 75, 128>}, {pipeline_mode = #tpu.pipeline_mode<synchronous>, transform_indices = @transform_5, window_bounds = array<i64: 1, 128>}, {transform_indices = @transform_6, window_bounds = array<i64: 392, 128>}]} {
    %c0 = arith.constant 0 : index
    %c0_0 = arith.constant 0 : index
    %0 = vector.load %arg5[%c0, %c0_0] : memref<75x128xf32, #tpu.memory_space<vmem>>, vector<75x128xf32>
    %c0_1 = arith.constant 0 : index
    %c0_2 = arith.constant 0 : index
    %1 = vector.load %arg6[%c0_1, %c0_2] : memref<1x128xf32, #tpu.memory_space<vmem>>, vector<1x128xf32>
    %c0_3 = arith.constant 0 : index
    %c0_4 = arith.constant 0 : index
    %2 = vector.load %arg1[%c0_3, %c0_4] : memref<392x75xf32, #tpu.memory_space<vmem>>, vector<392x75xf32>
    %cst = arith.constant dense<0.000000e+00> : vector<392x128xf32>
    %3 = tpu.matmul %2, %0, %cst {dimension_numbers = #tpu.dot_dimension_numbers<[1], [0], [0], [1], [0, 0, 1, 1], [], []>} : vector<392x75xf32>, vector<75x128xf32>, vector<392x128xf32> -> vector<392x128xf32>
    %4 = vector.broadcast %1 : vector<1x128xf32> to vector<392x128xf32>
    %5 = arith.addf %3, %4 : vector<392x128xf32>
    %cst_5 = arith.constant 0.000000e+00 : f32
    %6 = vector.broadcast %cst_5 : f32 to vector<392x128xf32>
    %7 = arith.maximumf %5, %6 : vector<392x128xf32>
    %c0_6 = arith.constant 0 : index
    %c0_7 = arith.constant 0 : index
    %8 = vector.load %arg2[%c0_6, %c0_7] : memref<392x75xf32, #tpu.memory_space<vmem>>, vector<392x75xf32>
    %cst_8 = arith.constant dense<0.000000e+00> : vector<392x128xf32>
    %9 = tpu.matmul %8, %0, %cst_8 {dimension_numbers = #tpu.dot_dimension_numbers<[1], [0], [0], [1], [0, 0, 1, 1], [], []>} : vector<392x75xf32>, vector<75x128xf32>, vector<392x128xf32> -> vector<392x128xf32>
    %10 = vector.broadcast %1 : vector<1x128xf32> to vector<392x128xf32>
    %11 = arith.addf %9, %10 : vector<392x128xf32>
    %cst_9 = arith.constant 0.000000e+00 : f32
    %12 = vector.broadcast %cst_9 : f32 to vector<392x128xf32>
    %13 = arith.maximumf %11, %12 : vector<392x128xf32>
    %14 = arith.maximumf %7, %13 : vector<392x128xf32>
    %c0_10 = arith.constant 0 : index
    %c0_11 = arith.constant 0 : index
    %15 = vector.load %arg3[%c0_10, %c0_11] : memref<392x75xf32, #tpu.memory_space<vmem>>, vector<392x75xf32>
    %cst_12 = arith.constant dense<0.000000e+00> : vector<392x128xf32>
    %16 = tpu.matmul %15, %0, %cst_12 {dimension_numbers = #tpu.dot_dimension_numbers<[1], [0], [0], [1], [0, 0, 1, 1], [], []>} : vector<392x75xf32>, vector<75x128xf32>, vector<392x128xf32> -> vector<392x128xf32>
    %17 = vector.broadcast %1 : vector<1x128xf32> to vector<392x128xf32>
    %18 = arith.addf %16, %17 : vector<392x128xf32>
    %cst_13 = arith.constant 0.000000e+00 : f32
    %19 = vector.broadcast %cst_13 : f32 to vector<392x128xf32>
    %20 = arith.maximumf %18, %19 : vector<392x128xf32>
    %c0_14 = arith.constant 0 : index
    %c0_15 = arith.constant 0 : index
    %21 = vector.load %arg4[%c0_14, %c0_15] : memref<392x75xf32, #tpu.memory_space<vmem>>, vector<392x75xf32>
    %cst_16 = arith.constant dense<0.000000e+00> : vector<392x128xf32>
    %22 = tpu.matmul %21, %0, %cst_16 {dimension_numbers = #tpu.dot_dimension_numbers<[1], [0], [0], [1], [0, 0, 1, 1], [], []>} : vector<392x75xf32>, vector<75x128xf32>, vector<392x128xf32> -> vector<392x128xf32>
    %23 = vector.broadcast %1 : vector<1x128xf32> to vector<392x128xf32>
    %24 = arith.addf %22, %23 : vector<392x128xf32>
    %cst_17 = arith.constant 0.000000e+00 : f32
    %25 = vector.broadcast %cst_17 : f32 to vector<392x128xf32>
    %26 = arith.maximumf %24, %25 : vector<392x128xf32>
    %27 = arith.maximumf %20, %26 : vector<392x128xf32>
    %28 = arith.maximumf %14, %27 : vector<392x128xf32>
    %c0_18 = arith.constant 0 : index
    %c0_19 = arith.constant 0 : index
    %29 = vector.load %arg7[%c0_18, %c0_19] : memref<392x128xf32, #tpu.memory_space<vmem>>, vector<392x128xf32>
    tpu.vector_store %arg7[%c0_18, %c0_19], %28 {strides = array<i32>} : memref<392x128xf32, #tpu.memory_space<vmem>>, vector<392x128xf32>,
    return
  }
  func.func @transform_0(%arg0: i32) -> (i32, i32) {
    %c0_i32 = arith.constant 0 : i32
    %c0_i32_0 = arith.constant 0 : i32
    return %arg0, %c0_i32 : i32, i32
  }
  func.func @transform_1(%arg0: i32) -> (i32, i32) {
    %c0_i32 = arith.constant 0 : i32
    %c0_i32_0 = arith.constant 0 : i32
    return %arg0, %c0_i32 : i32, i32
  }
  func.func @transform_2(%arg0: i32) -> (i32, i32) {
    %c0_i32 = arith.constant 0 : i32
    %c0_i32_0 = arith.constant 0 : i32
    return %arg0, %c0_i32 : i32, i32
  }
  func.func @transform_3(%arg0: i32) -> (i32, i32) {
    %c0_i32 = arith.constant 0 : i32
    %c0_i32_0 = arith.constant 0 : i32
    return %arg0, %c0_i32 : i32, i32
  }
  func.func @transform_4(%arg0: i32) -> (i32, i32) {
    %c0_i32 = arith.constant 0 : i32
    %c0_i32_0 = arith.constant 0 : i32
    %c0_i32_1 = arith.constant 0 : i32
    return %c0_i32, %c0_i32_0 : i32, i32
  }
  func.func @transform_5(%arg0: i32) -> (i32, i32) {
    %c0_i32 = arith.constant 0 : i32
    %c0_i32_0 = arith.constant 0 : i32
    %c0_i32_1 = arith.constant 0 : i32
    return %c0_i32, %c0_i32_0 : i32, i32
  }
  func.func @transform_6(%arg0: i32) -> (i32, i32) {
    %c0_i32 = arith.constant 0 : i32
    %c0_i32_0 = arith.constant 0 : i32
    return %arg0, %c0_i32 : i32, i32
  }
}

module attributes {stable_mosaic.version = 11 : i64} {
  func.func @_conv_pool_kernel(%arg0: i32, %arg1: memref<50x150xf32, #tpu.memory_space<vmem>>, %arg2: memref<50x150xf32, #tpu.memory_space<vmem>>, %arg3: memref<50x150xf32, #tpu.memory_space<vmem>>, %arg4: memref<50x150xf32, #tpu.memory_space<vmem>>, %arg5: memref<150x128xf32, #tpu.memory_space<vmem>>, %arg6: memref<1x128xf32, #tpu.memory_space<vmem>>, %arg7: memref<50x128xf32, #tpu.memory_space<vmem>>) attributes {dimension_semantics = [#tpu.dimension_semantics<parallel>], iteration_bounds = array<i64: 1>, scalar_prefetch = 0 : i64, scratch_operands = 0 : i64, tpu.core_type = #tpu.core_type<tc>, window_params = [{transform_indices = @transform_0, window_bounds = array<i64: 50, 150>}, {transform_indices = @transform_1, window_bounds = array<i64: 50, 150>}, {transform_indices = @transform_2, window_bounds = array<i64: 50, 150>}, {transform_indices = @transform_3, window_bounds = array<i64: 50, 150>}, {pipeline_mode = #tpu.pipeline_mode<synchronous>, transform_indices = @transform_4, window_bounds = array<i64: 150, 128>}, {pipeline_mode = #tpu.pipeline_mode<synchronous>, transform_indices = @transform_5, window_bounds = array<i64: 1, 128>}, {transform_indices = @transform_6, window_bounds = array<i64: 50, 128>}]} {
    %c0 = arith.constant 0 : index
    %c0_0 = arith.constant 0 : index
    %0 = vector.load %arg5[%c0, %c0_0] : memref<150x128xf32, #tpu.memory_space<vmem>>, vector<150x128xf32>
    %c0_1 = arith.constant 0 : index
    %c0_2 = arith.constant 0 : index
    %1 = vector.load %arg6[%c0_1, %c0_2] : memref<1x128xf32, #tpu.memory_space<vmem>>, vector<1x128xf32>
    %c0_3 = arith.constant 0 : index
    %c0_4 = arith.constant 0 : index
    %2 = vector.load %arg1[%c0_3, %c0_4] : memref<50x150xf32, #tpu.memory_space<vmem>>, vector<50x150xf32>
    %cst = arith.constant dense<0.000000e+00> : vector<50x128xf32>
    %3 = tpu.matmul %2, %0, %cst {dimension_numbers = #tpu.dot_dimension_numbers<[1], [0], [0], [1], [0, 0, 1, 1], [], []>} : vector<50x150xf32>, vector<150x128xf32>, vector<50x128xf32> -> vector<50x128xf32>
    %4 = vector.broadcast %1 : vector<1x128xf32> to vector<50x128xf32>
    %5 = arith.addf %3, %4 : vector<50x128xf32>
    %cst_5 = arith.constant 0.000000e+00 : f32
    %6 = vector.broadcast %cst_5 : f32 to vector<50x128xf32>
    %7 = arith.maximumf %5, %6 : vector<50x128xf32>
    %c0_6 = arith.constant 0 : index
    %c0_7 = arith.constant 0 : index
    %8 = vector.load %arg2[%c0_6, %c0_7] : memref<50x150xf32, #tpu.memory_space<vmem>>, vector<50x150xf32>
    %cst_8 = arith.constant dense<0.000000e+00> : vector<50x128xf32>
    %9 = tpu.matmul %8, %0, %cst_8 {dimension_numbers = #tpu.dot_dimension_numbers<[1], [0], [0], [1], [0, 0, 1, 1], [], []>} : vector<50x150xf32>, vector<150x128xf32>, vector<50x128xf32> -> vector<50x128xf32>
    %10 = vector.broadcast %1 : vector<1x128xf32> to vector<50x128xf32>
    %11 = arith.addf %9, %10 : vector<50x128xf32>
    %cst_9 = arith.constant 0.000000e+00 : f32
    %12 = vector.broadcast %cst_9 : f32 to vector<50x128xf32>
    %13 = arith.maximumf %11, %12 : vector<50x128xf32>
    %14 = arith.maximumf %7, %13 : vector<50x128xf32>
    %c0_10 = arith.constant 0 : index
    %c0_11 = arith.constant 0 : index
    %15 = vector.load %arg3[%c0_10, %c0_11] : memref<50x150xf32, #tpu.memory_space<vmem>>, vector<50x150xf32>
    %cst_12 = arith.constant dense<0.000000e+00> : vector<50x128xf32>
    %16 = tpu.matmul %15, %0, %cst_12 {dimension_numbers = #tpu.dot_dimension_numbers<[1], [0], [0], [1], [0, 0, 1, 1], [], []>} : vector<50x150xf32>, vector<150x128xf32>, vector<50x128xf32> -> vector<50x128xf32>
    %17 = vector.broadcast %1 : vector<1x128xf32> to vector<50x128xf32>
    %18 = arith.addf %16, %17 : vector<50x128xf32>
    %cst_13 = arith.constant 0.000000e+00 : f32
    %19 = vector.broadcast %cst_13 : f32 to vector<50x128xf32>
    %20 = arith.maximumf %18, %19 : vector<50x128xf32>
    %c0_14 = arith.constant 0 : index
    %c0_15 = arith.constant 0 : index
    %21 = vector.load %arg4[%c0_14, %c0_15] : memref<50x150xf32, #tpu.memory_space<vmem>>, vector<50x150xf32>
    %cst_16 = arith.constant dense<0.000000e+00> : vector<50x128xf32>
    %22 = tpu.matmul %21, %0, %cst_16 {dimension_numbers = #tpu.dot_dimension_numbers<[1], [0], [0], [1], [0, 0, 1, 1], [], []>} : vector<50x150xf32>, vector<150x128xf32>, vector<50x128xf32> -> vector<50x128xf32>
    %23 = vector.broadcast %1 : vector<1x128xf32> to vector<50x128xf32>
    %24 = arith.addf %22, %23 : vector<50x128xf32>
    %cst_17 = arith.constant 0.000000e+00 : f32
    %25 = vector.broadcast %cst_17 : f32 to vector<50x128xf32>
    %26 = arith.maximumf %24, %25 : vector<50x128xf32>
    %27 = arith.maximumf %20, %26 : vector<50x128xf32>
    %28 = arith.maximumf %14, %27 : vector<50x128xf32>
    %c0_18 = arith.constant 0 : index
    %c0_19 = arith.constant 0 : index
    %29 = vector.load %arg7[%c0_18, %c0_19] : memref<50x128xf32, #tpu.memory_space<vmem>>, vector<50x128xf32>
    tpu.vector_store %arg7[%c0_18, %c0_19], %28 {strides = array<i32>} : memref<50x128xf32, #tpu.memory_space<vmem>>, vector<50x128xf32>,
    return
  }
  func.func @transform_0(%arg0: i32) -> (i32, i32) {
    %c0_i32 = arith.constant 0 : i32
    %c0_i32_0 = arith.constant 0 : i32
    return %arg0, %c0_i32 : i32, i32
  }
  func.func @transform_1(%arg0: i32) -> (i32, i32) {
    %c0_i32 = arith.constant 0 : i32
    %c0_i32_0 = arith.constant 0 : i32
    return %arg0, %c0_i32 : i32, i32
  }
  func.func @transform_2(%arg0: i32) -> (i32, i32) {
    %c0_i32 = arith.constant 0 : i32
    %c0_i32_0 = arith.constant 0 : i32
    return %arg0, %c0_i32 : i32, i32
  }
  func.func @transform_3(%arg0: i32) -> (i32, i32) {
    %c0_i32 = arith.constant 0 : i32
    %c0_i32_0 = arith.constant 0 : i32
    return %arg0, %c0_i32 : i32, i32
  }
  func.func @transform_4(%arg0: i32) -> (i32, i32) {
    %c0_i32 = arith.constant 0 : i32
    %c0_i32_0 = arith.constant 0 : i32
    %c0_i32_1 = arith.constant 0 : i32
    return %c0_i32, %c0_i32_0 : i32, i32
  }
  func.func @transform_5(%arg0: i32) -> (i32, i32) {
    %c0_i32 = arith.constant 0 : i32
    %c0_i32_0 = arith.constant 0 : i32
    %c0_i32_1 = arith.constant 0 : i32
    return %c0_i32, %c0_i32_0 : i32, i32
  }
  func.func @transform_6(%arg0: i32) -> (i32, i32) {
    %c0_i32 = arith.constant 0 : i32
    %c0_i32_0 = arith.constant 0 : i32
    return %arg0, %c0_i32 : i32, i32
  }
}

module attributes {stable_mosaic.version = 11 : i64} {
  func.func @_fc_stack_kernel(%arg0: i32, %arg1: memref<2x3200xf32, #tpu.memory_space<vmem>>, %arg2: memref<3200x128xf32, #tpu.memory_space<vmem>>, %arg3: memref<1x128xf32, #tpu.memory_space<vmem>>, %arg4: memref<128x128xf32, #tpu.memory_space<vmem>>, %arg5: memref<1x128xf32, #tpu.memory_space<vmem>>, %arg6: memref<128x128xf32, #tpu.memory_space<vmem>>, %arg7: memref<1x128xf32, #tpu.memory_space<vmem>>, %arg8: memref<2x128xf32, #tpu.memory_space<vmem>>) attributes {dimension_semantics = [#tpu.dimension_semantics<arbitrary>], iteration_bounds = array<i64: 1>, scalar_prefetch = 0 : i64, scratch_operands = 0 : i64, tpu.core_type = #tpu.core_type<tc>, window_params = [{pipeline_mode = #tpu.pipeline_mode<synchronous>, transform_indices = @transform_0, window_bounds = array<i64: 2, 3200>}, {pipeline_mode = #tpu.pipeline_mode<synchronous>, transform_indices = @transform_1, window_bounds = array<i64: 3200, 128>}, {pipeline_mode = #tpu.pipeline_mode<synchronous>, transform_indices = @transform_2, window_bounds = array<i64: 1, 128>}, {pipeline_mode = #tpu.pipeline_mode<synchronous>, transform_indices = @transform_3, window_bounds = array<i64: 128, 128>}, {pipeline_mode = #tpu.pipeline_mode<synchronous>, transform_indices = @transform_4, window_bounds = array<i64: 1, 128>}, {pipeline_mode = #tpu.pipeline_mode<synchronous>, transform_indices = @transform_5, window_bounds = array<i64: 128, 128>}, {pipeline_mode = #tpu.pipeline_mode<synchronous>, transform_indices = @transform_6, window_bounds = array<i64: 1, 128>}, {pipeline_mode = #tpu.pipeline_mode<synchronous>, transform_indices = @transform_7, window_bounds = array<i64: 2, 128>}]} {
    %c0 = arith.constant 0 : index
    %c0_0 = arith.constant 0 : index
    %0 = vector.load %arg1[%c0, %c0_0] : memref<2x3200xf32, #tpu.memory_space<vmem>>, vector<2x3200xf32>
    %c0_1 = arith.constant 0 : index
    %c0_2 = arith.constant 0 : index
    %1 = vector.load %arg2[%c0_1, %c0_2] : memref<3200x128xf32, #tpu.memory_space<vmem>>, vector<3200x128xf32>
    %cst = arith.constant dense<0.000000e+00> : vector<2x128xf32>
    %2 = tpu.matmul %0, %1, %cst {dimension_numbers = #tpu.dot_dimension_numbers<[1], [0], [0], [1], [0, 0, 1, 1], [], []>} : vector<2x3200xf32>, vector<3200x128xf32>, vector<2x128xf32> -> vector<2x128xf32>
    %c0_3 = arith.constant 0 : index
    %c0_4 = arith.constant 0 : index
    %3 = vector.load %arg3[%c0_3, %c0_4] : memref<1x128xf32, #tpu.memory_space<vmem>>, vector<1x128xf32>
    %4 = vector.broadcast %3 : vector<1x128xf32> to vector<2x128xf32>
    %5 = arith.addf %2, %4 : vector<2x128xf32>
    %cst_5 = arith.constant 0.000000e+00 : f32
    %6 = vector.broadcast %cst_5 : f32 to vector<2x128xf32>
    %7 = arith.maximumf %5, %6 : vector<2x128xf32>
    %c0_6 = arith.constant 0 : index
    %c0_7 = arith.constant 0 : index
    %8 = vector.load %arg4[%c0_6, %c0_7] : memref<128x128xf32, #tpu.memory_space<vmem>>, vector<128x128xf32>
    %cst_8 = arith.constant dense<0.000000e+00> : vector<2x128xf32>
    %9 = tpu.matmul %7, %8, %cst_8 {dimension_numbers = #tpu.dot_dimension_numbers<[1], [0], [0], [1], [0, 0, 1, 1], [], []>} : vector<2x128xf32>, vector<128x128xf32>, vector<2x128xf32> -> vector<2x128xf32>
    %c0_9 = arith.constant 0 : index
    %c0_10 = arith.constant 0 : index
    %10 = vector.load %arg5[%c0_9, %c0_10] : memref<1x128xf32, #tpu.memory_space<vmem>>, vector<1x128xf32>
    %11 = vector.broadcast %10 : vector<1x128xf32> to vector<2x128xf32>
    %12 = arith.addf %9, %11 : vector<2x128xf32>
    %cst_11 = arith.constant 0.000000e+00 : f32
    %13 = vector.broadcast %cst_11 : f32 to vector<2x128xf32>
    %14 = arith.maximumf %12, %13 : vector<2x128xf32>
    %c0_12 = arith.constant 0 : index
    %c0_13 = arith.constant 0 : index
    %15 = vector.load %arg6[%c0_12, %c0_13] : memref<128x128xf32, #tpu.memory_space<vmem>>, vector<128x128xf32>
    %cst_14 = arith.constant dense<0.000000e+00> : vector<2x128xf32>
    %16 = tpu.matmul %14, %15, %cst_14 {dimension_numbers = #tpu.dot_dimension_numbers<[1], [0], [0], [1], [0, 0, 1, 1], [], []>} : vector<2x128xf32>, vector<128x128xf32>, vector<2x128xf32> -> vector<2x128xf32>
    %c0_15 = arith.constant 0 : index
    %c0_16 = arith.constant 0 : index
    %17 = vector.load %arg7[%c0_15, %c0_16] : memref<1x128xf32, #tpu.memory_space<vmem>>, vector<1x128xf32>
    %18 = vector.broadcast %17 : vector<1x128xf32> to vector<2x128xf32>
    %19 = arith.addf %16, %18 : vector<2x128xf32>
    %c0_17 = arith.constant 0 : index
    %c0_18 = arith.constant 0 : index
    %20 = vector.load %arg8[%c0_17, %c0_18] : memref<2x128xf32, #tpu.memory_space<vmem>>, vector<2x128xf32>
    tpu.vector_store %arg8[%c0_17, %c0_18], %19 {strides = array<i32>} : memref<2x128xf32, #tpu.memory_space<vmem>>, vector<2x128xf32>,
    return
  }
  func.func @transform_0(%arg0: i32) -> (i32, i32) {
    %c0_i32 = arith.constant 0 : i32
    %c0_i32_0 = arith.constant 0 : i32
    %c0_i32_1 = arith.constant 0 : i32
    return %c0_i32, %c0_i32_0 : i32, i32
  }
  func.func @transform_1(%arg0: i32) -> (i32, i32) {
    %c0_i32 = arith.constant 0 : i32
    %c0_i32_0 = arith.constant 0 : i32
    %c0_i32_1 = arith.constant 0 : i32
    return %c0_i32, %c0_i32_0 : i32, i32
  }
  func.func @transform_2(%arg0: i32) -> (i32, i32) {
    %c0_i32 = arith.constant 0 : i32
    %c0_i32_0 = arith.constant 0 : i32
    %c0_i32_1 = arith.constant 0 : i32
    return %c0_i32, %c0_i32_0 : i32, i32
  }
  func.func @transform_3(%arg0: i32) -> (i32, i32) {
    %c0_i32 = arith.constant 0 : i32
    %c0_i32_0 = arith.constant 0 : i32
    %c0_i32_1 = arith.constant 0 : i32
    return %c0_i32, %c0_i32_0 : i32, i32
  }
  func.func @transform_4(%arg0: i32) -> (i32, i32) {
    %c0_i32 = arith.constant 0 : i32
    %c0_i32_0 = arith.constant 0 : i32
    %c0_i32_1 = arith.constant 0 : i32
    return %c0_i32, %c0_i32_0 : i32, i32
  }
  func.func @transform_5(%arg0: i32) -> (i32, i32) {
    %c0_i32 = arith.constant 0 : i32
    %c0_i32_0 = arith.constant 0 : i32
    %c0_i32_1 = arith.constant 0 : i32
    return %c0_i32, %c0_i32_0 : i32, i32
  }
  func.func @transform_6(%arg0: i32) -> (i32, i32) {
    %c0_i32 = arith.constant 0 : i32
    %c0_i32_0 = arith.constant 0 : i32
    %c0_i32_1 = arith.constant 0 : i32
    return %c0_i32, %c0_i32_0 : i32, i32
  }
  func.func @transform_7(%arg0: i32) -> (i32, i32) {
    %c0_i32 = arith.constant 0 : i32
    %c0_i32_0 = arith.constant 0 : i32
    %c0_i32_1 = arith.constant 0 : i32
    return %c0_i32, %c0_i32_0 : i32, i32
  }
}

</mosaic_0001>

<llo_original>
// kernel: net_forward.3
$region0: #{net_forward.3}
  #allocation0 [shape = 'u32[]', space=smem, size = 0x4, offset = 0x4, fixed_abs, tag = 'smem constant byte address 0x4 - core index']
  #allocation1 [shape = 'u32[144,128]{1,0:T(1,128)}', space=vmem, size = 0x12000, scoped, tag = 'internal scratch']
  %s0 = inlined_call_operand.vmem [shape: f32[392,75], index: 0, kind: input, shape index: {}]
  %s1 = inlined_call_operand.vmem [shape: f32[392,75], index: 1, kind: input, shape index: {}]
  %s2 = inlined_call_operand.vmem [shape: f32[392,75], index: 2, kind: input, shape index: {}]
  %s3 = inlined_call_operand.vmem [shape: f32[392,75], index: 3, kind: input, shape index: {}]
  %s4 = inlined_call_operand.vmem [shape: f32[75,128], index: 4, kind: input, shape index: {}]
  %s5 = inlined_call_operand.vmem [shape: f32[1,128], index: 5, kind: input, shape index: {}]
  %s6 = inlined_call_operand.vmem [shape: f32[392,128], index: 6, kind: output, shape index: {}]
  %s7 = sld [smem:[#allocation0]]
  $region34: #{net_forward.3} parent=0
    _
  %s9 = ssub.s32 1, %s7
  %s10 = scalar_select 0, %s9, %s7
  // Predicated region
  $region2: #{net_forward.3} parent=0 // pred_check
    _
  $region3: #{net_forward.3} parent=0 // pred_check_branch
    %12 = sbr.rel (0) target = $region5
  $region4: #{net_forward.3} parent=0 // pred_region
    _
  $region5: #{net_forward.3} parent=0 // pred_fallthru
    _
  // Predicated region
  $region6: #{net_forward.3} parent=0 // pred_check
    _
  $region7: #{net_forward.3} parent=0 // pred_check_branch
    %14 = sbr.rel (0) target = $region9
  $region8: #{net_forward.3} parent=0 // pred_region
    _
  $region9: #{net_forward.3} parent=0 // pred_fallthru
    _
  // Predicated region
  $region10: #{net_forward.3} parent=0 // pred_check
    _
  $region11: #{net_forward.3} parent=0 // pred_check_branch
    %16 = sbr.rel (0) target = $region13
  $region12: #{net_forward.3} parent=0 // pred_region
    _
  $region13: #{net_forward.3} parent=0 // pred_fallthru
    _
  // Predicated region
  $region14: #{net_forward.3} parent=0 // pred_check
    _
  $region15: #{net_forward.3} parent=0 // pred_check_branch
    %18 = sbr.rel (0) target = $region17
  $region16: #{net_forward.3} parent=0 // pred_region
    _
  $region17: #{net_forward.3} parent=0 // pred_fallthru
    _
  // Predicated region
  $region18: #{net_forward.3} parent=0 // pred_check
    _
  $region19: #{net_forward.3} parent=0 // pred_check_branch
    %20 = sbr.rel (0) target = $region21
  $region20: #{net_forward.3} parent=0 // pred_region
    _
  $region21: #{net_forward.3} parent=0 // pred_fallthru
    _
  // Predicated region
  $region22: #{net_forward.3} parent=0 // pred_check
    _
  $region23: #{net_forward.3} parent=0 // pred_check_branch
    %22 = sbr.rel (0) target = $region25
  $region24: #{net_forward.3} parent=0 // pred_region
    _
  $region25: #{net_forward.3} parent=0 // pred_fallthru
    _
  %v23 = vld [vmem:[%s4] sm:$0xff]
  %v24 = vld [vmem:[%s4 + $0x8] sm:$0xff]
  %v25 = vld [vmem:[%s4 + $0x10] sm:$0xff]
  %v26 = vld [vmem:[%s4 + $0x18] sm:$0xff]
  %v27 = vld [vmem:[%s4 + $0x20] sm:$0xff]
  %v28 = vld [vmem:[%s4 + $0x28] sm:$0xff]
  %v29 = vld [vmem:[%s4 + $0x30] sm:$0xff]
  %v30 = vld [vmem:[%s4 + $0x38] sm:$0xff]
  %v31 = vld [vmem:[%s4 + $0x40] sm:$0xff]
  %v32 = vld [vmem:[%s4 + $0x48] sm:$0x7]
  %v33 = vld [vmem:[%s5] sm:$0x1]
  %v34 = vld [vmem:[%s0] sm:$0xff]
  %v35 = vld [vmem:[%s0 + $0x8] sm:$0xff]
  %v36 = vld [vmem:[%s0 + $0x10] sm:$0xff]
  %v37 = vld [vmem:[%s0 + $0x18] sm:$0xff]
  %v38 = vld [vmem:[%s0 + $0x20] sm:$0xff]
  %v39 = vld [vmem:[%s0 + $0x28] sm:$0xff]
  %v40 = vld [vmem:[%s0 + $0x30] sm:$0xff]
  %v41 = vld [vmem:[%s0 + $0x38] sm:$0xff]
  %v42 = vld [vmem:[%s0 + $0x40] sm:$0xff]
  %v43 = vld [vmem:[%s0 + $0x48] sm:$0xff]
  %v44 = vld [vmem:[%s0 + $0x50] sm:$0xff]
  %v45 = vld [vmem:[%s0 + $0x58] sm:$0xff]
  %v46 = vld [vmem:[%s0 + $0x60] sm:$0xff]
  %v47 = vld [vmem:[%s0 + $0x68] sm:$0xff]
  %v48 = vld [vmem:[%s0 + $0x70] sm:$0xff]
  %v49 = vld [vmem:[%s0 + $0x78] sm:$0xff]
  %v50 = vld [vmem:[%s0 + $0x80] sm:$0xff]
  %v51 = vld [vmem:[%s0 + $0x88] sm:$0xff]
  %v52 = vld [vmem:[%s0 + $0x90] sm:$0xff]
  %v53 = vld [vmem:[%s0 + $0x98] sm:$0xff]
  %v54 = vld [vmem:[%s0 + $0xa0] sm:$0xff]
  %v55 = vld [vmem:[%s0 + $0xa8] sm:$0xff]
  %v56 = vld [vmem:[%s0 + $0xb0] sm:$0xff]
  %v57 = vld [vmem:[%s0 + $0xb8] sm:$0xff]
  %v58 = vld [vmem:[%s0 + $0xc0] sm:$0xff]
  %v59 = vld [vmem:[%s0 + $0xc8] sm:$0xff]
  %v60 = vld [vmem:[%s0 + $0xd0] sm:$0xff]
  %v61 = vld [vmem:[%s0 + $0xd8] sm:$0xff]
  %v62 = vld [vmem:[%s0 + $0xe0] sm:$0xff]
  %v63 = vld [vmem:[%s0 + $0xe8] sm:$0xff]
  %v64 = vld [vmem:[%s0 + $0xf0] sm:$0xff]
  %v65 = vld [vmem:[%s0 + $0xf8] sm:$0xff]
  %v66 = vld [vmem:[%s0 + $0x100] sm:$0xff]
  %v67 = vld [vmem:[%s0 + $0x108] sm:$0xff]
  %v68 = vld [vmem:[%s0 + $0x110] sm:$0xff]
  %v69 = vld [vmem:[%s0 + $0x118] sm:$0xff]
  %v70 = vld [vmem:[%s0 + $0x120] sm:$0xff]
  %v71 = vld [vmem:[%s0 + $0x128] sm:$0xff]
  %v72 = vld [vmem:[%s0 + $0x130] sm:$0xff]
  %v73 = vld [vmem:[%s0 + $0x138] sm:$0xff]
  %v74 = vld [vmem:[%s0 + $0x140] sm:$0xff]
  %v75 = vld [vmem:[%s0 + $0x148] sm:$0xff]
  %v76 = vld [vmem:[%s0 + $0x150] sm:$0xff]
  %v77 = vld [vmem:[%s0 + $0x158] sm:$0xff]
  %v78 = vld [vmem:[%s0 + $0x160] sm:$0xff]
  %v79 = vld [vmem:[%s0 + $0x168] sm:$0xff]
  %v80 = vld [vmem:[%s0 + $0x170] sm:$0xff]
  %v81 = vld [vmem:[%s0 + $0x178] sm:$0xff]
  %v82 = vld [vmem:[%s0 + $0x180] sm:$0xff]
  %v84 = vlaneseq
  %v85 = vshrl.u32 %v84, 7
  %v86 = vsub.s32 0, %v85
  %v87 = vrot.slane %v33, %v86
  %vm89 = vcmask 613376
  %v91 = vsel %vm89, %v34, 0
  %v94 = vsel %vm89, %v35, 0
  %v97 = vsel %vm89, %v36, 0
  %v100 = vsel %vm89, %v37, 0
  %v103 = vsel %vm89, %v38, 0
  %v106 = vsel %vm89, %v39, 0
  %v109 = vsel %vm89, %v40, 0
  %v112 = vsel %vm89, %v41, 0
  %v115 = vsel %vm89, %v42, 0
  %v118 = vsel %vm89, %v43, 0
  %v121 = vsel %vm89, %v44, 0
  %v124 = vsel %vm89, %v45, 0
  %v127 = vsel %vm89, %v46, 0
  %v130 = vsel %vm89, %v47, 0
  %v133 = vsel %vm89, %v48, 0
  %v136 = vsel %vm89, %v49, 0
  %v139 = vsel %vm89, %v50, 0
  %v142 = vsel %vm89, %v51, 0
  %v145 = vsel %vm89, %v52, 0
  %v148 = vsel %vm89, %v53, 0
  %v151 = vsel %vm89, %v54, 0
  %v154 = vsel %vm89, %v55, 0
  %v157 = vsel %vm89, %v56, 0
  %v160 = vsel %vm89, %v57, 0
  %v163 = vsel %vm89, %v58, 0
  %v166 = vsel %vm89, %v59, 0
  %v169 = vsel %vm89, %v60, 0
  %v172 = vsel %vm89, %v61, 0
  %v175 = vsel %vm89, %v62, 0
  %v178 = vsel %vm89, %v63, 0
  %v181 = vsel %vm89, %v64, 0
  %v184 = vsel %vm89, %v65, 0
  %v187 = vsel %vm89, %v66, 0
  %v190 = vsel %vm89, %v67, 0
  %v193 = vsel %vm89, %v68, 0
  %v196 = vsel %vm89, %v69, 0
  %v199 = vsel %vm89, %v70, 0
  %v202 = vsel %vm89, %v71, 0
  %v205 = vsel %vm89, %v72, 0
  %v208 = vsel %vm89, %v73, 0
  %v211 = vsel %vm89, %v74, 0
  %v214 = vsel %vm89, %v75, 0
  %v217 = vsel %vm89, %v76, 0
  %v220 = vsel %vm89, %v77, 0
  %v223 = vsel %vm89, %v78, 0
  %v226 = vsel %vm89, %v79, 0
  %v229 = vsel %vm89, %v80, 0
  %v232 = vsel %vm89, %v81, 0
  %v235 = vsel %vm89, %v82, 0
  %vm237 = vcmask 1042432
  %v239 = vsel %vm237, %v32, 0
  %241 = vmatprep.subr.mxu0 0.0
  %242 = vmatpush1.msra.mxu0 0.0
  %243 = vmatprep.subr.mxu0 0.0
  %244 = vmatpush1.msra.mxu0 0.0
  %245 = vmatprep.subr.mxu0 0.0
  %246 = vmatpush1.msra.mxu0 0.0
  %247 = vmatprep.subr.mxu0 0.0
  %248 = vmatpush1.msra.mxu0 0.0
  %249 = vmatprep.subr.mxu0 0.0
  %250 = vmatpush1.msra.mxu0 0.0
  %251 = vmatprep.subr.mxu0 0.0
  %252 = vmatpush1.msra.mxu0 0.0
  %253 = vmatprep.subr.mxu0 0.0
  %254 = vmatpush1.msra.mxu0 %v239
  %255 = vmatprep.subr.mxu0 0.0
  %256 = vmatpush1.msra.mxu0 %v31
  %257 = vmatprep.subr.mxu0 0.0
  %258 = vmatpush1.msra.mxu0 %v30
  %259 = vmatprep.subr.mxu0 0.0
  %260 = vmatpush1.msra.mxu0 %v29
  %261 = vmatprep.subr.mxu0 0.0
  %262 = vmatpush1.msra.mxu0 %v28
  %263 = vmatprep.subr.mxu0 0.0
  %264 = vmatpush1.msra.mxu0 %v27
  %265 = vmatprep.subr.mxu0 0.0
  %266 = vmatpush1.msra.mxu0 %v26
  %267 = vmatprep.subr.mxu0 0.0
  %268 = vmatpush1.msra.mxu0 %v25
  %269 = vmatprep.subr.mxu0 0.0
  %270 = vmatpush1.msra.mxu0 %v24
  %271 = vmatprep.subr.mxu0 0.0
  %272 = vmatpush1.msra.mxu0 %v23
  %273 = vmatprep.subr.mxu0 0.0
  %274 = vmatpush2.msra.mxu0 0.0
  %275 = vmatprep.subr.mxu0 0.0
  %276 = vmatpush2.msra.mxu0 0.0
  %277 = vmatprep.subr.mxu0 0.0
  %278 = vmatpush2.msra.mxu0 0.0
  %279 = vmatprep.subr.mxu0 0.0
  %280 = vmatpush2.msra.mxu0 0.0
  %281 = vmatprep.subr.mxu0 0.0
  %282 = vmatpush2.msra.mxu0 0.0
  %283 = vmatprep.subr.mxu0 0.0
  %284 = vmatpush2.msra.mxu0 0.0
  %285 = vmatprep.subr.mxu0 0.0
  %286 = vmatpush2.msra.mxu0 0.0
  %287 = vmatprep.subr.mxu0 0.0
  %288 = vmatpush2.msra.mxu0 0.0
  %289 = vmatprep.subr.mxu0 0.0
  %290 = vmatpush2.msra.mxu0 0.0
  %291 = vmatprep.subr.mxu0 0.0
  %292 = vmatpush2.msra.mxu0 0.0
  %293 = vmatprep.subr.mxu0 0.0
  %294 = vmatpush2.msra.mxu0 0.0
  %295 = vmatprep.subr.mxu0 0.0
  %296 = vmatpush2.msra.mxu0 0.0
  %297 = vmatprep.subr.mxu0 0.0
  %298 = vmatpush2.msra.mxu0 0.0
  %299 = vmatprep.subr.mxu0 0.0
  %300 = vmatpush2.msra.mxu0 0.0
  %301 = vmatprep.subr.mxu0 0.0
  %302 = vmatpush2.msra.mxu0 0.0
  %303 = vmatprep.subr.mxu0 0.0
  %304 = vmatpush2.msra.mxu0 0.0
  %305 = vmatprep.mubr.f32.mxu0 0.0
  %306 = vmatmul.mubr.f32.gmra.mxu0 %v91
  %v307 = vpop.f32.mrf.mxu0
  %v308 = vadd.f32 %v87, %v307
  %v309 = vpop.f32.mrf.mxu0
  %310 = vmatprep.mubr.f32.mxu0 0.0
  %311 = vmatmul.mubr.f32.gmra.mxu0 %v94
  %v312 = vpop.f32.mrf.mxu0
  %v313 = vadd.f32 %v87, %v312
  %v314 = vpop.f32.mrf.mxu0
  %315 = vmatprep.mubr.f32.mxu0 0.0
  %316 = vmatmul.mubr.f32.gmra.mxu0 %v97
  %v317 = vpop.f32.mrf.mxu0
  %v318 = vadd.f32 %v87, %v317
  %v319 = vpop.f32.mrf.mxu0
  %320 = vmatprep.mubr.f32.mxu0 0.0
  %321 = vmatmul.mubr.f32.gmra.mxu0 %v100
  %v322 = vpop.f32.mrf.mxu0
  %v323 = vadd.f32 %v87, %v322
  %v324 = vpop.f32.mrf.mxu0
  %325 = vmatprep.mubr.f32.mxu0 0.0
  %326 = vmatmul.mubr.f32.gmra.mxu0 %v103
  %v327 = vpop.f32.mrf.mxu0
  %v328 = vadd.f32 %v87, %v327
  %v329 = vpop.f32.mrf.mxu0
  %330 = vmatprep.mubr.f32.mxu0 0.0
  %331 = vmatmul.mubr.f32.gmra.mxu0 %v106
  %v332 = vpop.f32.mrf.mxu0
  %v333 = vadd.f32 %v87, %v332
  %v334 = vpop.f32.mrf.mxu0
  %335 = vmatprep.mubr.f32.mxu0 0.0
  %336 = vmatmul.mubr.f32.gmra.mxu0 %v109
  %v337 = vpop.f32.mrf.mxu0
  %v338 = vadd.f32 %v87, %v337
  %v339 = vpop.f32.mrf.mxu0
  %340 = vmatprep.mubr.f32.mxu0 0.0
  %341 = vmatmul.mubr.f32.gmra.mxu0 %v112
  %v342 = vpop.f32.mrf.mxu0
  %v343 = vadd.f32 %v87, %v342
  %v344 = vpop.f32.mrf.mxu0
  %345 = vmatprep.mubr.f32.mxu0 0.0
  %346 = vmatmul.mubr.f32.gmra.mxu0 %v115
  %v347 = vpop.f32.mrf.mxu0
  %v348 = vadd.f32 %v87, %v347
  %v349 = vpop.f32.mrf.mxu0
  %350 = vmatprep.mubr.f32.mxu0 0.0
  %351 = vmatmul.mubr.f32.gmra.mxu0 %v118
  %v352 = vpop.f32.mrf.mxu0
  %v353 = vadd.f32 %v87, %v352
  %v354 = vpop.f32.mrf.mxu0
  %355 = vmatprep.mubr.f32.mxu0 0.0
  %356 = vmatmul.mubr.f32.gmra.mxu0 %v121
  %v357 = vpop.f32.mrf.mxu0
  %v358 = vadd.f32 %v87, %v357
  %v359 = vpop.f32.mrf.mxu0
  %360 = vmatprep.mubr.f32.mxu0 0.0
  %361 = vmatmul.mubr.f32.gmra.mxu0 %v124
  %v362 = vpop.f32.mrf.mxu0
  %v363 = vadd.f32 %v87, %v362
  %v364 = vpop.f32.mrf.mxu0
  %365 = vmatprep.mubr.f32.mxu0 0.0
  %366 = vmatmul.mubr.f32.gmra.mxu0 %v127
  %v367 = vpop.f32.mrf.mxu0
  %v368 = vadd.f32 %v87, %v367
  %v369 = vpop.f32.mrf.mxu0
  %370 = vmatprep.mubr.f32.mxu0 0.0
  %371 = vmatmul.mubr.f32.gmra.mxu0 %v130
  %v372 = vpop.f32.mrf.mxu0
  %v373 = vadd.f32 %v87, %v372
  %v374 = vpop.f32.mrf.mxu0
  %375 = vmatprep.mubr.f32.mxu0 0.0
  %376 = vmatmul.mubr.f32.gmra.mxu0 %v133
  %v377 = vpop.f32.mrf.mxu0
  %v378 = vadd.f32 %v87, %v377
  %v379 = vpop.f32.mrf.mxu0
  %380 = vmatprep.mubr.f32.mxu0 0.0
  %381 = vmatmul.mubr.f32.gmra.mxu0 %v136
  %v382 = vpop.f32.mrf.mxu0
  %v383 = vadd.f32 %v87, %v382
  %v384 = vpop.f32.mrf.mxu0
  %385 = vmatprep.mubr.f32.mxu0 0.0
  %386 = vmatmul.mubr.f32.gmra.mxu0 %v139
  %v387 = vpop.f32.mrf.mxu0
  %v388 = vadd.f32 %v87, %v387
  %v389 = vpop.f32.mrf.mxu0
  %390 = vmatprep.mubr.f32.mxu0 0.0
  %391 = vmatmul.mubr.f32.gmra.mxu0 %v142
  %v392 = vpop.f32.mrf.mxu0
  %v393 = vadd.f32 %v87, %v392
  %v394 = vpop.f32.mrf.mxu0
  %395 = vmatprep.mubr.f32.mxu0 0.0
  %396 = vmatmul.mubr.f32.gmra.mxu0 %v145
  %v397 = vpop.f32.mrf.mxu0
  %v398 = vadd.f32 %v87, %v397
  %v399 = vpop.f32.mrf.mxu0
  %400 = vmatprep.mubr.f32.mxu0 0.0
  %401 = vmatmul.mubr.f32.gmra.mxu0 %v148
  %v402 = vpop.f32.mrf.mxu0
  %v403 = vadd.f32 %v87, %v402
  %v404 = vpop.f32.mrf.mxu0
  %405 = vmatprep.mubr.f32.mxu0 0.0
  %406 = vmatmul.mubr.f32.gmra.mxu0 %v151
  %v407 = vpop.f32.mrf.mxu0
  %v408 = vadd.f32 %v87, %v407
  %v409 = vpop.f32.mrf.mxu0
  %410 = vmatprep.mubr.f32.mxu0 0.0
  %411 = vmatmul.mubr.f32.gmra.mxu0 %v154
  %v412 = vpop.f32.mrf.mxu0
  %v413 = vadd.f32 %v87, %v412
  %v414 = vpop.f32.mrf.mxu0
  %415 = vmatprep.mubr.f32.mxu0 0.0
  %416 = vmatmul.mubr.f32.gmra.mxu0 %v157
  %v417 = vpop.f32.mrf.mxu0
  %v418 = vadd.f32 %v87, %v417
  %v419 = vpop.f32.mrf.mxu0
  %420 = vmatprep.mubr.f32.mxu0 0.0
  %421 = vmatmul.mubr.f32.gmra.mxu0 %v160
  %v422 = vpop.f32.mrf.mxu0
  %v423 = vadd.f32 %v87, %v422
  %v424 = vpop.f32.mrf.mxu0
  %425 = vmatprep.mubr.f32.mxu0 0.0
  %426 = vmatmul.mubr.f32.gmra.mxu0 %v163
  %v427 = vpop.f32.mrf.mxu0
  %v428 = vadd.f32 %v87, %v427
  %v429 = vpop.f32.mrf.mxu0
  %430 = vmatprep.mubr.f32.mxu0 0.0
  %431 = vmatmul.mubr.f32.gmra.mxu0 %v166
  %v432 = vpop.f32.mrf.mxu0
  %v433 = vadd.f32 %v87, %v432
  %v434 = vpop.f32.mrf.mxu0
  %435 = vmatprep.mubr.f32.mxu0 0.0
  %436 = vmatmul.mubr.f32.gmra.mxu0 %v169
  %v437 = vpop.f32.mrf.mxu0
  %v438 = vadd.f32 %v87, %v437
  %v439 = vpop.f32.mrf.mxu0
  %440 = vmatprep.mubr.f32.mxu0 0.0
  %441 = vmatmul.mubr.f32.gmra.mxu0 %v172
  %v442 = vpop.f32.mrf.mxu0
  %v443 = vadd.f32 %v87, %v442
  %v444 = vpop.f32.mrf.mxu0
  %445 = vmatprep.mubr.f32.mxu0 0.0
  %446 = vmatmul.mubr.f32.gmra.mxu0 %v175
  %v447 = vpop.f32.mrf.mxu0
  %v448 = vadd.f32 %v87, %v447
  %v449 = vpop.f32.mrf.mxu0
  %450 = vmatprep.mubr.f32.mxu0 0.0
  %451 = vmatmul.mubr.f32.gmra.mxu0 %v178
  %v452 = vpop.f32.mrf.mxu0
  %v453 = vadd.f32 %v87, %v452
  %v454 = vpop.f32.mrf.mxu0
  %455 = vmatprep.mubr.f32.mxu0 0.0
  %456 = vmatmul.mubr.f32.gmra.mxu0 %v181
  %v457 = vpop.f32.mrf.mxu0
  %v458 = vadd.f32 %v87, %v457
  %v459 = vpop.f32.mrf.mxu0
  %460 = vmatprep.mubr.f32.mxu0 0.0
  %461 = vmatmul.mubr.f32.gmra.mxu0 %v184
  %v462 = vpop.f32.mrf.mxu0
  %v463 = vadd.f32 %v87, %v462
  %v464 = vpop.f32.mrf.mxu0
  %465 = vmatprep.mubr.f32.mxu0 0.0
  %466 = vmatmul.mubr.f32.gmra.mxu0 %v187
  %v467 = vpop.f32.mrf.mxu0
  %v468 = vadd.f32 %v87, %v467
  %v469 = vpop.f32.mrf.mxu0
  %470 = vmatprep.mubr.f32.mxu0 0.0
  %471 = vmatmul.mubr.f32.gmra.mxu0 %v190
  %v472 = vpop.f32.mrf.mxu0
  %v473 = vadd.f32 %v87, %v472
  %v474 = vpop.f32.mrf.mxu0
  %475 = vmatprep.mubr.f32.mxu0 0.0
  %476 = vmatmul.mubr.f32.gmra.mxu0 %v193
  %v477 = vpop.f32.mrf.mxu0
  %v478 = vadd.f32 %v87, %v477
  %v479 = vpop.f32.mrf.mxu0
  %480 = vmatprep.mubr.f32.mxu0 0.0
  %481 = vmatmul.mubr.f32.gmra.mxu0 %v196
  %v482 = vpop.f32.mrf.mxu0
  %v483 = vadd.f32 %v87, %v482
  %v484 = vpop.f32.mrf.mxu0
  %485 = vmatprep.mubr.f32.mxu0 0.0
  %486 = vmatmul.mubr.f32.gmra.mxu0 %v199
  %v487 = vpop.f32.mrf.mxu0
  %v488 = vadd.f32 %v87, %v487
  %v489 = vpop.f32.mrf.mxu0
  %490 = vmatprep.mubr.f32.mxu0 0.0
  %491 = vmatmul.mubr.f32.gmra.mxu0 %v202
  %v492 = vpop.f32.mrf.mxu0
  %v493 = vadd.f32 %v87, %v492
  %v494 = vpop.f32.mrf.mxu0
  %495 = vmatprep.mubr.f32.mxu0 0.0
  %496 = vmatmul.mubr.f32.gmra.mxu0 %v205
  %v497 = vpop.f32.mrf.mxu0
  %v498 = vadd.f32 %v87, %v497
  %v499 = vpop.f32.mrf.mxu0
  %500 = vmatprep.mubr.f32.mxu0 0.0
  %501 = vmatmul.mubr.f32.gmra.mxu0 %v208
  %v502 = vpop.f32.mrf.mxu0
  %v503 = vadd.f32 %v87, %v502
  %v504 = vpop.f32.mrf.mxu0
  %505 = vmatprep.mubr.f32.mxu0 0.0
  %506 = vmatmul.mubr.f32.gmra.mxu0 %v211
  %v507 = vpop.f32.mrf.mxu0
  %v508 = vadd.f32 %v87, %v507
  %v509 = vpop.f32.mrf.mxu0
  %510 = vmatprep.mubr.f32.mxu0 0.0
  %511 = vmatmul.mubr.f32.gmra.mxu0 %v214
  %v512 = vpop.f32.mrf.mxu0
  %v513 = vadd.f32 %v87, %v512
  %v514 = vpop.f32.mrf.mxu0
  %515 = vmatprep.mubr.f32.mxu0 0.0
  %516 = vmatmul.mubr.f32.gmra.mxu0 %v217
  %v517 = vpop.f32.mrf.mxu0
  %v518 = vadd.f32 %v87, %v517
  %v519 = vpop.f32.mrf.mxu0
  %520 = vmatprep.mubr.f32.mxu0 0.0
  %521 = vmatmul.mubr.f32.gmra.mxu0 %v220
  %v522 = vpop.f32.mrf.mxu0
  %v523 = vadd.f32 %v87, %v522
  %v524 = vpop.f32.mrf.mxu0
  %525 = vmatprep.mubr.f32.mxu0 0.0
  %526 = vmatmul.mubr.f32.gmra.mxu0 %v223
  %v527 = vpop.f32.mrf.mxu0
  %v528 = vadd.f32 %v87, %v527
  %v529 = vpop.f32.mrf.mxu0
  %530 = vmatprep.mubr.f32.mxu0 0.0
  %531 = vmatmul.mubr.f32.gmra.mxu0 %v226
  %v532 = vpop.f32.mrf.mxu0
  %v533 = vadd.f32 %v87, %v532
  %v534 = vpop.f32.mrf.mxu0
  %535 = vmatprep.mubr.f32.mxu0 0.0
  %536 = vmatmul.mubr.f32.gmra.mxu0 %v229
  %v537 = vpop.f32.mrf.mxu0
  %v538 = vadd.f32 %v87, %v537
  %v539 = vpop.f32.mrf.mxu0
  %540 = vmatprep.mubr.f32.mxu0 0.0
  %541 = vmatmul.mubr.f32.gmra.mxu0 %v232
  %v542 = vpop.f32.mrf.mxu0
  %v543 = vadd.f32 %v87, %v542
  %v544 = vpop.f32.mrf.mxu0
  %545 = vmatprep.mubr.f32.mxu0 0.0
  %546 = vmatmul.mubr.f32.gmra.mxu0 %v235
  %v547 = vpop.f32.mrf.mxu0
  %v548 = vadd.f32 %v87, %v547
  %v549 = vpop.f32.mrf.mxu0
  %550 = vdwg.mxu0
  %v551 = vmax.f32 %v308, 0.0
  %v552 = vmax.f32 %v313, 0.0
  %v553 = vmax.f32 %v318, 0.0
  %v554 = vmax.f32 %v323, 0.0
  %v555 = vmax.f32 %v328, 0.0
  %v556 = vmax.f32 %v333, 0.0
  %v557 = vmax.f32 %v338, 0.0
  %v558 = vmax.f32 %v343, 0.0
  %v559 = vmax.f32 %v348, 0.0
  %v560 = vmax.f32 %v353, 0.0
  %v561 = vmax.f32 %v358, 0.0
  %v562 = vmax.f32 %v363, 0.0
  %v563 = vmax.f32 %v368, 0.0
  %v564 = vmax.f32 %v373, 0.0
  %v565 = vmax.f32 %v378, 0.0
  %v566 = vmax.f32 %v383, 0.0
  %v567 = vmax.f32 %v388, 0.0
  %v568 = vmax.f32 %v393, 0.0
  %v569 = vmax.f32 %v398, 0.0
  %v570 = vmax.f32 %v403, 0.0
  %v571 = vmax.f32 %v408, 0.0
  %v572 = vmax.f32 %v413, 0.0
  %v573 = vmax.f32 %v418, 0.0
  %v574 = vmax.f32 %v423, 0.0
  %v575 = vmax.f32 %v428, 0.0
  %v576 = vmax.f32 %v433, 0.0
  %v577 = vmax.f32 %v438, 0.0
  %v578 = vmax.f32 %v443, 0.0
  %v579 = vmax.f32 %v448, 0.0
  %v580 = vmax.f32 %v453, 0.0
  %v581 = vmax.f32 %v458, 0.0
  %v582 = vmax.f32 %v463, 0.0
  %v583 = vmax.f32 %v468, 0.0
  %v584 = vmax.f32 %v473, 0.0
  %v585 = vmax.f32 %v478, 0.0
  %v586 = vmax.f32 %v483, 0.0
  %v587 = vmax.f32 %v488, 0.0
  %v588 = vmax.f32 %v493, 0.0
  %v589 = vmax.f32 %v498, 0.0
  %v590 = vmax.f32 %v503, 0.0
  %v591 = vmax.f32 %v508, 0.0
  %v592 = vmax.f32 %v513, 0.0
  %v593 = vmax.f32 %v518, 0.0
  %v594 = vmax.f32 %v523, 0.0
  %v595 = vmax.f32 %v528, 0.0
  %v596 = vmax.f32 %v533, 0.0
  %v597 = vmax.f32 %v538, 0.0
  %v598 = vmax.f32 %v543, 0.0
  %v599 = vmax.f32 %v548, 0.0
  %v600 = vld [vmem:[%s1] sm:$0xff]
  %v601 = vld [vmem:[%s1 + $0x8] sm:$0xff]
  %v602 = vld [vmem:[%s1 + $0x10] sm:$0xff]
  %v603 = vld [vmem:[%s1 + $0x18] sm:$0xff]
  %v604 = vld [vmem:[%s1 + $0x20] sm:$0xff]
  %v605 = vld [vmem:[%s1 + $0x28] sm:$0xff]
  %v606 = vld [vmem:[%s1 + $0x30] sm:$0xff]
  %v607 = vld [vmem:[%s1 + $0x38] sm:$0xff]
  %v608 = vld [vmem:[%s1 + $0x40] sm:$0xff]
  %v609 = vld [vmem:[%s1 + $0x48] sm:$0xff]
  %v610 = vld [vmem:[%s1 + $0x50] sm:$0xff]
  %v611 = vld [vmem:[%s1 + $0x58] sm:$0xff]
  %v612 = vld [vmem:[%s1 + $0x60] sm:$0xff]
  %v613 = vld [vmem:[%s1 + $0x68] sm:$0xff]
  %v614 = vld [vmem:[%s1 + $0x70] sm:$0xff]
  %v615 = vld [vmem:[%s1 + $0x78] sm:$0xff]
  %v616 = vld [vmem:[%s1 + $0x80] sm:$0xff]
  %v617 = vld [vmem:[%s1 + $0x88] sm:$0xff]
  %v618 = vld [vmem:[%s1 + $0x90] sm:$0xff]
  %v619 = vld [vmem:[%s1 + $0x98] sm:$0xff]
  %v620 = vld [vmem:[%s1 + $0xa0] sm:$0xff]
  %v621 = vld [vmem:[%s1 + $0xa8] sm:$0xff]
  %v622 = vld [vmem:[%s1 + $0xb0] sm:$0xff]
  %v623 = vld [vmem:[%s1 + $0xb8] sm:$0xff]
  %v624 = vld [vmem:[%s1 + $0xc0] sm:$0xff]
  %v625 = vld [vmem:[%s1 + $0xc8] sm:$0xff]
  %v626 = vld [vmem:[%s1 + $0xd0] sm:$0xff]
  %v627 = vld [vmem:[%s1 + $0xd8] sm:$0xff]
  %v628 = vld [vmem:[%s1 + $0xe0] sm:$0xff]
  %v629 = vld [vmem:[%s1 + $0xe8] sm:$0xff]
  %v630 = vld [vmem:[%s1 + $0xf0] sm:$0xff]
  %v631 = vld [vmem:[%s1 + $0xf8] sm:$0xff]
  %v632 = vld [vmem:[%s1 + $0x100] sm:$0xff]
  %v633 = vld [vmem:[%s1 + $0x108] sm:$0xff]
  %v634 = vld [vmem:[%s1 + $0x110] sm:$0xff]
  %v635 = vld [vmem:[%s1 + $0x118] sm:$0xff]
  %v636 = vld [vmem:[%s1 + $0x120] sm:$0xff]
  %v637 = vld [vmem:[%s1 + $0x128] sm:$0xff]
  %v638 = vld [vmem:[%s1 + $0x130] sm:$0xff]
  %v639 = vld [vmem:[%s1 + $0x138] sm:$0xff]
  %v640 = vld [vmem:[%s1 + $0x140] sm:$0xff]
  %v641 = vld [vmem:[%s1 + $0x148] sm:$0xff]
  %v642 = vld [vmem:[%s1 + $0x150] sm:$0xff]
  %v643 = vld [vmem:[%s1 + $0x158] sm:$0xff]
  %v644 = vld [vmem:[%s1 + $0x160] sm:$0xff]
  %v645 = vld [vmem:[%s1 + $0x168] sm:$0xff]
  %v646 = vld [vmem:[%s1 + $0x170] sm:$0xff]
  %v647 = vld [vmem:[%s1 + $0x178] sm:$0xff]
  %v648 = vld [vmem:[%s1 + $0x180] sm:$0xff]
  %v650 = vsel %vm89, %v600, 0
  %v653 = vsel %vm89, %v601, 0
  %v656 = vsel %vm89, %v602, 0
  %v659 = vsel %vm89, %v603, 0
  %v662 = vsel %vm89, %v604, 0
  %v665 = vsel %vm89, %v605, 0
  %v668 = vsel %vm89, %v606, 0
  %v671 = vsel %vm89, %v607, 0
  %v674 = vsel %vm89, %v608, 0
  %v677 = vsel %vm89, %v609, 0
  %v680 = vsel %vm89, %v610, 0
  %v683 = vsel %vm89, %v611, 0
  %v686 = vsel %vm89, %v612, 0
  %v689 = vsel %vm89, %v613, 0
  %v692 = vsel %vm89, %v614, 0
  %v695 = vsel %vm89, %v615, 0
  %v698 = vsel %vm89, %v616, 0
  %v701 = vsel %vm89, %v617, 0
  %v704 = vsel %vm89, %v618, 0
  %v707 = vsel %vm89, %v619, 0
  %v710 = vsel %vm89, %v620, 0
  %v713 = vsel %vm89, %v621, 0
  %v716 = vsel %vm89, %v622, 0
  %v719 = vsel %vm89, %v623, 0
  %v722 = vsel %vm89, %v624, 0
  %v725 = vsel %vm89, %v625, 0
  %v728 = vsel %vm89, %v626, 0
  %v731 = vsel %vm89, %v627, 0
  %v734 = vsel %vm89, %v628, 0
  %v737 = vsel %vm89, %v629, 0
  %v740 = vsel %vm89, %v630, 0
  %v743 = vsel %vm89, %v631, 0
  %v746 = vsel %vm89, %v632, 0
  %v749 = vsel %vm89, %v633, 0
  %v752 = vsel %vm89, %v634, 0
  %v755 = vsel %vm89, %v635, 0
  %v758 = vsel %vm89, %v636, 0
  %v761 = vsel %vm89, %v637, 0
  %v764 = vsel %vm89, %v638, 0
  %v767 = vsel %vm89, %v639, 0
  %v770 = vsel %vm89, %v640, 0
  %v773 = vsel %vm89, %v641, 0
  %v776 = vsel %vm89, %v642, 0
  %v779 = vsel %vm89, %v643, 0
  %v782 = vsel %vm89, %v644, 0
  %v785 = vsel %vm89, %v645, 0
  %v788 = vsel %vm89, %v646, 0
  %v791 = vsel %vm89, %v647, 0
  %v794 = vsel %vm89, %v648, 0
  %796 = vmatprep.subr.mxu0 0.0
  %797 = vmatpush1.msra.mxu0 0.0
  %798 = vmatprep.subr.mxu0 0.0
  %799 = vmatpush1.msra.mxu0 0.0
  %800 = vmatprep.subr.mxu0 0.0
  %801 = vmatpush1.msra.mxu0 0.0
  %802 = vmatprep.subr.mxu0 0.0
  %803 = vmatpush1.msra.mxu0 0.0
  %804 = vmatprep.subr.mxu0 0.0
  %805 = vmatpush1.msra.mxu0 0.0
  %806 = vmatprep.subr.mxu0 0.0
  %807 = vmatpush1.msra.mxu0 0.0
  %808 = vmatprep.subr.mxu0 0.0
  %809 = vmatpush1.msra.mxu0 %v239
  %810 = vmatprep.subr.mxu0 0.0
  %811 = vmatpush1.msra.mxu0 %v31
  %812 = vmatprep.subr.mxu0 0.0
  %813 = vmatpush1.msra.mxu0 %v30
  %814 = vmatprep.subr.mxu0 0.0
  %815 = vmatpush1.msra.mxu0 %v29
  %816 = vmatprep.subr.mxu0 0.0
  %817 = vmatpush1.msra.mxu0 %v28
  %818 = vmatprep.subr.mxu0 0.0
  %819 = vmatpush1.msra.mxu0 %v27
  %820 = vmatprep.subr.mxu0 0.0
  %821 = vmatpush1.msra.mxu0 %v26
  %822 = vmatprep.subr.mxu0 0.0
  %823 = vmatpush1.msra.mxu0 %v25
  %824 = vmatprep.subr.mxu0 0.0
  %825 = vmatpush1.msra.mxu0 %v24
  %826 = vmatprep.subr.mxu0 0.0
  %827 = vmatpush1.msra.mxu0 %v23
  %828 = vmatprep.subr.mxu0 0.0
  %829 = vmatpush2.msra.mxu0 0.0
  %830 = vmatprep.subr.mxu0 0.0
  %831 = vmatpush2.msra.mxu0 0.0
  %832 = vmatprep.subr.mxu0 0.0
  %833 = vmatpush2.msra.mxu0 0.0
  %834 = vmatprep.subr.mxu0 0.0
  %835 = vmatpush2.msra.mxu0 0.0
  %836 = vmatprep.subr.mxu0 0.0
  %837 = vmatpush2.msra.mxu0 0.0
  %838 = vmatprep.subr.mxu0 0.0
  %839 = vmatpush2.msra.mxu0 0.0
  %840 = vmatprep.subr.mxu0 0.0
  %841 = vmatpush2.msra.mxu0 0.0
  %842 = vmatprep.subr.mxu0 0.0
  %843 = vmatpush2.msra.mxu0 0.0
  %844 = vmatprep.subr.mxu0 0.0
  %845 = vmatpush2.msra.mxu0 0.0
  %846 = vmatprep.subr.mxu0 0.0
  %847 = vmatpush2.msra.mxu0 0.0
  %848 = vmatprep.subr.mxu0 0.0
  %849 = vmatpush2.msra.mxu0 0.0
  %850 = vmatprep.subr.mxu0 0.0
  %851 = vmatpush2.msra.mxu0 0.0
  %852 = vmatprep.subr.mxu0 0.0
  %853 = vmatpush2.msra.mxu0 0.0
  %854 = vmatprep.subr.mxu0 0.0
  %855 = vmatpush2.msra.mxu0 0.0
  %856 = vmatprep.subr.mxu0 0.0
  %857 = vmatpush2.msra.mxu0 0.0
  %858 = vmatprep.subr.mxu0 0.0
  %859 = vmatpush2.msra.mxu0 0.0
  %860 = vmatprep.mubr.f32.mxu0 0.0
  %861 = vmatmul.mubr.f32.gmra.mxu0 %v650
  %v862 = vpop.f32.mrf.mxu0
  %v863 = vadd.f32 %v87, %v862
  %v864 = vpop.f32.mrf.mxu0
  %865 = vmatprep.mubr.f32.mxu0 0.0
  %866 = vmatmul.mubr.f32.gmra.mxu0 %v653
  %v867 = vpop.f32.mrf.mxu0
  %v868 = vadd.f32 %v87, %v867
  %v869 = vpop.f32.mrf.mxu0
  %870 = vmatprep.mubr.f32.mxu0 0.0
  %871 = vmatmul.mubr.f32.gmra.mxu0 %v656
  %v872 = vpop.f32.mrf.mxu0
  %v873 = vadd.f32 %v87, %v872
  %v874 = vpop.f32.mrf.mxu0
  %875 = vmatprep.mubr.f32.mxu0 0.0
  %876 = vmatmul.mubr.f32.gmra.mxu0 %v659
  %v877 = vpop.f32.mrf.mxu0
  %v878 = vadd.f32 %v87, %v877
  %v879 = vpop.f32.mrf.mxu0
  %880 = vmatprep.mubr.f32.mxu0 0.0
  %881 = vmatmul.mubr.f32.gmra.mxu0 %v662
  %v882 = vpop.f32.mrf.mxu0
  %v883 = vadd.f32 %v87, %v882
  %v884 = vpop.f32.mrf.mxu0
  %885 = vmatprep.mubr.f32.mxu0 0.0
  %886 = vmatmul.mubr.f32.gmra.mxu0 %v665
  %v887 = vpop.f32.mrf.mxu0
  %v888 = vadd.f32 %v87, %v887
  %v889 = vpop.f32.mrf.mxu0
  %890 = vmatprep.mubr.f32.mxu0 0.0
  %891 = vmatmul.mubr.f32.gmra.mxu0 %v668
  %v892 = vpop.f32.mrf.mxu0
  %v893 = vadd.f32 %v87, %v892
  %v894 = vpop.f32.mrf.mxu0
  %895 = vmatprep.mubr.f32.mxu0 0.0
  %896 = vmatmul.mubr.f32.gmra.mxu0 %v671
  %v897 = vpop.f32.mrf.mxu0
  %v898 = vadd.f32 %v87, %v897
  %v899 = vpop.f32.mrf.mxu0
  %900 = vmatprep.mubr.f32.mxu0 0.0
  %901 = vmatmul.mubr.f32.gmra.mxu0 %v674
  %v902 = vpop.f32.mrf.mxu0
  %v903 = vadd.f32 %v87, %v902
  %v904 = vpop.f32.mrf.mxu0
  %905 = vmatprep.mubr.f32.mxu0 0.0
  %906 = vmatmul.mubr.f32.gmra.mxu0 %v677
  %v907 = vpop.f32.mrf.mxu0
  %v908 = vadd.f32 %v87, %v907
  %v909 = vpop.f32.mrf.mxu0
  %910 = vmatprep.mubr.f32.mxu0 0.0
  %911 = vmatmul.mubr.f32.gmra.mxu0 %v680
  %v912 = vpop.f32.mrf.mxu0
  %v913 = vadd.f32 %v87, %v912
  %v914 = vpop.f32.mrf.mxu0
  %915 = vmatprep.mubr.f32.mxu0 0.0
  %916 = vmatmul.mubr.f32.gmra.mxu0 %v683
  %v917 = vpop.f32.mrf.mxu0
  %v918 = vadd.f32 %v87, %v917
  %v919 = vpop.f32.mrf.mxu0
  %920 = vmatprep.mubr.f32.mxu0 0.0
  %921 = vmatmul.mubr.f32.gmra.mxu0 %v686
  %v922 = vpop.f32.mrf.mxu0
  %v923 = vadd.f32 %v87, %v922
  %v924 = vpop.f32.mrf.mxu0
  %925 = vmatprep.mubr.f32.mxu0 0.0
  %926 = vmatmul.mubr.f32.gmra.mxu0 %v689
  %v927 = vpop.f32.mrf.mxu0
  %v928 = vadd.f32 %v87, %v927
  %v929 = vpop.f32.mrf.mxu0
  %930 = vmatprep.mubr.f32.mxu0 0.0
  %931 = vmatmul.mubr.f32.gmra.mxu0 %v692
  %v932 = vpop.f32.mrf.mxu0
  %v933 = vadd.f32 %v87, %v932
  %v934 = vpop.f32.mrf.mxu0
  %935 = vmatprep.mubr.f32.mxu0 0.0
  %936 = vmatmul.mubr.f32.gmra.mxu0 %v695
  %v937 = vpop.f32.mrf.mxu0
  %v938 = vadd.f32 %v87, %v937
  %v939 = vpop.f32.mrf.mxu0
  %940 = vmatprep.mubr.f32.mxu0 0.0
  %941 = vmatmul.mubr.f32.gmra.mxu0 %v698
  %v942 = vpop.f32.mrf.mxu0
  %v943 = vadd.f32 %v87, %v942
  %v944 = vpop.f32.mrf.mxu0
  %945 = vmatprep.mubr.f32.mxu0 0.0
  %946 = vmatmul.mubr.f32.gmra.mxu0 %v701
  %v947 = vpop.f32.mrf.mxu0
  %v948 = vadd.f32 %v87, %v947
  %v949 = vpop.f32.mrf.mxu0
  %950 = vmatprep.mubr.f32.mxu0 0.0
  %951 = vmatmul.mubr.f32.gmra.mxu0 %v704
  %v952 = vpop.f32.mrf.mxu0
  %v953 = vadd.f32 %v87, %v952
  %v954 = vpop.f32.mrf.mxu0
  %955 = vmatprep.mubr.f32.mxu0 0.0
  %956 = vmatmul.mubr.f32.gmra.mxu0 %v707
  %v957 = vpop.f32.mrf.mxu0
  %v958 = vadd.f32 %v87, %v957
  %v959 = vpop.f32.mrf.mxu0
  %960 = vmatprep.mubr.f32.mxu0 0.0
  %961 = vmatmul.mubr.f32.gmra.mxu0 %v710
  %v962 = vpop.f32.mrf.mxu0
  %v963 = vadd.f32 %v87, %v962
  %v964 = vpop.f32.mrf.mxu0
  %965 = vmatprep.mubr.f32.mxu0 0.0
  %966 = vmatmul.mubr.f32.gmra.mxu0 %v713
  %v967 = vpop.f32.mrf.mxu0
  %v968 = vadd.f32 %v87, %v967
  %v969 = vpop.f32.mrf.mxu0
  %970 = vmatprep.mubr.f32.mxu0 0.0
  %971 = vmatmul.mubr.f32.gmra.mxu0 %v716
  %v972 = vpop.f32.mrf.mxu0
  %v973 = vadd.f32 %v87, %v972
  %v974 = vpop.f32.mrf.mxu0
  %975 = vmatprep.mubr.f32.mxu0 0.0
  %976 = vmatmul.mubr.f32.gmra.mxu0 %v719
  %v977 = vpop.f32.mrf.mxu0
  %v978 = vadd.f32 %v87, %v977
  %v979 = vpop.f32.mrf.mxu0
  %980 = vmatprep.mubr.f32.mxu0 0.0
  %981 = vmatmul.mubr.f32.gmra.mxu0 %v722
  %v982 = vpop.f32.mrf.mxu0
  %v983 = vadd.f32 %v87, %v982
  %v984 = vpop.f32.mrf.mxu0
  %985 = vmatprep.mubr.f32.mxu0 0.0
  %986 = vmatmul.mubr.f32.gmra.mxu0 %v725
  %v987 = vpop.f32.mrf.mxu0
  %v988 = vadd.f32 %v87, %v987
  %v989 = vpop.f32.mrf.mxu0
  %990 = vmatprep.mubr.f32.mxu0 0.0
  %991 = vmatmul.mubr.f32.gmra.mxu0 %v728
  %v992 = vpop.f32.mrf.mxu0
  %v993 = vadd.f32 %v87, %v992
  %v994 = vpop.f32.mrf.mxu0
  %995 = vmatprep.mubr.f32.mxu0 0.0
  %996 = vmatmul.mubr.f32.gmra.mxu0 %v731
  %v997 = vpop.f32.mrf.mxu0
  %v998 = vadd.f32 %v87, %v997
  %v999 = vpop.f32.mrf.mxu0
  %1000 = vmatprep.mubr.f32.mxu0 0.0
  %1001 = vmatmul.mubr.f32.gmra.mxu0 %v734
  %v1002 = vpop.f32.mrf.mxu0
  %v1003 = vadd.f32 %v87, %v1002
  %v1004 = vpop.f32.mrf.mxu0
  %1005 = vmatprep.mubr.f32.mxu0 0.0
  %1006 = vmatmul.mubr.f32.gmra.mxu0 %v737
  %v1007 = vpop.f32.mrf.mxu0
  %v1008 = vadd.f32 %v87, %v1007
  %v1009 = vpop.f32.mrf.mxu0
  %1010 = vmatprep.mubr.f32.mxu0 0.0
  %1011 = vmatmul.mubr.f32.gmra.mxu0 %v740
  %v1012 = vpop.f32.mrf.mxu0
  %v1013 = vadd.f32 %v87, %v1012
  %v1014 = vpop.f32.mrf.mxu0
  %1015 = vmatprep.mubr.f32.mxu0 0.0
  %1016 = vmatmul.mubr.f32.gmra.mxu0 %v743
  %v1017 = vpop.f32.mrf.mxu0
  %v1018 = vadd.f32 %v87, %v1017
  %v1019 = vpop.f32.mrf.mxu0
  %1020 = vmatprep.mubr.f32.mxu0 0.0
  %1021 = vmatmul.mubr.f32.gmra.mxu0 %v746
  %v1022 = vpop.f32.mrf.mxu0
  %v1023 = vadd.f32 %v87, %v1022
  %v1024 = vpop.f32.mrf.mxu0
  %1025 = vmatprep.mubr.f32.mxu0 0.0
  %1026 = vmatmul.mubr.f32.gmra.mxu0 %v749
  %v1027 = vpop.f32.mrf.mxu0
  %v1028 = vadd.f32 %v87, %v1027
  %v1029 = vpop.f32.mrf.mxu0
  %1030 = vmatprep.mubr.f32.mxu0 0.0
  %1031 = vmatmul.mubr.f32.gmra.mxu0 %v752
  %v1032 = vpop.f32.mrf.mxu0
  %v1033 = vadd.f32 %v87, %v1032
  %v1034 = vpop.f32.mrf.mxu0
  %1035 = vmatprep.mubr.f32.mxu0 0.0
  %1036 = vmatmul.mubr.f32.gmra.mxu0 %v755
  %v1037 = vpop.f32.mrf.mxu0
  %v1038 = vadd.f32 %v87, %v1037
  %v1039 = vpop.f32.mrf.mxu0
  %1040 = vmatprep.mubr.f32.mxu0 0.0
  %1041 = vmatmul.mubr.f32.gmra.mxu0 %v758
  %v1042 = vpop.f32.mrf.mxu0
  %v1043 = vadd.f32 %v87, %v1042
  %v1044 = vpop.f32.mrf.mxu0
  %1045 = vmatprep.mubr.f32.mxu0 0.0
  %1046 = vmatmul.mubr.f32.gmra.mxu0 %v761
  %v1047 = vpop.f32.mrf.mxu0
  %v1048 = vadd.f32 %v87, %v1047
  %v1049 = vpop.f32.mrf.mxu0
  %1050 = vmatprep.mubr.f32.mxu0 0.0
  %1051 = vmatmul.mubr.f32.gmra.mxu0 %v764
  %v1052 = vpop.f32.mrf.mxu0
  %v1053 = vadd.f32 %v87, %v1052
  %v1054 = vpop.f32.mrf.mxu0
  %1055 = vmatprep.mubr.f32.mxu0 0.0
  %1056 = vmatmul.mubr.f32.gmra.mxu0 %v767
  %v1057 = vpop.f32.mrf.mxu0
  %v1058 = vadd.f32 %v87, %v1057
  %v1059 = vpop.f32.mrf.mxu0
  %1060 = vmatprep.mubr.f32.mxu0 0.0
  %1061 = vmatmul.mubr.f32.gmra.mxu0 %v770
  %v1062 = vpop.f32.mrf.mxu0
  %v1063 = vadd.f32 %v87, %v1062
  %v1064 = vpop.f32.mrf.mxu0
  %1065 = vmatprep.mubr.f32.mxu0 0.0
  %1066 = vmatmul.mubr.f32.gmra.mxu0 %v773
  %v1067 = vpop.f32.mrf.mxu0
  %v1068 = vadd.f32 %v87, %v1067
  %v1069 = vpop.f32.mrf.mxu0
  %1070 = vmatprep.mubr.f32.mxu0 0.0
  %1071 = vmatmul.mubr.f32.gmra.mxu0 %v776
  %v1072 = vpop.f32.mrf.mxu0
  %v1073 = vadd.f32 %v87, %v1072
  %v1074 = vpop.f32.mrf.mxu0
  %1075 = vmatprep.mubr.f32.mxu0 0.0
  %1076 = vmatmul.mubr.f32.gmra.mxu0 %v779
  %v1077 = vpop.f32.mrf.mxu0
  %v1078 = vadd.f32 %v87, %v1077
  %v1079 = vpop.f32.mrf.mxu0
  %1080 = vmatprep.mubr.f32.mxu0 0.0
  %1081 = vmatmul.mubr.f32.gmra.mxu0 %v782
  %v1082 = vpop.f32.mrf.mxu0
  %v1083 = vadd.f32 %v87, %v1082
  %v1084 = vpop.f32.mrf.mxu0
  %1085 = vmatprep.mubr.f32.mxu0 0.0
  %1086 = vmatmul.mubr.f32.gmra.mxu0 %v785
  %v1087 = vpop.f32.mrf.mxu0
  %v1088 = vadd.f32 %v87, %v1087
  %v1089 = vpop.f32.mrf.mxu0
  %1090 = vmatprep.mubr.f32.mxu0 0.0
  %1091 = vmatmul.mubr.f32.gmra.mxu0 %v788
  %v1092 = vpop.f32.mrf.mxu0
  %v1093 = vadd.f32 %v87, %v1092
  %v1094 = vpop.f32.mrf.mxu0
  %1095 = vmatprep.mubr.f32.mxu0 0.0
  %1096 = vmatmul.mubr.f32.gmra.mxu0 %v791
  %v1097 = vpop.f32.mrf.mxu0
  %v1098 = vadd.f32 %v87, %v1097
  %v1099 = vpop.f32.mrf.mxu0
  %1100 = vmatprep.mubr.f32.mxu0 0.0
  %1101 = vmatmul.mubr.f32.gmra.mxu0 %v794
  %v1102 = vpop.f32.mrf.mxu0
  %v1103 = vadd.f32 %v87, %v1102
  %v1104 = vpop.f32.mrf.mxu0
  %1105 = vdwg.mxu0
  %v1106 = vmax.f32 %v863, 0.0
  %v1107 = vmax.f32 %v868, 0.0
  %v1108 = vmax.f32 %v873, 0.0
  %v1109 = vmax.f32 %v878, 0.0
  %v1110 = vmax.f32 %v883, 0.0
  %v1111 = vmax.f32 %v888, 0.0
  %v1112 = vmax.f32 %v893, 0.0
  %v1113 = vmax.f32 %v898, 0.0
  %v1114 = vmax.f32 %v903, 0.0
  %v1115 = vmax.f32 %v908, 0.0
  %v1116 = vmax.f32 %v913, 0.0
  %v1117 = vmax.f32 %v918, 0.0
  %v1118 = vmax.f32 %v923, 0.0
  %v1119 = vmax.f32 %v928, 0.0
  %v1120 = vmax.f32 %v933, 0.0
  %v1121 = vmax.f32 %v938, 0.0
  %v1122 = vmax.f32 %v943, 0.0
  %v1123 = vmax.f32 %v948, 0.0
  %v1124 = vmax.f32 %v953, 0.0
  %v1125 = vmax.f32 %v958, 0.0
  %v1126 = vmax.f32 %v963, 0.0
  %v1127 = vmax.f32 %v968, 0.0
  %v1128 = vmax.f32 %v973, 0.0
  %v1129 = vmax.f32 %v978, 0.0
  %v1130 = vmax.f32 %v983, 0.0
  %v1131 = vmax.f32 %v988, 0.0
  %v1132 = vmax.f32 %v993, 0.0
  %v1133 = vmax.f32 %v998, 0.0
  %v1134 = vmax.f32 %v1003, 0.0
  %v1135 = vmax.f32 %v1008, 0.0
  %v1136 = vmax.f32 %v1013, 0.0
  %v1137 = vmax.f32 %v1018, 0.0
  %v1138 = vmax.f32 %v1023, 0.0
  %v1139 = vmax.f32 %v1028, 0.0
  %v1140 = vmax.f32 %v1033, 0.0
  %v1141 = vmax.f32 %v1038, 0.0
  %v1142 = vmax.f32 %v1043, 0.0
  %v1143 = vmax.f32 %v1048, 0.0
  %v1144 = vmax.f32 %v1053, 0.0
  %v1145 = vmax.f32 %v1058, 0.0
  %v1146 = vmax.f32 %v1063, 0.0
  %v1147 = vmax.f32 %v1068, 0.0
  %v1148 = vmax.f32 %v1073, 0.0
  %v1149 = vmax.f32 %v1078, 0.0
  %v1150 = vmax.f32 %v1083, 0.0
  %v1151 = vmax.f32 %v1088, 0.0
  %v1152 = vmax.f32 %v1093, 0.0
  %v1153 = vmax.f32 %v1098, 0.0
  %v1154 = vmax.f32 %v1103, 0.0
  %v1155 = vmax.f32 %v551, %v1106
  %v1156 = vmax.f32 %v552, %v1107
  %v1157 = vmax.f32 %v553, %v1108
  %v1158 = vmax.f32 %v554, %v1109
  %v1159 = vmax.f32 %v555, %v1110
  %v1160 = vmax.f32 %v556, %v1111
  %v1161 = vmax.f32 %v557, %v1112
  %v1162 = vmax.f32 %v558, %v1113
  %v1163 = vmax.f32 %v559, %v1114
  %v1164 = vmax.f32 %v560, %v1115
  %v1165 = vmax.f32 %v561, %v1116
  %v1166 = vmax.f32 %v562, %v1117
  %v1167 = vmax.f32 %v563, %v1118
  %v1168 = vmax.f32 %v564, %v1119
  %v1169 = vmax.f32 %v565, %v1120
  %v1170 = vmax.f32 %v566, %v1121
  %v1171 = vmax.f32 %v567, %v1122
  %v1172 = vmax.f32 %v568, %v1123
  %v1173 = vmax.f32 %v569, %v1124
  %v1174 = vmax.f32 %v570, %v1125
  %v1175 = vmax.f32 %v571, %v1126
  %v1176 = vmax.f32 %v572, %v1127
  %v1177 = vmax.f32 %v573, %v1128
  %v1178 = vmax.f32 %v574, %v1129
  %v1179 = vmax.f32 %v575, %v1130
  %v1180 = vmax.f32 %v576, %v1131
  %v1181 = vmax.f32 %v577, %v1132
  %v1182 = vmax.f32 %v578, %v1133
  %v1183 = vmax.f32 %v579, %v1134
  %v1184 = vmax.f32 %v580, %v1135
  %v1185 = vmax.f32 %v581, %v1136
  %v1186 = vmax.f32 %v582, %v1137
  %v1187 = vmax.f32 %v583, %v1138
  %v1188 = vmax.f32 %v584, %v1139
  %v1189 = vmax.f32 %v585, %v1140
  %v1190 = vmax.f32 %v586, %v1141
  %v1191 = vmax.f32 %v587, %v1142
  %v1192 = vmax.f32 %v588, %v1143
  %v1193 = vmax.f32 %v589, %v1144
  %v1194 = vmax.f32 %v590, %v1145
  %v1195 = vmax.f32 %v591, %v1146
  %v1196 = vmax.f32 %v592, %v1147
  %v1197 = vmax.f32 %v593, %v1148
  %v1198 = vmax.f32 %v594, %v1149
  %v1199 = vmax.f32 %v595, %v1150
  %v1200 = vmax.f32 %v596, %v1151
  %v1201 = vmax.f32 %v597, %v1152
  %v1202 = vmax.f32 %v598, %v1153
  %v1203 = vmax.f32 %v599, %v1154
  %v1204 = vld [vmem:[%s2] sm:$0xff]
  %v1205 = vld [vmem:[%s2 + $0x8] sm:$0xff]
  %v1206 = vld [vmem:[%s2 + $0x10] sm:$0xff]
  %v1207 = vld [vmem:[%s2 + $0x18] sm:$0xff]
  %v1208 = vld [vmem:[%s2 + $0x20] sm:$0xff]
  %v1209 = vld [vmem:[%s2 + $0x28] sm:$0xff]
  %v1210 = vld [vmem:[%s2 + $0x30] sm:$0xff]
  %v1211 = vld [vmem:[%s2 + $0x38] sm:$0xff]
  %v1212 = vld [vmem:[%s2 + $0x40] sm:$0xff]
  %v1213 = vld [vmem:[%s2 + $0x48] sm:$0xff]
  %v1214 = vld [vmem:[%s2 + $0x50] sm:$0xff]
  %v1215 = vld [vmem:[%s2 + $0x58] sm:$0xff]
  %v1216 = vld [vmem:[%s2 + $0x60] sm:$0xff]
  %v1217 = vld [vmem:[%s2 + $0x68] sm:$0xff]
  %v1218 = vld [vmem:[%s2 + $0x70] sm:$0xff]
  %v1219 = vld [vmem:[%s2 + $0x78] sm:$0xff]
  %v1220 = vld [vmem:[%s2 + $0x80] sm:$0xff]
  %v1221 = vld [vmem:[%s2 + $0x88] sm:$0xff]
  %v1222 = vld [vmem:[%s2 + $0x90] sm:$0xff]
  %v1223 = vld [vmem:[%s2 + $0x98] sm:$0xff]
  %v1224 = vld [vmem:[%s2 + $0xa0] sm:$0xff]
  %v1225 = vld [vmem:[%s2 + $0xa8] sm:$0xff]
  %v1226 = vld [vmem:[%s2 + $0xb0] sm:$0xff]
  %v1227 = vld [vmem:[%s2 + $0xb8] sm:$0xff]
  %v1228 = vld [vmem:[%s2 + $0xc0] sm:$0xff]
  %v1229 = vld [vmem:[%s2 + $0xc8] sm:$0xff]
  %v1230 = vld [vmem:[%s2 + $0xd0] sm:$0xff]
  %v1231 = vld [vmem:[%s2 + $0xd8] sm:$0xff]
  %v1232 = vld [vmem:[%s2 + $0xe0] sm:$0xff]
  %v1233 = vld [vmem:[%s2 + $0xe8] sm:$0xff]
  %v1234 = vld [vmem:[%s2 + $0xf0] sm:$0xff]
  %v1235 = vld [vmem:[%s2 + $0xf8] sm:$0xff]
  %v1236 = vld [vmem:[%s2 + $0x100] sm:$0xff]
  %v1237 = vld [vmem:[%s2 + $0x108] sm:$0xff]
  %v1238 = vld [vmem:[%s2 + $0x110] sm:$0xff]
  %v1239 = vld [vmem:[%s2 + $0x118] sm:$0xff]
  %v1240 = vld [vmem:[%s2 + $0x120] sm:$0xff]
  %v1241 = vld [vmem:[%s2 + $0x128] sm:$0xff]
  %v1242 = vld [vmem:[%s2 + $0x130] sm:$0xff]
  %v1243 = vld [vmem:[%s2 + $0x138] sm:$0xff]
  %v1244 = vld [vmem:[%s2 + $0x140] sm:$0xff]
  %v1245 = vld [vmem:[%s2 + $0x148] sm:$0xff]
  %v1246 = vld [vmem:[%s2 + $0x150] sm:$0xff]
  %v1247 = vld [vmem:[%s2 + $0x158] sm:$0xff]
  %v1248 = vld [vmem:[%s2 + $0x160] sm:$0xff]
  %v1249 = vld [vmem:[%s2 + $0x168] sm:$0xff]
  %v1250 = vld [vmem:[%s2 + $0x170] sm:$0xff]
  %v1251 = vld [vmem:[%s2 + $0x178] sm:$0xff]
  %v1252 = vld [vmem:[%s2 + $0x180] sm:$0xff]
  %v1254 = vsel %vm89, %v1204, 0
  %v1257 = vsel %vm89, %v1205, 0
  %v1260 = vsel %vm89, %v1206, 0
  %v1263 = vsel %vm89, %v1207, 0
  %v1266 = vsel %vm89, %v1208, 0
  %v1269 = vsel %vm89, %v1209, 0
  %v1272 = vsel %vm89, %v1210, 0
  %v1275 = vsel %vm89, %v1211, 0
  %v1278 = vsel %vm89, %v1212, 0
  %v1281 = vsel %vm89, %v1213, 0
  %v1284 = vsel %vm89, %v1214, 0
  %v1287 = vsel %vm89, %v1215, 0
  %v1290 = vsel %vm89, %v1216, 0
  %v1293 = vsel %vm89, %v1217, 0
  %v1296 = vsel %vm89, %v1218, 0
  %v1299 = vsel %vm89, %v1219, 0
  %v1302 = vsel %vm89, %v1220, 0
  %v1305 = vsel %vm89, %v1221, 0
  %v1308 = vsel %vm89, %v1222, 0
  %v1311 = vsel %vm89, %v1223, 0
  %v1314 = vsel %vm89, %v1224, 0
  %v1317 = vsel %vm89, %v1225, 0
  %v1320 = vsel %vm89, %v1226, 0
  %v1323 = vsel %vm89, %v1227, 0
  %v1326 = vsel %vm89, %v1228, 0
  %v1329 = vsel %vm89, %v1229, 0
  %v1332 = vsel %vm89, %v1230, 0
  %v1335 = vsel %vm89, %v1231, 0
  %v1338 = vsel %vm89, %v1232, 0
  %v1341 = vsel %vm89, %v1233, 0
  %v1344 = vsel %vm89, %v1234, 0
  %v1347 = vsel %vm89, %v1235, 0
  %v1350 = vsel %vm89, %v1236, 0
  %v1353 = vsel %vm89, %v1237, 0
  %v1356 = vsel %vm89, %v1238, 0
  %v1359 = vsel %vm89, %v1239, 0
  %v1362 = vsel %vm89, %v1240, 0
  %v1365 = vsel %vm89, %v1241, 0
  %v1368 = vsel %vm89, %v1242, 0
  %v1371 = vsel %vm89, %v1243, 0
  %v1374 = vsel %vm89, %v1244, 0
  %v1377 = vsel %vm89, %v1245, 0
  %v1380 = vsel %vm89, %v1246, 0
  %v1383 = vsel %vm89, %v1247, 0
  %v1386 = vsel %vm89, %v1248, 0
  %v1389 = vsel %vm89, %v1249, 0
  %v1392 = vsel %vm89, %v1250, 0
  %v1395 = vsel %vm89, %v1251, 0
  %v1398 = vsel %vm89, %v1252, 0
  %1400 = vmatprep.subr.mxu0 0.0
  %1401 = vmatpush1.msra.mxu0 0.0
  %1402 = vmatprep.subr.mxu0 0.0
  %1403 = vmatpush1.msra.mxu0 0.0
  %1404 = vmatprep.subr.mxu0 0.0
  %1405 = vmatpush1.msra.mxu0 0.0
  %1406 = vmatprep.subr.mxu0 0.0
  %1407 = vmatpush1.msra.mxu0 0.0
  %1408 = vmatprep.subr.mxu0 0.0
  %1409 = vmatpush1.msra.mxu0 0.0
  %1410 = vmatprep.subr.mxu0 0.0
  %1411 = vmatpush1.msra.mxu0 0.0
  %1412 = vmatprep.subr.mxu0 0.0
  %1413 = vmatpush1.msra.mxu0 %v239
  %1414 = vmatprep.subr.mxu0 0.0
  %1415 = vmatpush1.msra.mxu0 %v31
  %1416 = vmatprep.subr.mxu0 0.0
  %1417 = vmatpush1.msra.mxu0 %v30
  %1418 = vmatprep.subr.mxu0 0.0
  %1419 = vmatpush1.msra.mxu0 %v29
  %1420 = vmatprep.subr.mxu0 0.0
  %1421 = vmatpush1.msra.mxu0 %v28
  %1422 = vmatprep.subr.mxu0 0.0
  %1423 = vmatpush1.msra.mxu0 %v27
  %1424 = vmatprep.subr.mxu0 0.0
  %1425 = vmatpush1.msra.mxu0 %v26
  %1426 = vmatprep.subr.mxu0 0.0
  %1427 = vmatpush1.msra.mxu0 %v25
  %1428 = vmatprep.subr.mxu0 0.0
  %1429 = vmatpush1.msra.mxu0 %v24
  %1430 = vmatprep.subr.mxu0 0.0
  %1431 = vmatpush1.msra.mxu0 %v23
  %1432 = vmatprep.subr.mxu0 0.0
  %1433 = vmatpush2.msra.mxu0 0.0
  %1434 = vmatprep.subr.mxu0 0.0
  %1435 = vmatpush2.msra.mxu0 0.0
  %1436 = vmatprep.subr.mxu0 0.0
  %1437 = vmatpush2.msra.mxu0 0.0
  %1438 = vmatprep.subr.mxu0 0.0
  %1439 = vmatpush2.msra.mxu0 0.0
  %1440 = vmatprep.subr.mxu0 0.0
  %1441 = vmatpush2.msra.mxu0 0.0
  %1442 = vmatprep.subr.mxu0 0.0
  %1443 = vmatpush2.msra.mxu0 0.0
  %1444 = vmatprep.subr.mxu0 0.0
  %1445 = vmatpush2.msra.mxu0 0.0
  %1446 = vmatprep.subr.mxu0 0.0
  %1447 = vmatpush2.msra.mxu0 0.0
  %1448 = vmatprep.subr.mxu0 0.0
  %1449 = vmatpush2.msra.mxu0 0.0
  %1450 = vmatprep.subr.mxu0 0.0
  %1451 = vmatpush2.msra.mxu0 0.0
  %1452 = vmatprep.subr.mxu0 0.0
  %1453 = vmatpush2.msra.mxu0 0.0
  %1454 = vmatprep.subr.mxu0 0.0
  %1455 = vmatpush2.msra.mxu0 0.0
  %1456 = vmatprep.subr.mxu0 0.0
  %1457 = vmatpush2.msra.mxu0 0.0
  %1458 = vmatprep.subr.mxu0 0.0
  %1459 = vmatpush2.msra.mxu0 0.0
  %1460 = vmatprep.subr.mxu0 0.0
  %1461 = vmatpush2.msra.mxu0 0.0
  %1462 = vmatprep.subr.mxu0 0.0
  %1463 = vmatpush2.msra.mxu0 0.0
  %1464 = vmatprep.mubr.f32.mxu0 0.0
  %1465 = vmatmul.mubr.f32.gmra.mxu0 %v1254
  %v1466 = vpop.f32.mrf.mxu0
  %v1467 = vadd.f32 %v87, %v1466
  %v1468 = vpop.f32.mrf.mxu0
  %1469 = vmatprep.mubr.f32.mxu0 0.0
  %1470 = vmatmul.mubr.f32.gmra.mxu0 %v1257
  %v1471 = vpop.f32.mrf.mxu0
  %v1472 = vadd.f32 %v87, %v1471
  %v1473 = vpop.f32.mrf.mxu0
  %1474 = vmatprep.mubr.f32.mxu0 0.0
  %1475 = vmatmul.mubr.f32.gmra.mxu0 %v1260
  %v1476 = vpop.f32.mrf.mxu0
  %v1477 = vadd.f32 %v87, %v1476
  %v1478 = vpop.f32.mrf.mxu0
  %1479 = vmatprep.mubr.f32.mxu0 0.0
  %1480 = vmatmul.mubr.f32.gmra.mxu0 %v1263
  %v1481 = vpop.f32.mrf.mxu0
  %v1482 = vadd.f32 %v87, %v1481
  %v1483 = vpop.f32.mrf.mxu0
  %1484 = vmatprep.mubr.f32.mxu0 0.0
  %1485 = vmatmul.mubr.f32.gmra.mxu0 %v1266
  %v1486 = vpop.f32.mrf.mxu0
  %v1487 = vadd.f32 %v87, %v1486
  %v1488 = vpop.f32.mrf.mxu0
  %1489 = vmatprep.mubr.f32.mxu0 0.0
  %1490 = vmatmul.mubr.f32.gmra.mxu0 %v1269
  %v1491 = vpop.f32.mrf.mxu0
  %v1492 = vadd.f32 %v87, %v1491
  %v1493 = vpop.f32.mrf.mxu0
  %1494 = vmatprep.mubr.f32.mxu0 0.0
  %1495 = vmatmul.mubr.f32.gmra.mxu0 %v1272
  %v1496 = vpop.f32.mrf.mxu0
  %v1497 = vadd.f32 %v87, %v1496
  %v1498 = vpop.f32.mrf.mxu0
  %1499 = vmatprep.mubr.f32.mxu0 0.0
  %1500 = vmatmul.mubr.f32.gmra.mxu0 %v1275
  %v1501 = vpop.f32.mrf.mxu0
  %v1502 = vadd.f32 %v87, %v1501
  %v1503 = vpop.f32.mrf.mxu0
  %1504 = vmatprep.mubr.f32.mxu0 0.0
  %1505 = vmatmul.mubr.f32.gmra.mxu0 %v1278
  %v1506 = vpop.f32.mrf.mxu0
  %v1507 = vadd.f32 %v87, %v1506
  %v1508 = vpop.f32.mrf.mxu0
  %1509 = vmatprep.mubr.f32.mxu0 0.0
  %1510 = vmatmul.mubr.f32.gmra.mxu0 %v1281
  %v1511 = vpop.f32.mrf.mxu0
  %v1512 = vadd.f32 %v87, %v1511
  %v1513 = vpop.f32.mrf.mxu0
  %1514 = vmatprep.mubr.f32.mxu0 0.0
  %1515 = vmatmul.mubr.f32.gmra.mxu0 %v1284
  %v1516 = vpop.f32.mrf.mxu0
  %v1517 = vadd.f32 %v87, %v1516
  %v1518 = vpop.f32.mrf.mxu0
  %1519 = vmatprep.mubr.f32.mxu0 0.0
  %1520 = vmatmul.mubr.f32.gmra.mxu0 %v1287
  %v1521 = vpop.f32.mrf.mxu0
  %v1522 = vadd.f32 %v87, %v1521
  %v1523 = vpop.f32.mrf.mxu0
  %1524 = vmatprep.mubr.f32.mxu0 0.0
  %1525 = vmatmul.mubr.f32.gmra.mxu0 %v1290
  %v1526 = vpop.f32.mrf.mxu0
  %v1527 = vadd.f32 %v87, %v1526
  %v1528 = vpop.f32.mrf.mxu0
  %1529 = vmatprep.mubr.f32.mxu0 0.0
  %1530 = vmatmul.mubr.f32.gmra.mxu0 %v1293
  %v1531 = vpop.f32.mrf.mxu0
  %v1532 = vadd.f32 %v87, %v1531
  %v1533 = vpop.f32.mrf.mxu0
  %1534 = vmatprep.mubr.f32.mxu0 0.0
  %1535 = vmatmul.mubr.f32.gmra.mxu0 %v1296
  %v1536 = vpop.f32.mrf.mxu0
  %v1537 = vadd.f32 %v87, %v1536
  %v1538 = vpop.f32.mrf.mxu0
  %1539 = vmatprep.mubr.f32.mxu0 0.0
  %1540 = vmatmul.mubr.f32.gmra.mxu0 %v1299
  %v1541 = vpop.f32.mrf.mxu0
  %v1542 = vadd.f32 %v87, %v1541
  %v1543 = vpop.f32.mrf.mxu0
  %1544 = vmatprep.mubr.f32.mxu0 0.0
  %1545 = vmatmul.mubr.f32.gmra.mxu0 %v1302
  %v1546 = vpop.f32.mrf.mxu0
  %v1547 = vadd.f32 %v87, %v1546
  %v1548 = vpop.f32.mrf.mxu0
  %1549 = vmatprep.mubr.f32.mxu0 0.0
  %1550 = vmatmul.mubr.f32.gmra.mxu0 %v1305
  %v1551 = vpop.f32.mrf.mxu0
  %v1552 = vadd.f32 %v87, %v1551
  %v1553 = vpop.f32.mrf.mxu0
  %1554 = vmatprep.mubr.f32.mxu0 0.0
  %1555 = vmatmul.mubr.f32.gmra.mxu0 %v1308
  %v1556 = vpop.f32.mrf.mxu0
  %v1557 = vadd.f32 %v87, %v1556
  %v1558 = vpop.f32.mrf.mxu0
  %1559 = vmatprep.mubr.f32.mxu0 0.0
  %1560 = vmatmul.mubr.f32.gmra.mxu0 %v1311
  %v1561 = vpop.f32.mrf.mxu0
  %v1562 = vadd.f32 %v87, %v1561
  %v1563 = vpop.f32.mrf.mxu0
  %1564 = vmatprep.mubr.f32.mxu0 0.0
  %1565 = vmatmul.mubr.f32.gmra.mxu0 %v1314
  %v1566 = vpop.f32.mrf.mxu0
  %v1567 = vadd.f32 %v87, %v1566
  %v1568 = vpop.f32.mrf.mxu0
  %1569 = vmatprep.mubr.f32.mxu0 0.0
  %1570 = vmatmul.mubr.f32.gmra.mxu0 %v1317
  %v1571 = vpop.f32.mrf.mxu0
  %v1572 = vadd.f32 %v87, %v1571
  %v1573 = vpop.f32.mrf.mxu0
  %1574 = vmatprep.mubr.f32.mxu0 0.0
  %1575 = vmatmul.mubr.f32.gmra.mxu0 %v1320
  %v1576 = vpop.f32.mrf.mxu0
  %v1577 = vadd.f32 %v87, %v1576
  %v1578 = vpop.f32.mrf.mxu0
  %1579 = vmatprep.mubr.f32.mxu0 0.0
  %1580 = vmatmul.mubr.f32.gmra.mxu0 %v1323
  %v1581 = vpop.f32.mrf.mxu0
  %v1582 = vadd.f32 %v87, %v1581
  %v1583 = vpop.f32.mrf.mxu0
  %1584 = vmatprep.mubr.f32.mxu0 0.0
  %1585 = vmatmul.mubr.f32.gmra.mxu0 %v1326
  %v1586 = vpop.f32.mrf.mxu0
  %v1587 = vadd.f32 %v87, %v1586
  %v1588 = vpop.f32.mrf.mxu0
  %1589 = vmatprep.mubr.f32.mxu0 0.0
  %1590 = vmatmul.mubr.f32.gmra.mxu0 %v1329
  %v1591 = vpop.f32.mrf.mxu0
  %v1592 = vadd.f32 %v87, %v1591
  %v1593 = vpop.f32.mrf.mxu0
  %1594 = vmatprep.mubr.f32.mxu0 0.0
  %1595 = vmatmul.mubr.f32.gmra.mxu0 %v1332
  %v1596 = vpop.f32.mrf.mxu0
  %v1597 = vadd.f32 %v87, %v1596
  %v1598 = vpop.f32.mrf.mxu0
  %1599 = vmatprep.mubr.f32.mxu0 0.0
  %1600 = vmatmul.mubr.f32.gmra.mxu0 %v1335
  %v1601 = vpop.f32.mrf.mxu0
  %v1602 = vadd.f32 %v87, %v1601
  %v1603 = vpop.f32.mrf.mxu0
  %1604 = vmatprep.mubr.f32.mxu0 0.0
  %1605 = vmatmul.mubr.f32.gmra.mxu0 %v1338
  %v1606 = vpop.f32.mrf.mxu0
  %v1607 = vadd.f32 %v87, %v1606
  %v1608 = vpop.f32.mrf.mxu0
  %1609 = vmatprep.mubr.f32.mxu0 0.0
  %1610 = vmatmul.mubr.f32.gmra.mxu0 %v1341
  %v1611 = vpop.f32.mrf.mxu0
  %v1612 = vadd.f32 %v87, %v1611
  %v1613 = vpop.f32.mrf.mxu0
  %1614 = vmatprep.mubr.f32.mxu0 0.0
  %1615 = vmatmul.mubr.f32.gmra.mxu0 %v1344
  %v1616 = vpop.f32.mrf.mxu0
  %v1617 = vadd.f32 %v87, %v1616
  %v1618 = vpop.f32.mrf.mxu0
  %1619 = vmatprep.mubr.f32.mxu0 0.0
  %1620 = vmatmul.mubr.f32.gmra.mxu0 %v1347
  %v1621 = vpop.f32.mrf.mxu0
  %v1622 = vadd.f32 %v87, %v1621
  %v1623 = vpop.f32.mrf.mxu0
  %1624 = vmatprep.mubr.f32.mxu0 0.0
  %1625 = vmatmul.mubr.f32.gmra.mxu0 %v1350
  %v1626 = vpop.f32.mrf.mxu0
  %v1627 = vadd.f32 %v87, %v1626
  %v1628 = vpop.f32.mrf.mxu0
  %1629 = vmatprep.mubr.f32.mxu0 0.0
  %1630 = vmatmul.mubr.f32.gmra.mxu0 %v1353
  %v1631 = vpop.f32.mrf.mxu0
  %v1632 = vadd.f32 %v87, %v1631
  %v1633 = vpop.f32.mrf.mxu0
  %1634 = vmatprep.mubr.f32.mxu0 0.0
  %1635 = vmatmul.mubr.f32.gmra.mxu0 %v1356
  %v1636 = vpop.f32.mrf.mxu0
  %v1637 = vadd.f32 %v87, %v1636
  %v1638 = vpop.f32.mrf.mxu0
  %1639 = vmatprep.mubr.f32.mxu0 0.0
  %1640 = vmatmul.mubr.f32.gmra.mxu0 %v1359
  %v1641 = vpop.f32.mrf.mxu0
  %v1642 = vadd.f32 %v87, %v1641
  %v1643 = vpop.f32.mrf.mxu0
  %1644 = vmatprep.mubr.f32.mxu0 0.0
  %1645 = vmatmul.mubr.f32.gmra.mxu0 %v1362
  %v1646 = vpop.f32.mrf.mxu0
  %v1647 = vadd.f32 %v87, %v1646
  %v1648 = vpop.f32.mrf.mxu0
  %1649 = vmatprep.mubr.f32.mxu0 0.0
  %1650 = vmatmul.mubr.f32.gmra.mxu0 %v1365
  %v1651 = vpop.f32.mrf.mxu0
  %v1652 = vadd.f32 %v87, %v1651
  %v1653 = vpop.f32.mrf.mxu0
  %1654 = vmatprep.mubr.f32.mxu0 0.0
  %1655 = vmatmul.mubr.f32.gmra.mxu0 %v1368
  %v1656 = vpop.f32.mrf.mxu0
  %v1657 = vadd.f32 %v87, %v1656
  %v1658 = vpop.f32.mrf.mxu0
  %1659 = vmatprep.mubr.f32.mxu0 0.0
  %1660 = vmatmul.mubr.f32.gmra.mxu0 %v1371
  %v1661 = vpop.f32.mrf.mxu0
  %v1662 = vadd.f32 %v87, %v1661
  %v1663 = vpop.f32.mrf.mxu0
  %1664 = vmatprep.mubr.f32.mxu0 0.0
  %1665 = vmatmul.mubr.f32.gmra.mxu0 %v1374
  %v1666 = vpop.f32.mrf.mxu0
  %v1667 = vadd.f32 %v87, %v1666
  %v1668 = vpop.f32.mrf.mxu0
  %1669 = vmatprep.mubr.f32.mxu0 0.0
  %1670 = vmatmul.mubr.f32.gmra.mxu0 %v1377
  %v1671 = vpop.f32.mrf.mxu0
  %v1672 = vadd.f32 %v87, %v1671
  %v1673 = vpop.f32.mrf.mxu0
  %1674 = vmatprep.mubr.f32.mxu0 0.0
  %1675 = vmatmul.mubr.f32.gmra.mxu0 %v1380
  %v1676 = vpop.f32.mrf.mxu0
  %v1677 = vadd.f32 %v87, %v1676
  %v1678 = vpop.f32.mrf.mxu0
  %1679 = vmatprep.mubr.f32.mxu0 0.0
  %1680 = vmatmul.mubr.f32.gmra.mxu0 %v1383
  %v1681 = vpop.f32.mrf.mxu0
  %v1682 = vadd.f32 %v87, %v1681
  %v1683 = vpop.f32.mrf.mxu0
  %1684 = vmatprep.mubr.f32.mxu0 0.0
  %1685 = vmatmul.mubr.f32.gmra.mxu0 %v1386
  %v1686 = vpop.f32.mrf.mxu0
  %v1687 = vadd.f32 %v87, %v1686
  %v1688 = vpop.f32.mrf.mxu0
  %1689 = vmatprep.mubr.f32.mxu0 0.0
  %1690 = vmatmul.mubr.f32.gmra.mxu0 %v1389
  %v1691 = vpop.f32.mrf.mxu0
  %v1692 = vadd.f32 %v87, %v1691
  %v1693 = vpop.f32.mrf.mxu0
  %1694 = vmatprep.mubr.f32.mxu0 0.0
  %1695 = vmatmul.mubr.f32.gmra.mxu0 %v1392
  %v1696 = vpop.f32.mrf.mxu0
  %v1697 = vadd.f32 %v87, %v1696
  %v1698 = vpop.f32.mrf.mxu0
  %1699 = vmatprep.mubr.f32.mxu0 0.0
  %1700 = vmatmul.mubr.f32.gmra.mxu0 %v1395
  %v1701 = vpop.f32.mrf.mxu0
  %v1702 = vadd.f32 %v87, %v1701
  %v1703 = vpop.f32.mrf.mxu0
  %1704 = vmatprep.mubr.f32.mxu0 0.0
  %1705 = vmatmul.mubr.f32.gmra.mxu0 %v1398
  %v1706 = vpop.f32.mrf.mxu0
  %v1707 = vadd.f32 %v87, %v1706
  %v1708 = vpop.f32.mrf.mxu0
  %1709 = vdwg.mxu0
  %v1710 = vmax.f32 %v1467, 0.0
  %v1711 = vmax.f32 %v1472, 0.0
  %v1712 = vmax.f32 %v1477, 0.0
  %v1713 = vmax.f32 %v1482, 0.0
  %v1714 = vmax.f32 %v1487, 0.0
  %v1715 = vmax.f32 %v1492, 0.0
  %v1716 = vmax.f32 %v1497, 0.0
  %v1717 = vmax.f32 %v1502, 0.0
  %v1718 = vmax.f32 %v1507, 0.0
  %v1719 = vmax.f32 %v1512, 0.0
  %v1720 = vmax.f32 %v1517, 0.0
  %v1721 = vmax.f32 %v1522, 0.0
  %v1722 = vmax.f32 %v1527, 0.0
  %v1723 = vmax.f32 %v1532, 0.0
  %v1724 = vmax.f32 %v1537, 0.0
  %v1725 = vmax.f32 %v1542, 0.0
  %v1726 = vmax.f32 %v1547, 0.0
  %v1727 = vmax.f32 %v1552, 0.0
  %v1728 = vmax.f32 %v1557, 0.0
  %v1729 = vmax.f32 %v1562, 0.0
  %v1730 = vmax.f32 %v1567, 0.0
  %v1731 = vmax.f32 %v1572, 0.0
  %v1732 = vmax.f32 %v1577, 0.0
  %v1733 = vmax.f32 %v1582, 0.0
  %v1734 = vmax.f32 %v1587, 0.0
  %v1735 = vmax.f32 %v1592, 0.0
  %v1736 = vmax.f32 %v1597, 0.0
  %v1737 = vmax.f32 %v1602, 0.0
  %v1738 = vmax.f32 %v1607, 0.0
  %v1739 = vmax.f32 %v1612, 0.0
  %v1740 = vmax.f32 %v1617, 0.0
  %v1741 = vmax.f32 %v1622, 0.0
  %v1742 = vmax.f32 %v1627, 0.0
  %v1743 = vmax.f32 %v1632, 0.0
  %v1744 = vmax.f32 %v1637, 0.0
  %v1745 = vmax.f32 %v1642, 0.0
  %v1746 = vmax.f32 %v1647, 0.0
  %v1747 = vmax.f32 %v1652, 0.0
  %v1748 = vmax.f32 %v1657, 0.0
  %v1749 = vmax.f32 %v1662, 0.0
  %v1750 = vmax.f32 %v1667, 0.0
  %v1751 = vmax.f32 %v1672, 0.0
  %v1752 = vmax.f32 %v1677, 0.0
  %v1753 = vmax.f32 %v1682, 0.0
  %v1754 = vmax.f32 %v1687, 0.0
  %v1755 = vmax.f32 %v1692, 0.0
  %v1756 = vmax.f32 %v1697, 0.0
  %v1757 = vmax.f32 %v1702, 0.0
  %v1758 = vmax.f32 %v1707, 0.0
  %v1759 = vld [vmem:[%s3] sm:$0xff]
  %v1760 = vld [vmem:[%s3 + $0x8] sm:$0xff]
  %v1761 = vld [vmem:[%s3 + $0x10] sm:$0xff]
  %v1762 = vld [vmem:[%s3 + $0x18] sm:$0xff]
  %v1763 = vld [vmem:[%s3 + $0x20] sm:$0xff]
  %v1764 = vld [vmem:[%s3 + $0x28] sm:$0xff]
  %v1765 = vld [vmem:[%s3 + $0x30] sm:$0xff]
  %v1766 = vld [vmem:[%s3 + $0x38] sm:$0xff]
  %v1767 = vld [vmem:[%s3 + $0x40] sm:$0xff]
  %v1768 = vld [vmem:[%s3 + $0x48] sm:$0xff]
  %v1769 = vld [vmem:[%s3 + $0x50] sm:$0xff]
  %v1770 = vld [vmem:[%s3 + $0x58] sm:$0xff]
  %v1771 = vld [vmem:[%s3 + $0x60] sm:$0xff]
  %v1772 = vld [vmem:[%s3 + $0x68] sm:$0xff]
  %v1773 = vld [vmem:[%s3 + $0x70] sm:$0xff]
  %v1774 = vld [vmem:[%s3 + $0x78] sm:$0xff]
  %v1775 = vld [vmem:[%s3 + $0x80] sm:$0xff]
  %v1776 = vld [vmem:[%s3 + $0x88] sm:$0xff]
  %v1777 = vld [vmem:[%s3 + $0x90] sm:$0xff]
  %v1778 = vld [vmem:[%s3 + $0x98] sm:$0xff]
  %v1779 = vld [vmem:[%s3 + $0xa0] sm:$0xff]
  %v1780 = vld [vmem:[%s3 + $0xa8] sm:$0xff]
  %v1781 = vld [vmem:[%s3 + $0xb0] sm:$0xff]
  %v1782 = vld [vmem:[%s3 + $0xb8] sm:$0xff]
  %v1783 = vld [vmem:[%s3 + $0xc0] sm:$0xff]
  %v1784 = vld [vmem:[%s3 + $0xc8] sm:$0xff]
  %v1785 = vld [vmem:[%s3 + $0xd0] sm:$0xff]
  %v1786 = vld [vmem:[%s3 + $0xd8] sm:$0xff]
  %v1787 = vld [vmem:[%s3 + $0xe0] sm:$0xff]
  %v1788 = vld [vmem:[%s3 + $0xe8] sm:$0xff]
  %v1789 = vld [vmem:[%s3 + $0xf0] sm:$0xff]
  %v1790 = vld [vmem:[%s3 + $0xf8] sm:$0xff]
  %v1791 = vld [vmem:[%s3 + $0x100] sm:$0xff]
  %v1792 = vld [vmem:[%s3 + $0x108] sm:$0xff]
  %v1793 = vld [vmem:[%s3 + $0x110] sm:$0xff]
  %v1794 = vld [vmem:[%s3 + $0x118] sm:$0xff]
  %v1795 = vld [vmem:[%s3 + $0x120] sm:$0xff]
  %v1796 = vld [vmem:[%s3 + $0x128] sm:$0xff]
  %v1797 = vld [vmem:[%s3 + $0x130] sm:$0xff]
  %v1798 = vld [vmem:[%s3 + $0x138] sm:$0xff]
  %v1799 = vld [vmem:[%s3 + $0x140] sm:$0xff]
  %v1800 = vld [vmem:[%s3 + $0x148] sm:$0xff]
  %v1801 = vld [vmem:[%s3 + $0x150] sm:$0xff]
  %v1802 = vld [vmem:[%s3 + $0x158] sm:$0xff]
  %v1803 = vld [vmem:[%s3 + $0x160] sm:$0xff]
  %v1804 = vld [vmem:[%s3 + $0x168] sm:$0xff]
  %v1805 = vld [vmem:[%s3 + $0x170] sm:$0xff]
  %v1806 = vld [vmem:[%s3 + $0x178] sm:$0xff]
  %v1807 = vld [vmem:[%s3 + $0x180] sm:$0xff]
  %v1809 = vsel %vm89, %v1759, 0
  %v1812 = vsel %vm89, %v1760, 0
  %v1815 = vsel %vm89, %v1761, 0
  %v1818 = vsel %vm89, %v1762, 0
  %v1821 = vsel %vm89, %v1763, 0
  %v1824 = vsel %vm89, %v1764, 0
  %v1827 = vsel %vm89, %v1765, 0
  %v1830 = vsel %vm89, %v1766, 0
  %v1833 = vsel %vm89, %v1767, 0
  %v1836 = vsel %vm89, %v1768, 0
  %v1839 = vsel %vm89, %v1769, 0
  %v1842 = vsel %vm89, %v1770, 0
  %v1845 = vsel %vm89, %v1771, 0
  %v1848 = vsel %vm89, %v1772, 0
  %v1851 = vsel %vm89, %v1773, 0
  %v1854 = vsel %vm89, %v1774, 0
  %v1857 = vsel %vm89, %v1775, 0
  %v1860 = vsel %vm89, %v1776, 0
  %v1863 = vsel %vm89, %v1777, 0
  %v1866 = vsel %vm89, %v1778, 0
  %v1869 = vsel %vm89, %v1779, 0
  %v1872 = vsel %vm89, %v1780, 0
  %v1875 = vsel %vm89, %v1781, 0
  %v1878 = vsel %vm89, %v1782, 0
  %v1881 = vsel %vm89, %v1783, 0
  %v1884 = vsel %vm89, %v1784, 0
  %v1887 = vsel %vm89, %v1785, 0
  %v1890 = vsel %vm89, %v1786, 0
  %v1893 = vsel %vm89, %v1787, 0
  %v1896 = vsel %vm89, %v1788, 0
  %v1899 = vsel %vm89, %v1789, 0
  %v1902 = vsel %vm89, %v1790, 0
  %v1905 = vsel %vm89, %v1791, 0
  %v1908 = vsel %vm89, %v1792, 0
  %v1911 = vsel %vm89, %v1793, 0
  %v1914 = vsel %vm89, %v1794, 0
  %v1917 = vsel %vm89, %v1795, 0
  %v1920 = vsel %vm89, %v1796, 0
  %v1923 = vsel %vm89, %v1797, 0
  %v1926 = vsel %vm89, %v1798, 0
  %v1929 = vsel %vm89, %v1799, 0
  %v1932 = vsel %vm89, %v1800, 0
  %v1935 = vsel %vm89, %v1801, 0
  %v1938 = vsel %vm89, %v1802, 0
  %v1941 = vsel %vm89, %v1803, 0
  %v1944 = vsel %vm89, %v1804, 0
  %v1947 = vsel %vm89, %v1805, 0
  %v1950 = vsel %vm89, %v1806, 0
  %v1953 = vsel %vm89, %v1807, 0
  %1955 = vmatprep.subr.mxu0 0.0
  %1956 = vmatpush1.msra.mxu0 0.0
  %1957 = vmatprep.subr.mxu0 0.0
  %1958 = vmatpush1.msra.mxu0 0.0
  %1959 = vmatprep.subr.mxu0 0.0
  %1960 = vmatpush1.msra.mxu0 0.0
  %1961 = vmatprep.subr.mxu0 0.0
  %1962 = vmatpush1.msra.mxu0 0.0
  %1963 = vmatprep.subr.mxu0 0.0
  %1964 = vmatpush1.msra.mxu0 0.0
  %1965 = vmatprep.subr.mxu0 0.0
  %1966 = vmatpush1.msra.mxu0 0.0
  %1967 = vmatprep.subr.mxu0 0.0
  %1968 = vmatpush1.msra.mxu0 %v239
  %1969 = vmatprep.subr.mxu0 0.0
  %1970 = vmatpush1.msra.mxu0 %v31
  %1971 = vmatprep.subr.mxu0 0.0
  %1972 = vmatpush1.msra.mxu0 %v30
  %1973 = vmatprep.subr.mxu0 0.0
  %1974 = vmatpush1.msra.mxu0 %v29
  %1975 = vmatprep.subr.mxu0 0.0
  %1976 = vmatpush1.msra.mxu0 %v28
  %1977 = vmatprep.subr.mxu0 0.0
  %1978 = vmatpush1.msra.mxu0 %v27
  %1979 = vmatprep.subr.mxu0 0.0
  %1980 = vmatpush1.msra.mxu0 %v26
  %1981 = vmatprep.subr.mxu0 0.0
  %1982 = vmatpush1.msra.mxu0 %v25
  %1983 = vmatprep.subr.mxu0 0.0
  %1984 = vmatpush1.msra.mxu0 %v24
  %1985 = vmatprep.subr.mxu0 0.0
  %1986 = vmatpush1.msra.mxu0 %v23
  %1987 = vmatprep.subr.mxu0 0.0
  %1988 = vmatpush2.msra.mxu0 0.0
  %1989 = vmatprep.subr.mxu0 0.0
  %1990 = vmatpush2.msra.mxu0 0.0
  %1991 = vmatprep.subr.mxu0 0.0
  %1992 = vmatpush2.msra.mxu0 0.0
  %1993 = vmatprep.subr.mxu0 0.0
  %1994 = vmatpush2.msra.mxu0 0.0
  %1995 = vmatprep.subr.mxu0 0.0
  %1996 = vmatpush2.msra.mxu0 0.0
  %1997 = vmatprep.subr.mxu0 0.0
  %1998 = vmatpush2.msra.mxu0 0.0
  %1999 = vmatprep.subr.mxu0 0.0
  %2000 = vmatpush2.msra.mxu0 0.0
  %2001 = vmatprep.subr.mxu0 0.0
  %2002 = vmatpush2.msra.mxu0 0.0
  %2003 = vmatprep.subr.mxu0 0.0
  %2004 = vmatpush2.msra.mxu0 0.0
  %2005 = vmatprep.subr.mxu0 0.0
  %2006 = vmatpush2.msra.mxu0 0.0
  %2007 = vmatprep.subr.mxu0 0.0
  %2008 = vmatpush2.msra.mxu0 0.0
  %2009 = vmatprep.subr.mxu0 0.0
  %2010 = vmatpush2.msra.mxu0 0.0
  %2011 = vmatprep.subr.mxu0 0.0
  %2012 = vmatpush2.msra.mxu0 0.0
  %2013 = vmatprep.subr.mxu0 0.0
  %2014 = vmatpush2.msra.mxu0 0.0
  %2015 = vmatprep.subr.mxu0 0.0
  %2016 = vmatpush2.msra.mxu0 0.0
  %2017 = vmatprep.subr.mxu0 0.0
  %2018 = vmatpush2.msra.mxu0 0.0
  %2019 = vmatprep.mubr.f32.mxu0 0.0
  %2020 = vmatmul.mubr.f32.gmra.mxu0 %v1809
  %v2021 = vpop.f32.mrf.mxu0
  %v2022 = vadd.f32 %v87, %v2021
  %v2023 = vpop.f32.mrf.mxu0
  %2024 = vmatprep.mubr.f32.mxu0 0.0
  %2025 = vmatmul.mubr.f32.gmra.mxu0 %v1812
  %v2026 = vpop.f32.mrf.mxu0
  %v2027 = vadd.f32 %v87, %v2026
  %v2028 = vpop.f32.mrf.mxu0
  %2029 = vmatprep.mubr.f32.mxu0 0.0
  %2030 = vmatmul.mubr.f32.gmra.mxu0 %v1815
  %v2031 = vpop.f32.mrf.mxu0
  %v2032 = vadd.f32 %v87, %v2031
  %v2033 = vpop.f32.mrf.mxu0
  %2034 = vmatprep.mubr.f32.mxu0 0.0
  %2035 = vmatmul.mubr.f32.gmra.mxu0 %v1818
  %v2036 = vpop.f32.mrf.mxu0
  %v2037 = vadd.f32 %v87, %v2036
  %v2038 = vpop.f32.mrf.mxu0
  %2039 = vmatprep.mubr.f32.mxu0 0.0
  %2040 = vmatmul.mubr.f32.gmra.mxu0 %v1821
  %v2041 = vpop.f32.mrf.mxu0
  %v2042 = vadd.f32 %v87, %v2041
  %v2043 = vpop.f32.mrf.mxu0
  %2044 = vmatprep.mubr.f32.mxu0 0.0
  %2045 = vmatmul.mubr.f32.gmra.mxu0 %v1824
  %v2046 = vpop.f32.mrf.mxu0
  %v2047 = vadd.f32 %v87, %v2046
  %v2048 = vpop.f32.mrf.mxu0
  %2049 = vmatprep.mubr.f32.mxu0 0.0
  %2050 = vmatmul.mubr.f32.gmra.mxu0 %v1827
  %v2051 = vpop.f32.mrf.mxu0
  %v2052 = vadd.f32 %v87, %v2051
  %v2053 = vpop.f32.mrf.mxu0
  %2054 = vmatprep.mubr.f32.mxu0 0.0
  %2055 = vmatmul.mubr.f32.gmra.mxu0 %v1830
  %v2056 = vpop.f32.mrf.mxu0
  %v2057 = vadd.f32 %v87, %v2056
  %v2058 = vpop.f32.mrf.mxu0
  %2059 = vmatprep.mubr.f32.mxu0 0.0
  %2060 = vmatmul.mubr.f32.gmra.mxu0 %v1833
  %v2061 = vpop.f32.mrf.mxu0
  %v2062 = vadd.f32 %v87, %v2061
  %v2063 = vpop.f32.mrf.mxu0
  %2064 = vmatprep.mubr.f32.mxu0 0.0
  %2065 = vmatmul.mubr.f32.gmra.mxu0 %v1836
  %v2066 = vpop.f32.mrf.mxu0
  %v2067 = vadd.f32 %v87, %v2066
  %v2068 = vpop.f32.mrf.mxu0
  %2069 = vmatprep.mubr.f32.mxu0 0.0
  %2070 = vmatmul.mubr.f32.gmra.mxu0 %v1839
  %v2071 = vpop.f32.mrf.mxu0
  %v2072 = vadd.f32 %v87, %v2071
  %v2073 = vpop.f32.mrf.mxu0
  %2074 = vmatprep.mubr.f32.mxu0 0.0
  %2075 = vmatmul.mubr.f32.gmra.mxu0 %v1842
  %v2076 = vpop.f32.mrf.mxu0
  %v2077 = vadd.f32 %v87, %v2076
  %v2078 = vpop.f32.mrf.mxu0
  %2079 = vmatprep.mubr.f32.mxu0 0.0
  %2080 = vmatmul.mubr.f32.gmra.mxu0 %v1845
  %v2081 = vpop.f32.mrf.mxu0
  %v2082 = vadd.f32 %v87, %v2081
  %v2083 = vpop.f32.mrf.mxu0
  %2084 = vmatprep.mubr.f32.mxu0 0.0
  %2085 = vmatmul.mubr.f32.gmra.mxu0 %v1848
  %v2086 = vpop.f32.mrf.mxu0
  %v2087 = vadd.f32 %v87, %v2086
  %v2088 = vpop.f32.mrf.mxu0
  %2089 = vmatprep.mubr.f32.mxu0 0.0
  %2090 = vmatmul.mubr.f32.gmra.mxu0 %v1851
  %v2091 = vpop.f32.mrf.mxu0
  %v2092 = vadd.f32 %v87, %v2091
  %v2093 = vpop.f32.mrf.mxu0
  %2094 = vmatprep.mubr.f32.mxu0 0.0
  %2095 = vmatmul.mubr.f32.gmra.mxu0 %v1854
  %v2096 = vpop.f32.mrf.mxu0
  %v2097 = vadd.f32 %v87, %v2096
  %v2098 = vpop.f32.mrf.mxu0
  %2099 = vmatprep.mubr.f32.mxu0 0.0
  %2100 = vmatmul.mubr.f32.gmra.mxu0 %v1857
  %v2101 = vpop.f32.mrf.mxu0
  %v2102 = vadd.f32 %v87, %v2101
  %v2103 = vpop.f32.mrf.mxu0
  %2104 = vmatprep.mubr.f32.mxu0 0.0
  %2105 = vmatmul.mubr.f32.gmra.mxu0 %v1860
  %v2106 = vpop.f32.mrf.mxu0
  %v2107 = vadd.f32 %v87, %v2106
  %v2108 = vpop.f32.mrf.mxu0
  %2109 = vmatprep.mubr.f32.mxu0 0.0
  %2110 = vmatmul.mubr.f32.gmra.mxu0 %v1863
  %v2111 = vpop.f32.mrf.mxu0
  %v2112 = vadd.f32 %v87, %v2111
  %v2113 = vpop.f32.mrf.mxu0
  %2114 = vmatprep.mubr.f32.mxu0 0.0
  %2115 = vmatmul.mubr.f32.gmra.mxu0 %v1866
  %v2116 = vpop.f32.mrf.mxu0
  %v2117 = vadd.f32 %v87, %v2116
  %v2118 = vpop.f32.mrf.mxu0
  %2119 = vmatprep.mubr.f32.mxu0 0.0
  %2120 = vmatmul.mubr.f32.gmra.mxu0 %v1869
  %v2121 = vpop.f32.mrf.mxu0
  %v2122 = vadd.f32 %v87, %v2121
  %v2123 = vpop.f32.mrf.mxu0
  %2124 = vmatprep.mubr.f32.mxu0 0.0
  %2125 = vmatmul.mubr.f32.gmra.mxu0 %v1872
  %v2126 = vpop.f32.mrf.mxu0
  %v2127 = vadd.f32 %v87, %v2126
  %v2128 = vpop.f32.mrf.mxu0
  %2129 = vmatprep.mubr.f32.mxu0 0.0
  %2130 = vmatmul.mubr.f32.gmra.mxu0 %v1875
  %v2131 = vpop.f32.mrf.mxu0
  %v2132 = vadd.f32 %v87, %v2131
  %v2133 = vpop.f32.mrf.mxu0
  %2134 = vmatprep.mubr.f32.mxu0 0.0
  %2135 = vmatmul.mubr.f32.gmra.mxu0 %v1878
  %v2136 = vpop.f32.mrf.mxu0
  %v2137 = vadd.f32 %v87, %v2136
  %v2138 = vpop.f32.mrf.mxu0
  %2139 = vmatprep.mubr.f32.mxu0 0.0
  %2140 = vmatmul.mubr.f32.gmra.mxu0 %v1881
  %v2141 = vpop.f32.mrf.mxu0
  %v2142 = vadd.f32 %v87, %v2141
  %v2143 = vpop.f32.mrf.mxu0
  %2144 = vmatprep.mubr.f32.mxu0 0.0
  %2145 = vmatmul.mubr.f32.gmra.mxu0 %v1884
  %v2146 = vpop.f32.mrf.mxu0
  %v2147 = vadd.f32 %v87, %v2146
  %v2148 = vpop.f32.mrf.mxu0
  %2149 = vmatprep.mubr.f32.mxu0 0.0
  %2150 = vmatmul.mubr.f32.gmra.mxu0 %v1887
  %v2151 = vpop.f32.mrf.mxu0
  %v2152 = vadd.f32 %v87, %v2151
  %v2153 = vpop.f32.mrf.mxu0
  %2154 = vmatprep.mubr.f32.mxu0 0.0
  %2155 = vmatmul.mubr.f32.gmra.mxu0 %v1890
  %v2156 = vpop.f32.mrf.mxu0
  %v2157 = vadd.f32 %v87, %v2156
  %v2158 = vpop.f32.mrf.mxu0
  %2159 = vmatprep.mubr.f32.mxu0 0.0
  %2160 = vmatmul.mubr.f32.gmra.mxu0 %v1893
  %v2161 = vpop.f32.mrf.mxu0
  %v2162 = vadd.f32 %v87, %v2161
  %v2163 = vpop.f32.mrf.mxu0
  %2164 = vmatprep.mubr.f32.mxu0 0.0
  %2165 = vmatmul.mubr.f32.gmra.mxu0 %v1896
  %v2166 = vpop.f32.mrf.mxu0
  %v2167 = vadd.f32 %v87, %v2166
  %v2168 = vpop.f32.mrf.mxu0
  %2169 = vmatprep.mubr.f32.mxu0 0.0
  %2170 = vmatmul.mubr.f32.gmra.mxu0 %v1899
  %v2171 = vpop.f32.mrf.mxu0
  %v2172 = vadd.f32 %v87, %v2171
  %v2173 = vpop.f32.mrf.mxu0
  %2174 = vmatprep.mubr.f32.mxu0 0.0
  %2175 = vmatmul.mubr.f32.gmra.mxu0 %v1902
  %v2176 = vpop.f32.mrf.mxu0
  %v2177 = vadd.f32 %v87, %v2176
  %v2178 = vpop.f32.mrf.mxu0
  %2179 = vmatprep.mubr.f32.mxu0 0.0
  %2180 = vmatmul.mubr.f32.gmra.mxu0 %v1905
  %v2181 = vpop.f32.mrf.mxu0
  %v2182 = vadd.f32 %v87, %v2181
  %v2183 = vpop.f32.mrf.mxu0
  %2184 = vmatprep.mubr.f32.mxu0 0.0
  %2185 = vmatmul.mubr.f32.gmra.mxu0 %v1908
  %v2186 = vpop.f32.mrf.mxu0
  %v2187 = vadd.f32 %v87, %v2186
  %v2188 = vpop.f32.mrf.mxu0
  %2189 = vmatprep.mubr.f32.mxu0 0.0
  %2190 = vmatmul.mubr.f32.gmra.mxu0 %v1911
  %v2191 = vpop.f32.mrf.mxu0
  %v2192 = vadd.f32 %v87, %v2191
  %v2193 = vpop.f32.mrf.mxu0
  %2194 = vmatprep.mubr.f32.mxu0 0.0
  %2195 = vmatmul.mubr.f32.gmra.mxu0 %v1914
  %v2196 = vpop.f32.mrf.mxu0
  %v2197 = vadd.f32 %v87, %v2196
  %v2198 = vpop.f32.mrf.mxu0
  %2199 = vmatprep.mubr.f32.mxu0 0.0
  %2200 = vmatmul.mubr.f32.gmra.mxu0 %v1917
  %v2201 = vpop.f32.mrf.mxu0
  %v2202 = vadd.f32 %v87, %v2201
  %v2203 = vpop.f32.mrf.mxu0
  %2204 = vmatprep.mubr.f32.mxu0 0.0
  %2205 = vmatmul.mubr.f32.gmra.mxu0 %v1920
  %v2206 = vpop.f32.mrf.mxu0
  %v2207 = vadd.f32 %v87, %v2206
  %v2208 = vpop.f32.mrf.mxu0
  %2209 = vmatprep.mubr.f32.mxu0 0.0
  %2210 = vmatmul.mubr.f32.gmra.mxu0 %v1923
  %v2211 = vpop.f32.mrf.mxu0
  %v2212 = vadd.f32 %v87, %v2211
  %v2213 = vpop.f32.mrf.mxu0
  %2214 = vmatprep.mubr.f32.mxu0 0.0
  %2215 = vmatmul.mubr.f32.gmra.mxu0 %v1926
  %v2216 = vpop.f32.mrf.mxu0
  %v2217 = vadd.f32 %v87, %v2216
  %v2218 = vpop.f32.mrf.mxu0
  %2219 = vmatprep.mubr.f32.mxu0 0.0
  %2220 = vmatmul.mubr.f32.gmra.mxu0 %v1929
  %v2221 = vpop.f32.mrf.mxu0
  %v2222 = vadd.f32 %v87, %v2221
  %v2223 = vpop.f32.mrf.mxu0
  %2224 = vmatprep.mubr.f32.mxu0 0.0
  %2225 = vmatmul.mubr.f32.gmra.mxu0 %v1932
  %v2226 = vpop.f32.mrf.mxu0
  %v2227 = vadd.f32 %v87, %v2226
  %v2228 = vpop.f32.mrf.mxu0
  %2229 = vmatprep.mubr.f32.mxu0 0.0
  %2230 = vmatmul.mubr.f32.gmra.mxu0 %v1935
  %v2231 = vpop.f32.mrf.mxu0
  %v2232 = vadd.f32 %v87, %v2231
  %v2233 = vpop.f32.mrf.mxu0
  %2234 = vmatprep.mubr.f32.mxu0 0.0
  %2235 = vmatmul.mubr.f32.gmra.mxu0 %v1938
  %v2236 = vpop.f32.mrf.mxu0
  %v2237 = vadd.f32 %v87, %v2236
  %v2238 = vpop.f32.mrf.mxu0
  %2239 = vmatprep.mubr.f32.mxu0 0.0
  %2240 = vmatmul.mubr.f32.gmra.mxu0 %v1941
  %v2241 = vpop.f32.mrf.mxu0
  %v2242 = vadd.f32 %v87, %v2241
  %v2243 = vpop.f32.mrf.mxu0
  %2244 = vmatprep.mubr.f32.mxu0 0.0
  %2245 = vmatmul.mubr.f32.gmra.mxu0 %v1944
  %v2246 = vpop.f32.mrf.mxu0
  %v2247 = vadd.f32 %v87, %v2246
  %v2248 = vpop.f32.mrf.mxu0
  %2249 = vmatprep.mubr.f32.mxu0 0.0
  %2250 = vmatmul.mubr.f32.gmra.mxu0 %v1947
  %v2251 = vpop.f32.mrf.mxu0
  %v2252 = vadd.f32 %v87, %v2251
  %v2253 = vpop.f32.mrf.mxu0
  %2254 = vmatprep.mubr.f32.mxu0 0.0
  %2255 = vmatmul.mubr.f32.gmra.mxu0 %v1950
  %v2256 = vpop.f32.mrf.mxu0
  %v2257 = vadd.f32 %v87, %v2256
  %v2258 = vpop.f32.mrf.mxu0
  %2259 = vmatprep.mubr.f32.mxu0 0.0
  %2260 = vmatmul.mubr.f32.gmra.mxu0 %v1953
  %v2261 = vpop.f32.mrf.mxu0
  %v2262 = vadd.f32 %v87, %v2261
  %v2263 = vpop.f32.mrf.mxu0
  %2264 = vdwg.mxu0
  %v2265 = vmax.f32 %v2022, 0.0
  %v2266 = vmax.f32 %v2027, 0.0
  %v2267 = vmax.f32 %v2032, 0.0
  %v2268 = vmax.f32 %v2037, 0.0
  %v2269 = vmax.f32 %v2042, 0.0
  %v2270 = vmax.f32 %v2047, 0.0
  %v2271 = vmax.f32 %v2052, 0.0
  %v2272 = vmax.f32 %v2057, 0.0
  %v2273 = vmax.f32 %v2062, 0.0
  %v2274 = vmax.f32 %v2067, 0.0
  %v2275 = vmax.f32 %v2072, 0.0
  %v2276 = vmax.f32 %v2077, 0.0
  %v2277 = vmax.f32 %v2082, 0.0
  %v2278 = vmax.f32 %v2087, 0.0
  %v2279 = vmax.f32 %v2092, 0.0
  %v2280 = vmax.f32 %v2097, 0.0
  %v2281 = vmax.f32 %v2102, 0.0
  %v2282 = vmax.f32 %v2107, 0.0
  %v2283 = vmax.f32 %v2112, 0.0
  %v2284 = vmax.f32 %v2117, 0.0
  %v2285 = vmax.f32 %v2122, 0.0
  %v2286 = vmax.f32 %v2127, 0.0
  %v2287 = vmax.f32 %v2132, 0.0
  %v2288 = vmax.f32 %v2137, 0.0
  %v2289 = vmax.f32 %v2142, 0.0
  %v2290 = vmax.f32 %v2147, 0.0
  %v2291 = vmax.f32 %v2152, 0.0
  %v2292 = vmax.f32 %v2157, 0.0
  %v2293 = vmax.f32 %v2162, 0.0
  %v2294 = vmax.f32 %v2167, 0.0
  %v2295 = vmax.f32 %v2172, 0.0
  %v2296 = vmax.f32 %v2177, 0.0
  %v2297 = vmax.f32 %v2182, 0.0
  %v2298 = vmax.f32 %v2187, 0.0
  %v2299 = vmax.f32 %v2192, 0.0
  %v2300 = vmax.f32 %v2197, 0.0
  %v2301 = vmax.f32 %v2202, 0.0
  %v2302 = vmax.f32 %v2207, 0.0
  %v2303 = vmax.f32 %v2212, 0.0
  %v2304 = vmax.f32 %v2217, 0.0
  %v2305 = vmax.f32 %v2222, 0.0
  %v2306 = vmax.f32 %v2227, 0.0
  %v2307 = vmax.f32 %v2232, 0.0
  %v2308 = vmax.f32 %v2237, 0.0
  %v2309 = vmax.f32 %v2242, 0.0
  %v2310 = vmax.f32 %v2247, 0.0
  %v2311 = vmax.f32 %v2252, 0.0
  %v2312 = vmax.f32 %v2257, 0.0
  %v2313 = vmax.f32 %v2262, 0.0
  %v2314 = vmax.f32 %v1710, %v2265
  %v2315 = vmax.f32 %v1711, %v2266
  %v2316 = vmax.f32 %v1712, %v2267
  %v2317 = vmax.f32 %v1713, %v2268
  %v2318 = vmax.f32 %v1714, %v2269
  %v2319 = vmax.f32 %v1715, %v2270
  %v2320 = vmax.f32 %v1716, %v2271
  %v2321 = vmax.f32 %v1717, %v2272
  %v2322 = vmax.f32 %v1718, %v2273
  %v2323 = vmax.f32 %v1719, %v2274
  %v2324 = vmax.f32 %v1720, %v2275
  %v2325 = vmax.f32 %v1721, %v2276
  %v2326 = vmax.f32 %v1722, %v2277
  %v2327 = vmax.f32 %v1723, %v2278
  %v2328 = vmax.f32 %v1724, %v2279
  %v2329 = vmax.f32 %v1725, %v2280
  %v2330 = vmax.f32 %v1726, %v2281
  %v2331 = vmax.f32 %v1727, %v2282
  %v2332 = vmax.f32 %v1728, %v2283
  %v2333 = vmax.f32 %v1729, %v2284
  %v2334 = vmax.f32 %v1730, %v2285
  %v2335 = vmax.f32 %v1731, %v2286
  %v2336 = vmax.f32 %v1732, %v2287
  %v2337 = vmax.f32 %v1733, %v2288
  %v2338 = vmax.f32 %v1734, %v2289
  %v2339 = vmax.f32 %v1735, %v2290
  %v2340 = vmax.f32 %v1736, %v2291
  %v2341 = vmax.f32 %v1737, %v2292
  %v2342 = vmax.f32 %v1738, %v2293
  %v2343 = vmax.f32 %v1739, %v2294
  %v2344 = vmax.f32 %v1740, %v2295
  %v2345 = vmax.f32 %v1741, %v2296
  %v2346 = vmax.f32 %v1742, %v2297
  %v2347 = vmax.f32 %v1743, %v2298
  %v2348 = vmax.f32 %v1744, %v2299
  %v2349 = vmax.f32 %v1745, %v2300
  %v2350 = vmax.f32 %v1746, %v2301
  %v2351 = vmax.f32 %v1747, %v2302
  %v2352 = vmax.f32 %v1748, %v2303
  %v2353 = vmax.f32 %v1749, %v2304
  %v2354 = vmax.f32 %v1750, %v2305
  %v2355 = vmax.f32 %v1751, %v2306
  %v2356 = vmax.f32 %v1752, %v2307
  %v2357 = vmax.f32 %v1753, %v2308
  %v2358 = vmax.f32 %v1754, %v2309
  %v2359 = vmax.f32 %v1755, %v2310
  %v2360 = vmax.f32 %v1756, %v2311
  %v2361 = vmax.f32 %v1757, %v2312
  %v2362 = vmax.f32 %v1758, %v2313
  %v2363 = vmax.f32 %v1155, %v2314
  %v2364 = vmax.f32 %v1156, %v2315
  %v2365 = vmax.f32 %v1157, %v2316
  %v2366 = vmax.f32 %v1158, %v2317
  %v2367 = vmax.f32 %v1159, %v2318
  %v2368 = vmax.f32 %v1160, %v2319
  %v2369 = vmax.f32 %v1161, %v2320
  %v2370 = vmax.f32 %v1162, %v2321
  %v2371 = vmax.f32 %v1163, %v2322
  %v2372 = vmax.f32 %v1164, %v2323
  %v2373 = vmax.f32 %v1165, %v2324
  %v2374 = vmax.f32 %v1166, %v2325
  %v2375 = vmax.f32 %v1167, %v2326
  %v2376 = vmax.f32 %v1168, %v2327
  %v2377 = vmax.f32 %v1169, %v2328
  %v2378 = vmax.f32 %v1170, %v2329
  %v2379 = vmax.f32 %v1171, %v2330
  %v2380 = vmax.f32 %v1172, %v2331
  %v2381 = vmax.f32 %v1173, %v2332
  %v2382 = vmax.f32 %v1174, %v2333
  %v2383 = vmax.f32 %v1175, %v2334
  %v2384 = vmax.f32 %v1176, %v2335
  %v2385 = vmax.f32 %v1177, %v2336
  %v2386 = vmax.f32 %v1178, %v2337
  %v2387 = vmax.f32 %v1179, %v2338
  %v2388 = vmax.f32 %v1180, %v2339
  %v2389 = vmax.f32 %v1181, %v2340
  %v2390 = vmax.f32 %v1182, %v2341
  %v2391 = vmax.f32 %v1183, %v2342
  %v2392 = vmax.f32 %v1184, %v2343
  %v2393 = vmax.f32 %v1185, %v2344
  %v2394 = vmax.f32 %v1186, %v2345
  %v2395 = vmax.f32 %v1187, %v2346
  %v2396 = vmax.f32 %v1188, %v2347
  %v2397 = vmax.f32 %v1189, %v2348
  %v2398 = vmax.f32 %v1190, %v2349
  %v2399 = vmax.f32 %v1191, %v2350
  %v2400 = vmax.f32 %v1192, %v2351
  %v2401 = vmax.f32 %v1193, %v2352
  %v2402 = vmax.f32 %v1194, %v2353
  %v2403 = vmax.f32 %v1195, %v2354
  %v2404 = vmax.f32 %v1196, %v2355
  %v2405 = vmax.f32 %v1197, %v2356
  %v2406 = vmax.f32 %v1198, %v2357
  %v2407 = vmax.f32 %v1199, %v2358
  %v2408 = vmax.f32 %v1200, %v2359
  %v2409 = vmax.f32 %v1201, %v2360
  %v2410 = vmax.f32 %v1202, %v2361
  %v2411 = vmax.f32 %v1203, %v2362
  %2412 = vst [vmem:[%s6] sm:$0xff] %v2363
  %2413 = vst [vmem:[%s6 + $0x8] sm:$0xff] %v2364
  %2414 = vst [vmem:[%s6 + $0x10] sm:$0xff] %v2365
  %2415 = vst [vmem:[%s6 + $0x18] sm:$0xff] %v2366
  %2416 = vst [vmem:[%s6 + $0x20] sm:$0xff] %v2367
  %2417 = vst [vmem:[%s6 + $0x28] sm:$0xff] %v2368
  %2418 = vst [vmem:[%s6 + $0x30] sm:$0xff] %v2369
  %2419 = vst [vmem:[%s6 + $0x38] sm:$0xff] %v2370
  %2420 = vst [vmem:[%s6 + $0x40] sm:$0xff] %v2371
  %2421 = vst [vmem:[%s6 + $0x48] sm:$0xff] %v2372
  %2422 = vst [vmem:[%s6 + $0x50] sm:$0xff] %v2373
  %2423 = vst [vmem:[%s6 + $0x58] sm:$0xff] %v2374
  %2424 = vst [vmem:[%s6 + $0x60] sm:$0xff] %v2375
  %2425 = vst [vmem:[%s6 + $0x68] sm:$0xff] %v2376
  %2426 = vst [vmem:[%s6 + $0x70] sm:$0xff] %v2377
  %2427 = vst [vmem:[%s6 + $0x78] sm:$0xff] %v2378
  %2428 = vst [vmem:[%s6 + $0x80] sm:$0xff] %v2379
  %2429 = vst [vmem:[%s6 + $0x88] sm:$0xff] %v2380
  %2430 = vst [vmem:[%s6 + $0x90] sm:$0xff] %v2381
  %2431 = vst [vmem:[%s6 + $0x98] sm:$0xff] %v2382
  %2432 = vst [vmem:[%s6 + $0xa0] sm:$0xff] %v2383
  %2433 = vst [vmem:[%s6 + $0xa8] sm:$0xff] %v2384
  %2434 = vst [vmem:[%s6 + $0xb0] sm:$0xff] %v2385
  %2435 = vst [vmem:[%s6 + $0xb8] sm:$0xff] %v2386
  %2436 = vst [vmem:[%s6 + $0xc0] sm:$0xff] %v2387
  %2437 = vst [vmem:[%s6 + $0xc8] sm:$0xff] %v2388
  %2438 = vst [vmem:[%s6 + $0xd0] sm:$0xff] %v2389
  %2439 = vst [vmem:[%s6 + $0xd8] sm:$0xff] %v2390
  %2440 = vst [vmem:[%s6 + $0xe0] sm:$0xff] %v2391
  %2441 = vst [vmem:[%s6 + $0xe8] sm:$0xff] %v2392
  %2442 = vst [vmem:[%s6 + $0xf0] sm:$0xff] %v2393
  %2443 = vst [vmem:[%s6 + $0xf8] sm:$0xff] %v2394
  %2444 = vst [vmem:[%s6 + $0x100] sm:$0xff] %v2395
  %2445 = vst [vmem:[%s6 + $0x108] sm:$0xff] %v2396
  %2446 = vst [vmem:[%s6 + $0x110] sm:$0xff] %v2397
  %2447 = vst [vmem:[%s6 + $0x118] sm:$0xff] %v2398
  %2448 = vst [vmem:[%s6 + $0x120] sm:$0xff] %v2399
  %2449 = vst [vmem:[%s6 + $0x128] sm:$0xff] %v2400
  %2450 = vst [vmem:[%s6 + $0x130] sm:$0xff] %v2401
  %2451 = vst [vmem:[%s6 + $0x138] sm:$0xff] %v2402
  %2452 = vst [vmem:[%s6 + $0x140] sm:$0xff] %v2403
  %2453 = vst [vmem:[%s6 + $0x148] sm:$0xff] %v2404
  %2454 = vst [vmem:[%s6 + $0x150] sm:$0xff] %v2405
  %2455 = vst [vmem:[%s6 + $0x158] sm:$0xff] %v2406
  %2456 = vst [vmem:[%s6 + $0x160] sm:$0xff] %v2407
  %2457 = vst [vmem:[%s6 + $0x168] sm:$0xff] %v2408
  %2458 = vst [vmem:[%s6 + $0x170] sm:$0xff] %v2409
  %2459 = vst [vmem:[%s6 + $0x178] sm:$0xff] %v2410
  %2460 = vst [vmem:[%s6 + $0x180] sm:$0xff] %v2411
  // Predicated region
  $region26: #{net_forward.3} parent=0 // pred_check
    _
  $region27: #{net_forward.3} parent=0 // pred_check_branch
    %2462 = sbr.rel (0) target = $region29
  $region28: #{net_forward.3} parent=0 // pred_region
    _
  $region29: #{net_forward.3} parent=0 // pred_fallthru
    _
  // Predicated region
  $region30: #{net_forward.3} parent=0 // pred_check
    _
  $region31: #{net_forward.3} parent=0 // pred_check_branch
    %2464 = sbr.rel (0) target = $region33
  $region32: #{net_forward.3} parent=0 // pred_region
    _
  $region33: #{net_forward.3} parent=0 // pred_fallthru
    _

// kernel: net_forward.4
$region0: #{net_forward.4}
  #allocation0 [shape = 'u32[]', space=smem, size = 0x4, offset = 0x4, fixed_abs, tag = 'smem constant byte address 0x4 - core index']
  #allocation1 [shape = 'u32[144,128]{1,0:T(1,128)}', space=vmem, size = 0x12000, scoped, tag = 'internal scratch']
  %s0 = inlined_call_operand.vmem [shape: f32[50,150], index: 0, kind: input, shape index: {}]
  %s1 = inlined_call_operand.vmem [shape: f32[50,150], index: 1, kind: input, shape index: {}]
  %s2 = inlined_call_operand.vmem [shape: f32[50,150], index: 2, kind: input, shape index: {}]
  %s3 = inlined_call_operand.vmem [shape: f32[50,150], index: 3, kind: input, shape index: {}]
  %s4 = inlined_call_operand.vmem [shape: f32[150,128], index: 4, kind: input, shape index: {}]
  %s5 = inlined_call_operand.vmem [shape: f32[1,128], index: 5, kind: input, shape index: {}]
  %s6 = inlined_call_operand.vmem [shape: f32[50,128], index: 6, kind: output, shape index: {}]
  %s7 = sld [smem:[#allocation0]]
  $region34: #{net_forward.4} parent=0
    _
  %s9 = ssub.s32 1, %s7
  %s10 = scalar_select 0, %s9, %s7
  // Predicated region
  $region2: #{net_forward.4} parent=0 // pred_check
    _
  $region3: #{net_forward.4} parent=0 // pred_check_branch
    %12 = sbr.rel (0) target = $region5
  $region4: #{net_forward.4} parent=0 // pred_region
    _
  $region5: #{net_forward.4} parent=0 // pred_fallthru
    _
  // Predicated region
  $region6: #{net_forward.4} parent=0 // pred_check
    _
  $region7: #{net_forward.4} parent=0 // pred_check_branch
    %14 = sbr.rel (0) target = $region9
  $region8: #{net_forward.4} parent=0 // pred_region
    _
  $region9: #{net_forward.4} parent=0 // pred_fallthru
    _
  // Predicated region
  $region10: #{net_forward.4} parent=0 // pred_check
    _
  $region11: #{net_forward.4} parent=0 // pred_check_branch
    %16 = sbr.rel (0) target = $region13
  $region12: #{net_forward.4} parent=0 // pred_region
    _
  $region13: #{net_forward.4} parent=0 // pred_fallthru
    _
  // Predicated region
  $region14: #{net_forward.4} parent=0 // pred_check
    _
  $region15: #{net_forward.4} parent=0 // pred_check_branch
    %18 = sbr.rel (0) target = $region17
  $region16: #{net_forward.4} parent=0 // pred_region
    _
  $region17: #{net_forward.4} parent=0 // pred_fallthru
    _
  // Predicated region
  $region18: #{net_forward.4} parent=0 // pred_check
    _
  $region19: #{net_forward.4} parent=0 // pred_check_branch
    %20 = sbr.rel (0) target = $region21
  $region20: #{net_forward.4} parent=0 // pred_region
    _
  $region21: #{net_forward.4} parent=0 // pred_fallthru
    _
  // Predicated region
  $region22: #{net_forward.4} parent=0 // pred_check
    _
  $region23: #{net_forward.4} parent=0 // pred_check_branch
    %22 = sbr.rel (0) target = $region25
  $region24: #{net_forward.4} parent=0 // pred_region
    _
  $region25: #{net_forward.4} parent=0 // pred_fallthru
    _
  %v23 = vld [vmem:[%s4] sm:$0xff]
  %v24 = vld [vmem:[%s4 + $0x8] sm:$0xff]
  %v25 = vld [vmem:[%s4 + $0x10] sm:$0xff]
  %v26 = vld [vmem:[%s4 + $0x18] sm:$0xff]
  %v27 = vld [vmem:[%s4 + $0x20] sm:$0xff]
  %v28 = vld [vmem:[%s4 + $0x28] sm:$0xff]
  %v29 = vld [vmem:[%s4 + $0x30] sm:$0xff]
  %v30 = vld [vmem:[%s4 + $0x38] sm:$0xff]
  %v31 = vld [vmem:[%s4 + $0x40] sm:$0xff]
  %v32 = vld [vmem:[%s4 + $0x48] sm:$0xff]
  %v33 = vld [vmem:[%s4 + $0x50] sm:$0xff]
  %v34 = vld [vmem:[%s4 + $0x58] sm:$0xff]
  %v35 = vld [vmem:[%s4 + $0x60] sm:$0xff]
  %v36 = vld [vmem:[%s4 + $0x68] sm:$0xff]
  %v37 = vld [vmem:[%s4 + $0x70] sm:$0xff]
  %v38 = vld [vmem:[%s4 + $0x78] sm:$0xff]
  %v39 = vld [vmem:[%s4 + $0x80] sm:$0xff]
  %v40 = vld [vmem:[%s4 + $0x88] sm:$0xff]
  %v41 = vld [vmem:[%s4 + $0x90] sm:$0x3f]
  %v42 = vld [vmem:[%s5] sm:$0x1]
  %v43 = vld [vmem:[%s0] sm:$0xff]
  %v44 = vld [vmem:[%s0 + $0x8] sm:$0xff]
  %v45 = vld [vmem:[%s0 + $0x10] sm:$0xff]
  %v46 = vld [vmem:[%s0 + $0x18] sm:$0xff]
  %v47 = vld [vmem:[%s0 + $0x20] sm:$0xff]
  %v48 = vld [vmem:[%s0 + $0x28] sm:$0xff]
  %v49 = vld [vmem:[%s0 + $0x30] sm:$0xff]
  %v50 = vld [vmem:[%s0 + $0x38] sm:$0xff]
  %v51 = vld [vmem:[%s0 + $0x40] sm:$0xff]
  %v52 = vld [vmem:[%s0 + $0x48] sm:$0xff]
  %v53 = vld [vmem:[%s0 + $0x50] sm:$0xff]
  %v54 = vld [vmem:[%s0 + $0x58] sm:$0xff]
  %v55 = vld [vmem:[%s0 + $0x60] sm:$0x3]
  %v56 = vld [vmem:[%s0 + $0x68] sm:$0x3]
  %v58 = vlaneseq
  %v59 = vshrl.u32 %v58, 7
  %v60 = vsub.s32 0, %v59
  %v61 = vrot.slane %v42, %v60
  %vm63 = vcmask 179200
  %v65 = vsel %vm63, %v44, 0
  %v68 = vsel %vm63, %v46, 0
  %v71 = vsel %vm63, %v48, 0
  %v74 = vsel %vm63, %v50, 0
  %v77 = vsel %vm63, %v52, 0
  %v80 = vsel %vm63, %v54, 0
  %v83 = vsel %vm63, %v56, 0
  %vm85 = vcmask 1045504
  %v87 = vsel %vm85, %v41, 0
  %89 = vmatprep.subr.mxu0 0.0
  %90 = vmatpush1.msra.mxu0 %v38
  %91 = vmatprep.subr.mxu0 0.0
  %92 = vmatpush1.msra.mxu0 %v37
  %93 = vmatprep.subr.mxu0 0.0
  %94 = vmatpush1.msra.mxu0 %v36
  %95 = vmatprep.subr.mxu0 0.0
  %96 = vmatpush1.msra.mxu0 %v35
  %97 = vmatprep.subr.mxu0 0.0
  %98 = vmatpush1.msra.mxu0 %v34
  %99 = vmatprep.subr.mxu0 0.0
  %100 = vmatpush1.msra.mxu0 %v33
  %101 = vmatprep.subr.mxu0 0.0
  %102 = vmatpush1.msra.mxu0 %v32
  %103 = vmatprep.subr.mxu0 0.0
  %104 = vmatpush1.msra.mxu0 %v31
  %105 = vmatprep.subr.mxu0 0.0
  %106 = vmatpush1.msra.mxu0 %v30
  %107 = vmatprep.subr.mxu0 0.0
  %108 = vmatpush1.msra.mxu0 %v29
  %109 = vmatprep.subr.mxu0 0.0
  %110 = vmatpush1.msra.mxu0 %v28
  %111 = vmatprep.subr.mxu0 0.0
  %112 = vmatpush1.msra.mxu0 %v27
  %113 = vmatprep.subr.mxu0 0.0
  %114 = vmatpush1.msra.mxu0 %v26
  %115 = vmatprep.subr.mxu0 0.0
  %116 = vmatpush1.msra.mxu0 %v25
  %117 = vmatprep.subr.mxu0 0.0
  %118 = vmatpush1.msra.mxu0 %v24
  %119 = vmatprep.subr.mxu0 0.0
  %120 = vmatpush1.msra.mxu0 %v23
  %121 = vmatprep.subr.mxu0 0.0
  %122 = vmatpush2.msra.mxu0 0.0
  %123 = vmatprep.subr.mxu0 0.0
  %124 = vmatpush2.msra.mxu0 0.0
  %125 = vmatprep.subr.mxu0 0.0
  %126 = vmatpush2.msra.mxu0 0.0
  %127 = vmatprep.subr.mxu0 0.0
  %128 = vmatpush2.msra.mxu0 0.0
  %129 = vmatprep.subr.mxu0 0.0
  %130 = vmatpush2.msra.mxu0 0.0
  %131 = vmatprep.subr.mxu0 0.0
  %132 = vmatpush2.msra.mxu0 0.0
  %133 = vmatprep.subr.mxu0 0.0
  %134 = vmatpush2.msra.mxu0 0.0
  %135 = vmatprep.subr.mxu0 0.0
  %136 = vmatpush2.msra.mxu0 0.0
  %137 = vmatprep.subr.mxu0 0.0
  %138 = vmatpush2.msra.mxu0 0.0
  %139 = vmatprep.subr.mxu0 0.0
  %140 = vmatpush2.msra.mxu0 0.0
  %141 = vmatprep.subr.mxu0 0.0
  %142 = vmatpush2.msra.mxu0 0.0
  %143 = vmatprep.subr.mxu0 0.0
  %144 = vmatpush2.msra.mxu0 0.0
  %145 = vmatprep.subr.mxu0 0.0
  %146 = vmatpush2.msra.mxu0 0.0
  %147 = vmatprep.subr.mxu0 0.0
  %148 = vmatpush2.msra.mxu0 %v87
  %149 = vmatprep.subr.mxu0 0.0
  %150 = vmatpush2.msra.mxu0 %v40
  %151 = vmatprep.subr.mxu0 0.0
  %152 = vmatpush2.msra.mxu0 %v39
  %153 = vmatprep.mubr.f32.mxu0 %v65
  %154 = vmatmul.mubr.f32.gmra.mxu0 %v43
  %v155 = vpop.f32.mrf.mxu0
  %v156 = vadd.f32 %v61, %v155
  %v157 = vpop.f32.mrf.mxu0
  %158 = vmatprep.mubr.f32.mxu0 %v68
  %159 = vmatmul.mubr.f32.gmra.mxu0 %v45
  %v160 = vpop.f32.mrf.mxu0
  %v161 = vadd.f32 %v61, %v160
  %v162 = vpop.f32.mrf.mxu0
  %163 = vmatprep.mubr.f32.mxu0 %v71
  %164 = vmatmul.mubr.f32.gmra.mxu0 %v47
  %v165 = vpop.f32.mrf.mxu0
  %v166 = vadd.f32 %v61, %v165
  %v167 = vpop.f32.mrf.mxu0
  %168 = vmatprep.mubr.f32.mxu0 %v74
  %169 = vmatmul.mubr.f32.gmra.mxu0 %v49
  %v170 = vpop.f32.mrf.mxu0
  %v171 = vadd.f32 %v61, %v170
  %v172 = vpop.f32.mrf.mxu0
  %173 = vmatprep.mubr.f32.mxu0 %v77
  %174 = vmatmul.mubr.f32.gmra.mxu0 %v51
  %v175 = vpop.f32.mrf.mxu0
  %v176 = vadd.f32 %v61, %v175
  %v177 = vpop.f32.mrf.mxu0
  %178 = vmatprep.mubr.f32.mxu0 %v80
  %179 = vmatmul.mubr.f32.gmra.mxu0 %v53
  %v180 = vpop.f32.mrf.mxu0
  %v181 = vadd.f32 %v61, %v180
  %v182 = vpop.f32.mrf.mxu0
  %183 = vmatprep.mubr.f32.mxu0 %v83
  %184 = vmatmul.mubr.f32.gmra.mxu0 %v55
  %v185 = vpop.f32.mrf.mxu0
  %v186 = vadd.f32 %v61, %v185
  %v187 = vpop.f32.mrf.mxu0
  %188 = vdwg.mxu0
  %v189 = vmax.f32 %v156, 0.0
  %v190 = vmax.f32 %v161, 0.0
  %v191 = vmax.f32 %v166, 0.0
  %v192 = vmax.f32 %v171, 0.0
  %v193 = vmax.f32 %v176, 0.0
  %v194 = vmax.f32 %v181, 0.0
  %v195 = vmax.f32 %v186, 0.0
  %v196 = vld [vmem:[%s1] sm:$0xff]
  %v197 = vld [vmem:[%s1 + $0x8] sm:$0xff]
  %v198 = vld [vmem:[%s1 + $0x10] sm:$0xff]
  %v199 = vld [vmem:[%s1 + $0x18] sm:$0xff]
  %v200 = vld [vmem:[%s1 + $0x20] sm:$0xff]
  %v201 = vld [vmem:[%s1 + $0x28] sm:$0xff]
  %v202 = vld [vmem:[%s1 + $0x30] sm:$0xff]
  %v203 = vld [vmem:[%s1 + $0x38] sm:$0xff]
  %v204 = vld [vmem:[%s1 + $0x40] sm:$0xff]
  %v205 = vld [vmem:[%s1 + $0x48] sm:$0xff]
  %v206 = vld [vmem:[%s1 + $0x50] sm:$0xff]
  %v207 = vld [vmem:[%s1 + $0x58] sm:$0xff]
  %v208 = vld [vmem:[%s1 + $0x60] sm:$0x3]
  %v209 = vld [vmem:[%s1 + $0x68] sm:$0x3]
  %v211 = vsel %vm63, %v197, 0
  %v214 = vsel %vm63, %v199, 0
  %v217 = vsel %vm63, %v201, 0
  %v220 = vsel %vm63, %v203, 0
  %v223 = vsel %vm63, %v205, 0
  %v226 = vsel %vm63, %v207, 0
  %v229 = vsel %vm63, %v209, 0
  %231 = vmatprep.subr.mxu0 0.0
  %232 = vmatpush1.msra.mxu0 %v38
  %233 = vmatprep.subr.mxu0 0.0
  %234 = vmatpush1.msra.mxu0 %v37
  %235 = vmatprep.subr.mxu0 0.0
  %236 = vmatpush1.msra.mxu0 %v36
  %237 = vmatprep.subr.mxu0 0.0
  %238 = vmatpush1.msra.mxu0 %v35
  %239 = vmatprep.subr.mxu0 0.0
  %240 = vmatpush1.msra.mxu0 %v34
  %241 = vmatprep.subr.mxu0 0.0
  %242 = vmatpush1.msra.mxu0 %v33
  %243 = vmatprep.subr.mxu0 0.0
  %244 = vmatpush1.msra.mxu0 %v32
  %245 = vmatprep.subr.mxu0 0.0
  %246 = vmatpush1.msra.mxu0 %v31
  %247 = vmatprep.subr.mxu0 0.0
  %248 = vmatpush1.msra.mxu0 %v30
  %249 = vmatprep.subr.mxu0 0.0
  %250 = vmatpush1.msra.mxu0 %v29
  %251 = vmatprep.subr.mxu0 0.0
  %252 = vmatpush1.msra.mxu0 %v28
  %253 = vmatprep.subr.mxu0 0.0
  %254 = vmatpush1.msra.mxu0 %v27
  %255 = vmatprep.subr.mxu0 0.0
  %256 = vmatpush1.msra.mxu0 %v26
  %257 = vmatprep.subr.mxu0 0.0
  %258 = vmatpush1.msra.mxu0 %v25
  %259 = vmatprep.subr.mxu0 0.0
  %260 = vmatpush1.msra.mxu0 %v24
  %261 = vmatprep.subr.mxu0 0.0
  %262 = vmatpush1.msra.mxu0 %v23
  %263 = vmatprep.subr.mxu0 0.0
  %264 = vmatpush2.msra.mxu0 0.0
  %265 = vmatprep.subr.mxu0 0.0
  %266 = vmatpush2.msra.mxu0 0.0
  %267 = vmatprep.subr.mxu0 0.0
  %268 = vmatpush2.msra.mxu0 0.0
  %269 = vmatprep.subr.mxu0 0.0
  %270 = vmatpush2.msra.mxu0 0.0
  %271 = vmatprep.subr.mxu0 0.0
  %272 = vmatpush2.msra.mxu0 0.0
  %273 = vmatprep.subr.mxu0 0.0
  %274 = vmatpush2.msra.mxu0 0.0
  %275 = vmatprep.subr.mxu0 0.0
  %276 = vmatpush2.msra.mxu0 0.0
  %277 = vmatprep.subr.mxu0 0.0
  %278 = vmatpush2.msra.mxu0 0.0
  %279 = vmatprep.subr.mxu0 0.0
  %280 = vmatpush2.msra.mxu0 0.0
  %281 = vmatprep.subr.mxu0 0.0
  %282 = vmatpush2.msra.mxu0 0.0
  %283 = vmatprep.subr.mxu0 0.0
  %284 = vmatpush2.msra.mxu0 0.0
  %285 = vmatprep.subr.mxu0 0.0
  %286 = vmatpush2.msra.mxu0 0.0
  %287 = vmatprep.subr.mxu0 0.0
  %288 = vmatpush2.msra.mxu0 0.0
  %289 = vmatprep.subr.mxu0 0.0
  %290 = vmatpush2.msra.mxu0 %v87
  %291 = vmatprep.subr.mxu0 0.0
  %292 = vmatpush2.msra.mxu0 %v40
  %293 = vmatprep.subr.mxu0 0.0
  %294 = vmatpush2.msra.mxu0 %v39
  %295 = vmatprep.mubr.f32.mxu0 %v211
  %296 = vmatmul.mubr.f32.gmra.mxu0 %v196
  %v297 = vpop.f32.mrf.mxu0
  %v298 = vadd.f32 %v61, %v297
  %v299 = vpop.f32.mrf.mxu0
  %300 = vmatprep.mubr.f32.mxu0 %v214
  %301 = vmatmul.mubr.f32.gmra.mxu0 %v198
  %v302 = vpop.f32.mrf.mxu0
  %v303 = vadd.f32 %v61, %v302
  %v304 = vpop.f32.mrf.mxu0
  %305 = vmatprep.mubr.f32.mxu0 %v217
  %306 = vmatmul.mubr.f32.gmra.mxu0 %v200
  %v307 = vpop.f32.mrf.mxu0
  %v308 = vadd.f32 %v61, %v307
  %v309 = vpop.f32.mrf.mxu0
  %310 = vmatprep.mubr.f32.mxu0 %v220
  %311 = vmatmul.mubr.f32.gmra.mxu0 %v202
  %v312 = vpop.f32.mrf.mxu0
  %v313 = vadd.f32 %v61, %v312
  %v314 = vpop.f32.mrf.mxu0
  %315 = vmatprep.mubr.f32.mxu0 %v223
  %316 = vmatmul.mubr.f32.gmra.mxu0 %v204
  %v317 = vpop.f32.mrf.mxu0
  %v318 = vadd.f32 %v61, %v317
  %v319 = vpop.f32.mrf.mxu0
  %320 = vmatprep.mubr.f32.mxu0 %v226
  %321 = vmatmul.mubr.f32.gmra.mxu0 %v206
  %v322 = vpop.f32.mrf.mxu0
  %v323 = vadd.f32 %v61, %v322
  %v324 = vpop.f32.mrf.mxu0
  %325 = vmatprep.mubr.f32.mxu0 %v229
  %326 = vmatmul.mubr.f32.gmra.mxu0 %v208
  %v327 = vpop.f32.mrf.mxu0
  %v328 = vadd.f32 %v61, %v327
  %v329 = vpop.f32.mrf.mxu0
  %330 = vdwg.mxu0
  %v331 = vmax.f32 %v298, 0.0
  %v332 = vmax.f32 %v303, 0.0
  %v333 = vmax.f32 %v308, 0.0
  %v334 = vmax.f32 %v313, 0.0
  %v335 = vmax.f32 %v318, 0.0
  %v336 = vmax.f32 %v323, 0.0
  %v337 = vmax.f32 %v328, 0.0
  %v338 = vmax.f32 %v189, %v331
  %v339 = vmax.f32 %v190, %v332
  %v340 = vmax.f32 %v191, %v333
  %v341 = vmax.f32 %v192, %v334
  %v342 = vmax.f32 %v193, %v335
  %v343 = vmax.f32 %v194, %v336
  %v344 = vmax.f32 %v195, %v337
  %v345 = vld [vmem:[%s2] sm:$0xff]
  %v346 = vld [vmem:[%s2 + $0x8] sm:$0xff]
  %v347 = vld [vmem:[%s2 + $0x10] sm:$0xff]
  %v348 = vld [vmem:[%s2 + $0x18] sm:$0xff]
  %v349 = vld [vmem:[%s2 + $0x20] sm:$0xff]
  %v350 = vld [vmem:[%s2 + $0x28] sm:$0xff]
  %v351 = vld [vmem:[%s2 + $0x30] sm:$0xff]
  %v352 = vld [vmem:[%s2 + $0x38] sm:$0xff]
  %v353 = vld [vmem:[%s2 + $0x40] sm:$0xff]
  %v354 = vld [vmem:[%s2 + $0x48] sm:$0xff]
  %v355 = vld [vmem:[%s2 + $0x50] sm:$0xff]
  %v356 = vld [vmem:[%s2 + $0x58] sm:$0xff]
  %v357 = vld [vmem:[%s2 + $0x60] sm:$0x3]
  %v358 = vld [vmem:[%s2 + $0x68] sm:$0x3]
  %v360 = vsel %vm63, %v346, 0
  %v363 = vsel %vm63, %v348, 0
  %v366 = vsel %vm63, %v350, 0
  %v369 = vsel %vm63, %v352, 0
  %v372 = vsel %vm63, %v354, 0
  %v375 = vsel %vm63, %v356, 0
  %v378 = vsel %vm63, %v358, 0
  %380 = vmatprep.subr.mxu0 0.0
  %381 = vmatpush1.msra.mxu0 %v38
  %382 = vmatprep.subr.mxu0 0.0
  %383 = vmatpush1.msra.mxu0 %v37
  %384 = vmatprep.subr.mxu0 0.0
  %385 = vmatpush1.msra.mxu0 %v36
  %386 = vmatprep.subr.mxu0 0.0
  %387 = vmatpush1.msra.mxu0 %v35
  %388 = vmatprep.subr.mxu0 0.0
  %389 = vmatpush1.msra.mxu0 %v34
  %390 = vmatprep.subr.mxu0 0.0
  %391 = vmatpush1.msra.mxu0 %v33
  %392 = vmatprep.subr.mxu0 0.0
  %393 = vmatpush1.msra.mxu0 %v32
  %394 = vmatprep.subr.mxu0 0.0
  %395 = vmatpush1.msra.mxu0 %v31
  %396 = vmatprep.subr.mxu0 0.0
  %397 = vmatpush1.msra.mxu0 %v30
  %398 = vmatprep.subr.mxu0 0.0
  %399 = vmatpush1.msra.mxu0 %v29
  %400 = vmatprep.subr.mxu0 0.0
  %401 = vmatpush1.msra.mxu0 %v28
  %402 = vmatprep.subr.mxu0 0.0
  %403 = vmatpush1.msra.mxu0 %v27
  %404 = vmatprep.subr.mxu0 0.0
  %405 = vmatpush1.msra.mxu0 %v26
  %406 = vmatprep.subr.mxu0 0.0
  %407 = vmatpush1.msra.mxu0 %v25
  %408 = vmatprep.subr.mxu0 0.0
  %409 = vmatpush1.msra.mxu0 %v24
  %410 = vmatprep.subr.mxu0 0.0
  %411 = vmatpush1.msra.mxu0 %v23
  %412 = vmatprep.subr.mxu0 0.0
  %413 = vmatpush2.msra.mxu0 0.0
  %414 = vmatprep.subr.mxu0 0.0
  %415 = vmatpush2.msra.mxu0 0.0
  %416 = vmatprep.subr.mxu0 0.0
  %417 = vmatpush2.msra.mxu0 0.0
  %418 = vmatprep.subr.mxu0 0.0
  %419 = vmatpush2.msra.mxu0 0.0
  %420 = vmatprep.subr.mxu0 0.0
  %421 = vmatpush2.msra.mxu0 0.0
  %422 = vmatprep.subr.mxu0 0.0
  %423 = vmatpush2.msra.mxu0 0.0
  %424 = vmatprep.subr.mxu0 0.0
  %425 = vmatpush2.msra.mxu0 0.0
  %426 = vmatprep.subr.mxu0 0.0
  %427 = vmatpush2.msra.mxu0 0.0
  %428 = vmatprep.subr.mxu0 0.0
  %429 = vmatpush2.msra.mxu0 0.0
  %430 = vmatprep.subr.mxu0 0.0
  %431 = vmatpush2.msra.mxu0 0.0
  %432 = vmatprep.subr.mxu0 0.0
  %433 = vmatpush2.msra.mxu0 0.0
  %434 = vmatprep.subr.mxu0 0.0
  %435 = vmatpush2.msra.mxu0 0.0
  %436 = vmatprep.subr.mxu0 0.0
  %437 = vmatpush2.msra.mxu0 0.0
  %438 = vmatprep.subr.mxu0 0.0
  %439 = vmatpush2.msra.mxu0 %v87
  %440 = vmatprep.subr.mxu0 0.0
  %441 = vmatpush2.msra.mxu0 %v40
  %442 = vmatprep.subr.mxu0 0.0
  %443 = vmatpush2.msra.mxu0 %v39
  %444 = vmatprep.mubr.f32.mxu0 %v360
  %445 = vmatmul.mubr.f32.gmra.mxu0 %v345
  %v446 = vpop.f32.mrf.mxu0
  %v447 = vadd.f32 %v61, %v446
  %v448 = vpop.f32.mrf.mxu0
  %449 = vmatprep.mubr.f32.mxu0 %v363
  %450 = vmatmul.mubr.f32.gmra.mxu0 %v347
  %v451 = vpop.f32.mrf.mxu0
  %v452 = vadd.f32 %v61, %v451
  %v453 = vpop.f32.mrf.mxu0
  %454 = vmatprep.mubr.f32.mxu0 %v366
  %455 = vmatmul.mubr.f32.gmra.mxu0 %v349
  %v456 = vpop.f32.mrf.mxu0
  %v457 = vadd.f32 %v61, %v456
  %v458 = vpop.f32.mrf.mxu0
  %459 = vmatprep.mubr.f32.mxu0 %v369
  %460 = vmatmul.mubr.f32.gmra.mxu0 %v351
  %v461 = vpop.f32.mrf.mxu0
  %v462 = vadd.f32 %v61, %v461
  %v463 = vpop.f32.mrf.mxu0
  %464 = vmatprep.mubr.f32.mxu0 %v372
  %465 = vmatmul.mubr.f32.gmra.mxu0 %v353
  %v466 = vpop.f32.mrf.mxu0
  %v467 = vadd.f32 %v61, %v466
  %v468 = vpop.f32.mrf.mxu0
  %469 = vmatprep.mubr.f32.mxu0 %v375
  %470 = vmatmul.mubr.f32.gmra.mxu0 %v355
  %v471 = vpop.f32.mrf.mxu0
  %v472 = vadd.f32 %v61, %v471
  %v473 = vpop.f32.mrf.mxu0
  %474 = vmatprep.mubr.f32.mxu0 %v378
  %475 = vmatmul.mubr.f32.gmra.mxu0 %v357
  %v476 = vpop.f32.mrf.mxu0
  %v477 = vadd.f32 %v61, %v476
  %v478 = vpop.f32.mrf.mxu0
  %479 = vdwg.mxu0
  %v480 = vmax.f32 %v447, 0.0
  %v481 = vmax.f32 %v452, 0.0
  %v482 = vmax.f32 %v457, 0.0
  %v483 = vmax.f32 %v462, 0.0
  %v484 = vmax.f32 %v467, 0.0
  %v485 = vmax.f32 %v472, 0.0
  %v486 = vmax.f32 %v477, 0.0
  %v487 = vld [vmem:[%s3] sm:$0xff]
  %v488 = vld [vmem:[%s3 + $0x8] sm:$0xff]
  %v489 = vld [vmem:[%s3 + $0x10] sm:$0xff]
  %v490 = vld [vmem:[%s3 + $0x18] sm:$0xff]
  %v491 = vld [vmem:[%s3 + $0x20] sm:$0xff]
  %v492 = vld [vmem:[%s3 + $0x28] sm:$0xff]
  %v493 = vld [vmem:[%s3 + $0x30] sm:$0xff]
  %v494 = vld [vmem:[%s3 + $0x38] sm:$0xff]
  %v495 = vld [vmem:[%s3 + $0x40] sm:$0xff]
  %v496 = vld [vmem:[%s3 + $0x48] sm:$0xff]
  %v497 = vld [vmem:[%s3 + $0x50] sm:$0xff]
  %v498 = vld [vmem:[%s3 + $0x58] sm:$0xff]
  %v499 = vld [vmem:[%s3 + $0x60] sm:$0x3]
  %v500 = vld [vmem:[%s3 + $0x68] sm:$0x3]
  %v502 = vsel %vm63, %v488, 0
  %v505 = vsel %vm63, %v490, 0
  %v508 = vsel %vm63, %v492, 0
  %v511 = vsel %vm63, %v494, 0
  %v514 = vsel %vm63, %v496, 0
  %v517 = vsel %vm63, %v498, 0
  %v520 = vsel %vm63, %v500, 0
  %522 = vmatprep.subr.mxu0 0.0
  %523 = vmatpush1.msra.mxu0 %v38
  %524 = vmatprep.subr.mxu0 0.0
  %525 = vmatpush1.msra.mxu0 %v37
  %526 = vmatprep.subr.mxu0 0.0
  %527 = vmatpush1.msra.mxu0 %v36
  %528 = vmatprep.subr.mxu0 0.0
  %529 = vmatpush1.msra.mxu0 %v35
  %530 = vmatprep.subr.mxu0 0.0
  %531 = vmatpush1.msra.mxu0 %v34
  %532 = vmatprep.subr.mxu0 0.0
  %533 = vmatpush1.msra.mxu0 %v33
  %534 = vmatprep.subr.mxu0 0.0
  %535 = vmatpush1.msra.mxu0 %v32
  %536 = vmatprep.subr.mxu0 0.0
  %537 = vmatpush1.msra.mxu0 %v31
  %538 = vmatprep.subr.mxu0 0.0
  %539 = vmatpush1.msra.mxu0 %v30
  %540 = vmatprep.subr.mxu0 0.0
  %541 = vmatpush1.msra.mxu0 %v29
  %542 = vmatprep.subr.mxu0 0.0
  %543 = vmatpush1.msra.mxu0 %v28
  %544 = vmatprep.subr.mxu0 0.0
  %545 = vmatpush1.msra.mxu0 %v27
  %546 = vmatprep.subr.mxu0 0.0
  %547 = vmatpush1.msra.mxu0 %v26
  %548 = vmatprep.subr.mxu0 0.0
  %549 = vmatpush1.msra.mxu0 %v25
  %550 = vmatprep.subr.mxu0 0.0
  %551 = vmatpush1.msra.mxu0 %v24
  %552 = vmatprep.subr.mxu0 0.0
  %553 = vmatpush1.msra.mxu0 %v23
  %554 = vmatprep.subr.mxu0 0.0
  %555 = vmatpush2.msra.mxu0 0.0
  %556 = vmatprep.subr.mxu0 0.0
  %557 = vmatpush2.msra.mxu0 0.0
  %558 = vmatprep.subr.mxu0 0.0
  %559 = vmatpush2.msra.mxu0 0.0
  %560 = vmatprep.subr.mxu0 0.0
  %561 = vmatpush2.msra.mxu0 0.0
  %562 = vmatprep.subr.mxu0 0.0
  %563 = vmatpush2.msra.mxu0 0.0
  %564 = vmatprep.subr.mxu0 0.0
  %565 = vmatpush2.msra.mxu0 0.0
  %566 = vmatprep.subr.mxu0 0.0
  %567 = vmatpush2.msra.mxu0 0.0
  %568 = vmatprep.subr.mxu0 0.0
  %569 = vmatpush2.msra.mxu0 0.0
  %570 = vmatprep.subr.mxu0 0.0
  %571 = vmatpush2.msra.mxu0 0.0
  %572 = vmatprep.subr.mxu0 0.0
  %573 = vmatpush2.msra.mxu0 0.0
  %574 = vmatprep.subr.mxu0 0.0
  %575 = vmatpush2.msra.mxu0 0.0
  %576 = vmatprep.subr.mxu0 0.0
  %577 = vmatpush2.msra.mxu0 0.0
  %578 = vmatprep.subr.mxu0 0.0
  %579 = vmatpush2.msra.mxu0 0.0
  %580 = vmatprep.subr.mxu0 0.0
  %581 = vmatpush2.msra.mxu0 %v87
  %582 = vmatprep.subr.mxu0 0.0
  %583 = vmatpush2.msra.mxu0 %v40
  %584 = vmatprep.subr.mxu0 0.0
  %585 = vmatpush2.msra.mxu0 %v39
  %586 = vmatprep.mubr.f32.mxu0 %v502
  %587 = vmatmul.mubr.f32.gmra.mxu0 %v487
  %v588 = vpop.f32.mrf.mxu0
  %v589 = vadd.f32 %v61, %v588
  %v590 = vpop.f32.mrf.mxu0
  %591 = vmatprep.mubr.f32.mxu0 %v505
  %592 = vmatmul.mubr.f32.gmra.mxu0 %v489
  %v593 = vpop.f32.mrf.mxu0
  %v594 = vadd.f32 %v61, %v593
  %v595 = vpop.f32.mrf.mxu0
  %596 = vmatprep.mubr.f32.mxu0 %v508
  %597 = vmatmul.mubr.f32.gmra.mxu0 %v491
  %v598 = vpop.f32.mrf.mxu0
  %v599 = vadd.f32 %v61, %v598
  %v600 = vpop.f32.mrf.mxu0
  %601 = vmatprep.mubr.f32.mxu0 %v511
  %602 = vmatmul.mubr.f32.gmra.mxu0 %v493
  %v603 = vpop.f32.mrf.mxu0
  %v604 = vadd.f32 %v61, %v603
  %v605 = vpop.f32.mrf.mxu0
  %606 = vmatprep.mubr.f32.mxu0 %v514
  %607 = vmatmul.mubr.f32.gmra.mxu0 %v495
  %v608 = vpop.f32.mrf.mxu0
  %v609 = vadd.f32 %v61, %v608
  %v610 = vpop.f32.mrf.mxu0
  %611 = vmatprep.mubr.f32.mxu0 %v517
  %612 = vmatmul.mubr.f32.gmra.mxu0 %v497
  %v613 = vpop.f32.mrf.mxu0
  %v614 = vadd.f32 %v61, %v613
  %v615 = vpop.f32.mrf.mxu0
  %616 = vmatprep.mubr.f32.mxu0 %v520
  %617 = vmatmul.mubr.f32.gmra.mxu0 %v499
  %v618 = vpop.f32.mrf.mxu0
  %v619 = vadd.f32 %v61, %v618
  %v620 = vpop.f32.mrf.mxu0
  %621 = vdwg.mxu0
  %v622 = vmax.f32 %v589, 0.0
  %v623 = vmax.f32 %v594, 0.0
  %v624 = vmax.f32 %v599, 0.0
  %v625 = vmax.f32 %v604, 0.0
  %v626 = vmax.f32 %v609, 0.0
  %v627 = vmax.f32 %v614, 0.0
  %v628 = vmax.f32 %v619, 0.0
  %v629 = vmax.f32 %v480, %v622
  %v630 = vmax.f32 %v481, %v623
  %v631 = vmax.f32 %v482, %v624
  %v632 = vmax.f32 %v483, %v625
  %v633 = vmax.f32 %v484, %v626
  %v634 = vmax.f32 %v485, %v627
  %v635 = vmax.f32 %v486, %v628
  %v636 = vmax.f32 %v338, %v629
  %v637 = vmax.f32 %v339, %v630
  %v638 = vmax.f32 %v340, %v631
  %v639 = vmax.f32 %v341, %v632
  %v640 = vmax.f32 %v342, %v633
  %v641 = vmax.f32 %v343, %v634
  %v642 = vmax.f32 %v344, %v635
  %643 = vst [vmem:[%s6] sm:$0xff] %v636
  %644 = vst [vmem:[%s6 + $0x8] sm:$0xff] %v637
  %645 = vst [vmem:[%s6 + $0x10] sm:$0xff] %v638
  %646 = vst [vmem:[%s6 + $0x18] sm:$0xff] %v639
  %647 = vst [vmem:[%s6 + $0x20] sm:$0xff] %v640
  %648 = vst [vmem:[%s6 + $0x28] sm:$0xff] %v641
  %649 = vst [vmem:[%s6 + $0x30] sm:$0x3] %v642
  // Predicated region
  $region26: #{net_forward.4} parent=0 // pred_check
    _
  $region27: #{net_forward.4} parent=0 // pred_check_branch
    %651 = sbr.rel (0) target = $region29
  $region28: #{net_forward.4} parent=0 // pred_region
    _
  $region29: #{net_forward.4} parent=0 // pred_fallthru
    _
  // Predicated region
  $region30: #{net_forward.4} parent=0 // pred_check
    _
  $region31: #{net_forward.4} parent=0 // pred_check_branch
    %653 = sbr.rel (0) target = $region33
  $region32: #{net_forward.4} parent=0 // pred_region
    _
  $region33: #{net_forward.4} parent=0 // pred_fallthru
    _

// kernel: net_forward.5
$region0: #{net_forward.5}
  #allocation0 [shape = 'u32[]', space=smem, size = 0x4, offset = 0x4, fixed_abs, tag = 'smem constant byte address 0x4 - core index']
  #allocation1 [shape = 'u32[144,128]{1,0:T(1,128)}', space=vmem, size = 0x12000, scoped, tag = 'internal scratch']
  %s0 = inlined_call_operand.vmem [shape: f32[2,3200], index: 0, kind: input, shape index: {}]
  %s1 = inlined_call_operand.vmem [shape: f32[3200,128], index: 1, kind: input, shape index: {}]
  %s2 = inlined_call_operand.vmem [shape: f32[1,128], index: 2, kind: input, shape index: {}]
  %s3 = inlined_call_operand.vmem [shape: f32[128,128], index: 3, kind: input, shape index: {}]
  %s4 = inlined_call_operand.vmem [shape: f32[1,128], index: 4, kind: input, shape index: {}]
  %s5 = inlined_call_operand.vmem [shape: f32[128,128], index: 5, kind: input, shape index: {}]
  %s6 = inlined_call_operand.vmem [shape: f32[1,128], index: 6, kind: input, shape index: {}]
  %s7 = inlined_call_operand.hbm [shape: f32[2,128], index: 7, kind: output, shape index: {}]
  %s8 = sld [smem:[#allocation0]]
  $region38: #{net_forward.5} parent=0
    _
  %s10 = ssub.s32 1, %s8
  %s11 = scalar_select 0, %s10, %s8
  $region1: #{net_forward.5} parent=0
    #allocation2 [shape = 'u8[1024]{0}', space=vmem, size = 0x400, scoped, tag = 'output window, operand 0, single buffered']
    #allocation3 [shape = 's32[1]{0}', space=sflag, size = 0x4, scoped, tag = 'scoped memory for net_forward.5']
    %12 = vsyncpa [#allocation3], 0
    // Predicated region
    $region2: #{net_forward.5} parent=1 // pred_check
      _
    $region3: #{net_forward.5} parent=1 // pred_check_branch
      %14 = sbr.rel (0) target = $region5
    $region4: #{net_forward.5} parent=1 // pred_region
      _
    $region5: #{net_forward.5} parent=1 // pred_fallthru
      _
    // Predicated region
    $region6: #{net_forward.5} parent=1 // pred_check
      _
    $region7: #{net_forward.5} parent=1 // pred_check_branch
      %16 = sbr.rel (0) target = $region9
    $region8: #{net_forward.5} parent=1 // pred_region
      _
    $region9: #{net_forward.5} parent=1 // pred_fallthru
      _
    // Predicated region
    $region10: #{net_forward.5} parent=1 // pred_check
      _
    $region11: #{net_forward.5} parent=1 // pred_check_branch
      %18 = sbr.rel (0) target = $region13
    $region12: #{net_forward.5} parent=1 // pred_region
      _
    $region13: #{net_forward.5} parent=1 // pred_fallthru
      _
    // Predicated region
    $region14: #{net_forward.5} parent=1 // pred_check
      _
    $region15: #{net_forward.5} parent=1 // pred_check_branch
      %20 = sbr.rel (0) target = $region17
    $region16: #{net_forward.5} parent=1 // pred_region
      _
    $region17: #{net_forward.5} parent=1 // pred_fallthru
      _
    // Predicated region
    $region18: #{net_forward.5} parent=1 // pred_check
      _
    $region19: #{net_forward.5} parent=1 // pred_check_branch
      %22 = sbr.rel (0) target = $region21
    $region20: #{net_forward.5} parent=1 // pred_region
      _
    $region21: #{net_forward.5} parent=1 // pred_fallthru
      _
    // Predicated region
    $region22: #{net_forward.5} parent=1 // pred_check
      _
    $region23: #{net_forward.5} parent=1 // pred_check_branch
      %24 = sbr.rel (0) target = $region25
    $region24: #{net_forward.5} parent=1 // pred_region
      _
    $region25: #{net_forward.5} parent=1 // pred_fallthru
      _
    // Predicated region
    $region26: #{net_forward.5} parent=1 // pred_check
      _
    $region27: #{net_forward.5} parent=1 // pred_check_branch
      %26 = sbr.rel (0) target = $region29
    $region28: #{net_forward.5} parent=1 // pred_region
      _
    $region29: #{net_forward.5} parent=1 // pred_fallthru
      _
    %v27 = vld [vmem:[%s0] sm:$0xff]
    %v28 = vld [vmem:[%s0 + $0x8] sm:$0xff]
    %v29 = vld [vmem:[%s0 + $0x10] sm:$0xff]
    %v30 = vld [vmem:[%s0 + $0x18] sm:$0xff]
    %v31 = vld [vmem:[%s0 + $0x20] sm:$0xff]
    %v32 = vld [vmem:[%s0 + $0x28] sm:$0xff]
    %v33 = vld [vmem:[%s0 + $0x30] sm:$0x3]
    %v34 = vld [vmem:[%s1] sm:$0xff]
    %v35 = vld [vmem:[%s1 + $0x8] sm:$0xff]
    %v36 = vld [vmem:[%s1 + $0x10] sm:$0xff]
    %v37 = vld [vmem:[%s1 + $0x18] sm:$0xff]
    %v38 = vld [vmem:[%s1 + $0x20] sm:$0xff]
    %v39 = vld [vmem:[%s1 + $0x28] sm:$0xff]
    %v40 = vld [vmem:[%s1 + $0x30] sm:$0xff]
    %v41 = vld [vmem:[%s1 + $0x38] sm:$0xff]
    %v42 = vld [vmem:[%s1 + $0x40] sm:$0xff]
    %v43 = vld [vmem:[%s1 + $0x48] sm:$0xff]
    %v44 = vld [vmem:[%s1 + $0x50] sm:$0xff]
    %v45 = vld [vmem:[%s1 + $0x58] sm:$0xff]
    %v46 = vld [vmem:[%s1 + $0x60] sm:$0xff]
    %v47 = vld [vmem:[%s1 + $0x68] sm:$0xff]
    %v48 = vld [vmem:[%s1 + $0x70] sm:$0xff]
    %v49 = vld [vmem:[%s1 + $0x78] sm:$0xff]
    %v50 = vld [vmem:[%s1 + $0x80] sm:$0xff]
    %v51 = vld [vmem:[%s1 + $0x88] sm:$0xff]
    %v52 = vld [vmem:[%s1 + $0x90] sm:$0xff]
    %v53 = vld [vmem:[%s1 + $0x98] sm:$0xff]
    %v54 = vld [vmem:[%s1 + $0xa0] sm:$0xff]
    %v55 = vld [vmem:[%s1 + $0xa8] sm:$0xff]
    %v56 = vld [vmem:[%s1 + $0xb0] sm:$0xff]
    %v57 = vld [vmem:[%s1 + $0xb8] sm:$0xff]
    %v58 = vld [vmem:[%s1 + $0xc0] sm:$0xff]
    %v59 = vld [vmem:[%s1 + $0xc8] sm:$0xff]
    %v60 = vld [vmem:[%s1 + $0xd0] sm:$0xff]
    %v61 = vld [vmem:[%s1 + $0xd8] sm:$0xff]
    %v62 = vld [vmem:[%s1 + $0xe0] sm:$0xff]
    %v63 = vld [vmem:[%s1 + $0xe8] sm:$0xff]
    %v64 = vld [vmem:[%s1 + $0xf0] sm:$0xff]
    %v65 = vld [vmem:[%s1 + $0xf8] sm:$0xff]
    %v66 = vld [vmem:[%s1 + $0x100] sm:$0xff]
    %v67 = vld [vmem:[%s1 + $0x108] sm:$0xff]
    %v68 = vld [vmem:[%s1 + $0x110] sm:$0xff]
    %v69 = vld [vmem:[%s1 + $0x118] sm:$0xff]
    %v70 = vld [vmem:[%s1 + $0x120] sm:$0xff]
    %v71 = vld [vmem:[%s1 + $0x128] sm:$0xff]
    %v72 = vld [vmem:[%s1 + $0x130] sm:$0xff]
    %v73 = vld [vmem:[%s1 + $0x138] sm:$0xff]
    %v74 = vld [vmem:[%s1 + $0x140] sm:$0xff]
    %v75 = vld [vmem:[%s1 + $0x148] sm:$0xff]
    %v76 = vld [vmem:[%s1 + $0x150] sm:$0xff]
    %v77 = vld [vmem:[%s1 + $0x158] sm:$0xff]
    %v78 = vld [vmem:[%s1 + $0x160] sm:$0xff]
    %v79 = vld [vmem:[%s1 + $0x168] sm:$0xff]
    %v80 = vld [vmem:[%s1 + $0x170] sm:$0xff]
    %v81 = vld [vmem:[%s1 + $0x178] sm:$0xff]
    %v82 = vld [vmem:[%s1 + $0x180] sm:$0xff]
    %v83 = vld [vmem:[%s1 + $0x188] sm:$0xff]
    %v84 = vld [vmem:[%s1 + $0x190] sm:$0xff]
    %v85 = vld [vmem:[%s1 + $0x198] sm:$0xff]
    %v86 = vld [vmem:[%s1 + $0x1a0] sm:$0xff]
    %v87 = vld [vmem:[%s1 + $0x1a8] sm:$0xff]
    %v88 = vld [vmem:[%s1 + $0x1b0] sm:$0xff]
    %v89 = vld [vmem:[%s1 + $0x1b8] sm:$0xff]
    %v90 = vld [vmem:[%s1 + $0x1c0] sm:$0xff]
    %v91 = vld [vmem:[%s1 + $0x1c8] sm:$0xff]
    %v92 = vld [vmem:[%s1 + $0x1d0] sm:$0xff]
    %v93 = vld [vmem:[%s1 + $0x1d8] sm:$0xff]
    %v94 = vld [vmem:[%s1 + $0x1e0] sm:$0xff]
    %v95 = vld [vmem:[%s1 + $0x1e8] sm:$0xff]
    %v96 = vld [vmem:[%s1 + $0x1f0] sm:$0xff]
    %v97 = vld [vmem:[%s1 + $0x1f8] sm:$0xff]
    %v98 = vld [vmem:[%s1 + $0x200] sm:$0xff]
    %v99 = vld [vmem:[%s1 + $0x208] sm:$0xff]
    %v100 = vld [vmem:[%s1 + $0x210] sm:$0xff]
    %v101 = vld [vmem:[%s1 + $0x218] sm:$0xff]
    %v102 = vld [vmem:[%s1 + $0x220] sm:$0xff]
    %v103 = vld [vmem:[%s1 + $0x228] sm:$0xff]
    %v104 = vld [vmem:[%s1 + $0x230] sm:$0xff]
    %v105 = vld [vmem:[%s1 + $0x238] sm:$0xff]
    %v106 = vld [vmem:[%s1 + $0x240] sm:$0xff]
    %v107 = vld [vmem:[%s1 + $0x248] sm:$0xff]
    %v108 = vld [vmem:[%s1 + $0x250] sm:$0xff]
    %v109 = vld [vmem:[%s1 + $0x258] sm:$0xff]
    %v110 = vld [vmem:[%s1 + $0x260] sm:$0xff]
    %v111 = vld [vmem:[%s1 + $0x268] sm:$0xff]
    %v112 = vld [vmem:[%s1 + $0x270] sm:$0xff]
    %v113 = vld [vmem:[%s1 + $0x278] sm:$0xff]
    %v114 = vld [vmem:[%s1 + $0x280] sm:$0xff]
    %v115 = vld [vmem:[%s1 + $0x288] sm:$0xff]
    %v116 = vld [vmem:[%s1 + $0x290] sm:$0xff]
    %v117 = vld [vmem:[%s1 + $0x298] sm:$0xff]
    %v118 = vld [vmem:[%s1 + $0x2a0] sm:$0xff]
    %v119 = vld [vmem:[%s1 + $0x2a8] sm:$0xff]
    %v120 = vld [vmem:[%s1 + $0x2b0] sm:$0xff]
    %v121 = vld [vmem:[%s1 + $0x2b8] sm:$0xff]
    %v122 = vld [vmem:[%s1 + $0x2c0] sm:$0xff]
    %v123 = vld [vmem:[%s1 + $0x2c8] sm:$0xff]
    %v124 = vld [vmem:[%s1 + $0x2d0] sm:$0xff]
    %v125 = vld [vmem:[%s1 + $0x2d8] sm:$0xff]
    %v126 = vld [vmem:[%s1 + $0x2e0] sm:$0xff]
    %v127 = vld [vmem:[%s1 + $0x2e8] sm:$0xff]
    %v128 = vld [vmem:[%s1 + $0x2f0] sm:$0xff]
    %v129 = vld [vmem:[%s1 + $0x2f8] sm:$0xff]
    %v130 = vld [vmem:[%s1 + $0x300] sm:$0xff]
    %v131 = vld [vmem:[%s1 + $0x308] sm:$0xff]
    %v132 = vld [vmem:[%s1 + $0x310] sm:$0xff]
    %v133 = vld [vmem:[%s1 + $0x318] sm:$0xff]
    %v134 = vld [vmem:[%s1 + $0x320] sm:$0xff]
    %v135 = vld [vmem:[%s1 + $0x328] sm:$0xff]
    %v136 = vld [vmem:[%s1 + $0x330] sm:$0xff]
    %v137 = vld [vmem:[%s1 + $0x338] sm:$0xff]
    %v138 = vld [vmem:[%s1 + $0x340] sm:$0xff]
    %v139 = vld [vmem:[%s1 + $0x348] sm:$0xff]
    %v140 = vld [vmem:[%s1 + $0x350] sm:$0xff]
    %v141 = vld [vmem:[%s1 + $0x358] sm:$0xff]
    %v142 = vld [vmem:[%s1 + $0x360] sm:$0xff]
    %v143 = vld [vmem:[%s1 + $0x368] sm:$0xff]
    %v144 = vld [vmem:[%s1 + $0x370] sm:$0xff]
    %v145 = vld [vmem:[%s1 + $0x378] sm:$0xff]
    %v146 = vld [vmem:[%s1 + $0x380] sm:$0xff]
    %v147 = vld [vmem:[%s1 + $0x388] sm:$0xff]
    %v148 = vld [vmem:[%s1 + $0x390] sm:$0xff]
    %v149 = vld [vmem:[%s1 + $0x398] sm:$0xff]
    %v150 = vld [vmem:[%s1 + $0x3a0] sm:$0xff]
    %v151 = vld [vmem:[%s1 + $0x3a8] sm:$0xff]
    %v152 = vld [vmem:[%s1 + $0x3b0] sm:$0xff]
    %v153 = vld [vmem:[%s1 + $0x3b8] sm:$0xff]
    %v154 = vld [vmem:[%s1 + $0x3c0] sm:$0xff]
    %v155 = vld [vmem:[%s1 + $0x3c8] sm:$0xff]
    %v156 = vld [vmem:[%s1 + $0x3d0] sm:$0xff]
    %v157 = vld [vmem:[%s1 + $0x3d8] sm:$0xff]
    %v158 = vld [vmem:[%s1 + $0x3e0] sm:$0xff]
    %v159 = vld [vmem:[%s1 + $0x3e8] sm:$0xff]
    %v160 = vld [vmem:[%s1 + $0x3f0] sm:$0xff]
    %v161 = vld [vmem:[%s1 + $0x3f8] sm:$0xff]
    %v162 = vld [vmem:[%s1 + $0x400] sm:$0xff]
    %v163 = vld [vmem:[%s1 + $0x408] sm:$0xff]
    %v164 = vld [vmem:[%s1 + $0x410] sm:$0xff]
    %v165 = vld [vmem:[%s1 + $0x418] sm:$0xff]
    %v166 = vld [vmem:[%s1 + $0x420] sm:$0xff]
    %v167 = vld [vmem:[%s1 + $0x428] sm:$0xff]
    %v168 = vld [vmem:[%s1 + $0x430] sm:$0xff]
    %v169 = vld [vmem:[%s1 + $0x438] sm:$0xff]
    %v170 = vld [vmem:[%s1 + $0x440] sm:$0xff]
    %v171 = vld [vmem:[%s1 + $0x448] sm:$0xff]
    %v172 = vld [vmem:[%s1 + $0x450] sm:$0xff]
    %v173 = vld [vmem:[%s1 + $0x458] sm:$0xff]
    %v174 = vld [vmem:[%s1 + $0x460] sm:$0xff]
    %v175 = vld [vmem:[%s1 + $0x468] sm:$0xff]
    %v176 = vld [vmem:[%s1 + $0x470] sm:$0xff]
    %v177 = vld [vmem:[%s1 + $0x478] sm:$0xff]
    %v178 = vld [vmem:[%s1 + $0x480] sm:$0xff]
    %v179 = vld [vmem:[%s1 + $0x488] sm:$0xff]
    %v180 = vld [vmem:[%s1 + $0x490] sm:$0xff]
    %v181 = vld [vmem:[%s1 + $0x498] sm:$0xff]
    %v182 = vld [vmem:[%s1 + $0x4a0] sm:$0xff]
    %v183 = vld [vmem:[%s1 + $0x4a8] sm:$0xff]
    %v184 = vld [vmem:[%s1 + $0x4b0] sm:$0xff]
    %v185 = vld [vmem:[%s1 + $0x4b8] sm:$0xff]
    %v186 = vld [vmem:[%s1 + $0x4c0] sm:$0xff]
    %v187 = vld [vmem:[%s1 + $0x4c8] sm:$0xff]
    %v188 = vld [vmem:[%s1 + $0x4d0] sm:$0xff]
    %v189 = vld [vmem:[%s1 + $0x4d8] sm:$0xff]
    %v190 = vld [vmem:[%s1 + $0x4e0] sm:$0xff]
    %v191 = vld [vmem:[%s1 + $0x4e8] sm:$0xff]
    %v192 = vld [vmem:[%s1 + $0x4f0] sm:$0xff]
    %v193 = vld [vmem:[%s1 + $0x4f8] sm:$0xff]
    %v194 = vld [vmem:[%s1 + $0x500] sm:$0xff]
    %v195 = vld [vmem:[%s1 + $0x508] sm:$0xff]
    %v196 = vld [vmem:[%s1 + $0x510] sm:$0xff]
    %v197 = vld [vmem:[%s1 + $0x518] sm:$0xff]
    %v198 = vld [vmem:[%s1 + $0x520] sm:$0xff]
    %v199 = vld [vmem:[%s1 + $0x528] sm:$0xff]
    %v200 = vld [vmem:[%s1 + $0x530] sm:$0xff]
    %v201 = vld [vmem:[%s1 + $0x538] sm:$0xff]
    %v202 = vld [vmem:[%s1 + $0x540] sm:$0xff]
    %v203 = vld [vmem:[%s1 + $0x548] sm:$0xff]
    %v204 = vld [vmem:[%s1 + $0x550] sm:$0xff]
    %v205 = vld [vmem:[%s1 + $0x558] sm:$0xff]
    %v206 = vld [vmem:[%s1 + $0x560] sm:$0xff]
    %v207 = vld [vmem:[%s1 + $0x568] sm:$0xff]
    %v208 = vld [vmem:[%s1 + $0x570] sm:$0xff]
    %v209 = vld [vmem:[%s1 + $0x578] sm:$0xff]
    %v210 = vld [vmem:[%s1 + $0x580] sm:$0xff]
    %v211 = vld [vmem:[%s1 + $0x588] sm:$0xff]
    %v212 = vld [vmem:[%s1 + $0x590] sm:$0xff]
    %v213 = vld [vmem:[%s1 + $0x598] sm:$0xff]
    %v214 = vld [vmem:[%s1 + $0x5a0] sm:$0xff]
    %v215 = vld [vmem:[%s1 + $0x5a8] sm:$0xff]
    %v216 = vld [vmem:[%s1 + $0x5b0] sm:$0xff]
    %v217 = vld [vmem:[%s1 + $0x5b8] sm:$0xff]
    %v218 = vld [vmem:[%s1 + $0x5c0] sm:$0xff]
    %v219 = vld [vmem:[%s1 + $0x5c8] sm:$0xff]
    %v220 = vld [vmem:[%s1 + $0x5d0] sm:$0xff]
    %v221 = vld [vmem:[%s1 + $0x5d8] sm:$0xff]
    %v222 = vld [vmem:[%s1 + $0x5e0] sm:$0xff]
    %v223 = vld [vmem:[%s1 + $0x5e8] sm:$0xff]
    %v224 = vld [vmem:[%s1 + $0x5f0] sm:$0xff]
    %v225 = vld [vmem:[%s1 + $0x5f8] sm:$0xff]
    %v226 = vld [vmem:[%s1 + $0x600] sm:$0xff]
    %v227 = vld [vmem:[%s1 + $0x608] sm:$0xff]
    %v228 = vld [vmem:[%s1 + $0x610] sm:$0xff]
    %v229 = vld [vmem:[%s1 + $0x618] sm:$0xff]
    %v230 = vld [vmem:[%s1 + $0x620] sm:$0xff]
    %v231 = vld [vmem:[%s1 + $0x628] sm:$0xff]
    %v232 = vld [vmem:[%s1 + $0x630] sm:$0xff]
    %v233 = vld [vmem:[%s1 + $0x638] sm:$0xff]
    %v234 = vld [vmem:[%s1 + $0x640] sm:$0xff]
    %v235 = vld [vmem:[%s1 + $0x648] sm:$0xff]
    %v236 = vld [vmem:[%s1 + $0x650] sm:$0xff]
    %v237 = vld [vmem:[%s1 + $0x658] sm:$0xff]
    %v238 = vld [vmem:[%s1 + $0x660] sm:$0xff]
    %v239 = vld [vmem:[%s1 + $0x668] sm:$0xff]
    %v240 = vld [vmem:[%s1 + $0x670] sm:$0xff]
    %v241 = vld [vmem:[%s1 + $0x678] sm:$0xff]
    %v242 = vld [vmem:[%s1 + $0x680] sm:$0xff]
    %v243 = vld [vmem:[%s1 + $0x688] sm:$0xff]
    %v244 = vld [vmem:[%s1 + $0x690] sm:$0xff]
    %v245 = vld [vmem:[%s1 + $0x698] sm:$0xff]
    %v246 = vld [vmem:[%s1 + $0x6a0] sm:$0xff]
    %v247 = vld [vmem:[%s1 + $0x6a8] sm:$0xff]
    %v248 = vld [vmem:[%s1 + $0x6b0] sm:$0xff]
    %v249 = vld [vmem:[%s1 + $0x6b8] sm:$0xff]
    %v250 = vld [vmem:[%s1 + $0x6c0] sm:$0xff]
    %v251 = vld [vmem:[%s1 + $0x6c8] sm:$0xff]
    %v252 = vld [vmem:[%s1 + $0x6d0] sm:$0xff]
    %v253 = vld [vmem:[%s1 + $0x6d8] sm:$0xff]
    %v254 = vld [vmem:[%s1 + $0x6e0] sm:$0xff]
    %v255 = vld [vmem:[%s1 + $0x6e8] sm:$0xff]
    %v256 = vld [vmem:[%s1 + $0x6f0] sm:$0xff]
    %v257 = vld [vmem:[%s1 + $0x6f8] sm:$0xff]
    %v258 = vld [vmem:[%s1 + $0x700] sm:$0xff]
    %v259 = vld [vmem:[%s1 + $0x708] sm:$0xff]
    %v260 = vld [vmem:[%s1 + $0x710] sm:$0xff]
    %v261 = vld [vmem:[%s1 + $0x718] sm:$0xff]
    %v262 = vld [vmem:[%s1 + $0x720] sm:$0xff]
    %v263 = vld [vmem:[%s1 + $0x728] sm:$0xff]
    %v264 = vld [vmem:[%s1 + $0x730] sm:$0xff]
    %v265 = vld [vmem:[%s1 + $0x738] sm:$0xff]
    %v266 = vld [vmem:[%s1 + $0x740] sm:$0xff]
    %v267 = vld [vmem:[%s1 + $0x748] sm:$0xff]
    %v268 = vld [vmem:[%s1 + $0x750] sm:$0xff]
    %v269 = vld [vmem:[%s1 + $0x758] sm:$0xff]
    %v270 = vld [vmem:[%s1 + $0x760] sm:$0xff]
    %v271 = vld [vmem:[%s1 + $0x768] sm:$0xff]
    %v272 = vld [vmem:[%s1 + $0x770] sm:$0xff]
    %v273 = vld [vmem:[%s1 + $0x778] sm:$0xff]
    %v274 = vld [vmem:[%s1 + $0x780] sm:$0xff]
    %v275 = vld [vmem:[%s1 + $0x788] sm:$0xff]
    %v276 = vld [vmem:[%s1 + $0x790] sm:$0xff]
    %v277 = vld [vmem:[%s1 + $0x798] sm:$0xff]
    %v278 = vld [vmem:[%s1 + $0x7a0] sm:$0xff]
    %v279 = vld [vmem:[%s1 + $0x7a8] sm:$0xff]
    %v280 = vld [vmem:[%s1 + $0x7b0] sm:$0xff]
    %v281 = vld [vmem:[%s1 + $0x7b8] sm:$0xff]
    %v282 = vld [vmem:[%s1 + $0x7c0] sm:$0xff]
    %v283 = vld [vmem:[%s1 + $0x7c8] sm:$0xff]
    %v284 = vld [vmem:[%s1 + $0x7d0] sm:$0xff]
    %v285 = vld [vmem:[%s1 + $0x7d8] sm:$0xff]
    %v286 = vld [vmem:[%s1 + $0x7e0] sm:$0xff]
    %v287 = vld [vmem:[%s1 + $0x7e8] sm:$0xff]
    %v288 = vld [vmem:[%s1 + $0x7f0] sm:$0xff]
    %v289 = vld [vmem:[%s1 + $0x7f8] sm:$0xff]
    %v290 = vld [vmem:[%s1 + $0x800] sm:$0xff]
    %v291 = vld [vmem:[%s1 + $0x808] sm:$0xff]
    %v292 = vld [vmem:[%s1 + $0x810] sm:$0xff]
    %v293 = vld [vmem:[%s1 + $0x818] sm:$0xff]
    %v294 = vld [vmem:[%s1 + $0x820] sm:$0xff]
    %v295 = vld [vmem:[%s1 + $0x828] sm:$0xff]
    %v296 = vld [vmem:[%s1 + $0x830] sm:$0xff]
    %v297 = vld [vmem:[%s1 + $0x838] sm:$0xff]
    %v298 = vld [vmem:[%s1 + $0x840] sm:$0xff]
    %v299 = vld [vmem:[%s1 + $0x848] sm:$0xff]
    %v300 = vld [vmem:[%s1 + $0x850] sm:$0xff]
    %v301 = vld [vmem:[%s1 + $0x858] sm:$0xff]
    %v302 = vld [vmem:[%s1 + $0x860] sm:$0xff]
    %v303 = vld [vmem:[%s1 + $0x868] sm:$0xff]
    %v304 = vld [vmem:[%s1 + $0x870] sm:$0xff]
    %v305 = vld [vmem:[%s1 + $0x878] sm:$0xff]
    %v306 = vld [vmem:[%s1 + $0x880] sm:$0xff]
    %v307 = vld [vmem:[%s1 + $0x888] sm:$0xff]
    %v308 = vld [vmem:[%s1 + $0x890] sm:$0xff]
    %v309 = vld [vmem:[%s1 + $0x898] sm:$0xff]
    %v310 = vld [vmem:[%s1 + $0x8a0] sm:$0xff]
    %v311 = vld [vmem:[%s1 + $0x8a8] sm:$0xff]
    %v312 = vld [vmem:[%s1 + $0x8b0] sm:$0xff]
    %v313 = vld [vmem:[%s1 + $0x8b8] sm:$0xff]
    %v314 = vld [vmem:[%s1 + $0x8c0] sm:$0xff]
    %v315 = vld [vmem:[%s1 + $0x8c8] sm:$0xff]
    %v316 = vld [vmem:[%s1 + $0x8d0] sm:$0xff]
    %v317 = vld [vmem:[%s1 + $0x8d8] sm:$0xff]
    %v318 = vld [vmem:[%s1 + $0x8e0] sm:$0xff]
    %v319 = vld [vmem:[%s1 + $0x8e8] sm:$0xff]
    %v320 = vld [vmem:[%s1 + $0x8f0] sm:$0xff]
    %v321 = vld [vmem:[%s1 + $0x8f8] sm:$0xff]
    %v322 = vld [vmem:[%s1 + $0x900] sm:$0xff]
    %v323 = vld [vmem:[%s1 + $0x908] sm:$0xff]
    %v324 = vld [vmem:[%s1 + $0x910] sm:$0xff]
    %v325 = vld [vmem:[%s1 + $0x918] sm:$0xff]
    %v326 = vld [vmem:[%s1 + $0x920] sm:$0xff]
    %v327 = vld [vmem:[%s1 + $0x928] sm:$0xff]
    %v328 = vld [vmem:[%s1 + $0x930] sm:$0xff]
    %v329 = vld [vmem:[%s1 + $0x938] sm:$0xff]
    %v330 = vld [vmem:[%s1 + $0x940] sm:$0xff]
    %v331 = vld [vmem:[%s1 + $0x948] sm:$0xff]
    %v332 = vld [vmem:[%s1 + $0x950] sm:$0xff]
    %v333 = vld [vmem:[%s1 + $0x958] sm:$0xff]
    %v334 = vld [vmem:[%s1 + $0x960] sm:$0xff]
    %v335 = vld [vmem:[%s1 + $0x968] sm:$0xff]
    %v336 = vld [vmem:[%s1 + $0x970] sm:$0xff]
    %v337 = vld [vmem:[%s1 + $0x978] sm:$0xff]
    %v338 = vld [vmem:[%s1 + $0x980] sm:$0xff]
    %v339 = vld [vmem:[%s1 + $0x988] sm:$0xff]
    %v340 = vld [vmem:[%s1 + $0x990] sm:$0xff]
    %v341 = vld [vmem:[%s1 + $0x998] sm:$0xff]
    %v342 = vld [vmem:[%s1 + $0x9a0] sm:$0xff]
    %v343 = vld [vmem:[%s1 + $0x9a8] sm:$0xff]
    %v344 = vld [vmem:[%s1 + $0x9b0] sm:$0xff]
    %v345 = vld [vmem:[%s1 + $0x9b8] sm:$0xff]
    %v346 = vld [vmem:[%s1 + $0x9c0] sm:$0xff]
    %v347 = vld [vmem:[%s1 + $0x9c8] sm:$0xff]
    %v348 = vld [vmem:[%s1 + $0x9d0] sm:$0xff]
    %v349 = vld [vmem:[%s1 + $0x9d8] sm:$0xff]
    %v350 = vld [vmem:[%s1 + $0x9e0] sm:$0xff]
    %v351 = vld [vmem:[%s1 + $0x9e8] sm:$0xff]
    %v352 = vld [vmem:[%s1 + $0x9f0] sm:$0xff]
    %v353 = vld [vmem:[%s1 + $0x9f8] sm:$0xff]
    %v354 = vld [vmem:[%s1 + $0xa00] sm:$0xff]
    %v355 = vld [vmem:[%s1 + $0xa08] sm:$0xff]
    %v356 = vld [vmem:[%s1 + $0xa10] sm:$0xff]
    %v357 = vld [vmem:[%s1 + $0xa18] sm:$0xff]
    %v358 = vld [vmem:[%s1 + $0xa20] sm:$0xff]
    %v359 = vld [vmem:[%s1 + $0xa28] sm:$0xff]
    %v360 = vld [vmem:[%s1 + $0xa30] sm:$0xff]
    %v361 = vld [vmem:[%s1 + $0xa38] sm:$0xff]
    %v362 = vld [vmem:[%s1 + $0xa40] sm:$0xff]
    %v363 = vld [vmem:[%s1 + $0xa48] sm:$0xff]
    %v364 = vld [vmem:[%s1 + $0xa50] sm:$0xff]
    %v365 = vld [vmem:[%s1 + $0xa58] sm:$0xff]
    %v366 = vld [vmem:[%s1 + $0xa60] sm:$0xff]
    %v367 = vld [vmem:[%s1 + $0xa68] sm:$0xff]
    %v368 = vld [vmem:[%s1 + $0xa70] sm:$0xff]
    %v369 = vld [vmem:[%s1 + $0xa78] sm:$0xff]
    %v370 = vld [vmem:[%s1 + $0xa80] sm:$0xff]
    %v371 = vld [vmem:[%s1 + $0xa88] sm:$0xff]
    %v372 = vld [vmem:[%s1 + $0xa90] sm:$0xff]
    %v373 = vld [vmem:[%s1 + $0xa98] sm:$0xff]
    %v374 = vld [vmem:[%s1 + $0xaa0] sm:$0xff]
    %v375 = vld [vmem:[%s1 + $0xaa8] sm:$0xff]
    %v376 = vld [vmem:[%s1 + $0xab0] sm:$0xff]
    %v377 = vld [vmem:[%s1 + $0xab8] sm:$0xff]
    %v378 = vld [vmem:[%s1 + $0xac0] sm:$0xff]
    %v379 = vld [vmem:[%s1 + $0xac8] sm:$0xff]
    %v380 = vld [vmem:[%s1 + $0xad0] sm:$0xff]
    %v381 = vld [vmem:[%s1 + $0xad8] sm:$0xff]
    %v382 = vld [vmem:[%s1 + $0xae0] sm:$0xff]
    %v383 = vld [vmem:[%s1 + $0xae8] sm:$0xff]
    %v384 = vld [vmem:[%s1 + $0xaf0] sm:$0xff]
    %v385 = vld [vmem:[%s1 + $0xaf8] sm:$0xff]
    %v386 = vld [vmem:[%s1 + $0xb00] sm:$0xff]
    %v387 = vld [vmem:[%s1 + $0xb08] sm:$0xff]
    %v388 = vld [vmem:[%s1 + $0xb10] sm:$0xff]
    %v389 = vld [vmem:[%s1 + $0xb18] sm:$0xff]
    %v390 = vld [vmem:[%s1 + $0xb20] sm:$0xff]
    %v391 = vld [vmem:[%s1 + $0xb28] sm:$0xff]
    %v392 = vld [vmem:[%s1 + $0xb30] sm:$0xff]
    %v393 = vld [vmem:[%s1 + $0xb38] sm:$0xff]
    %v394 = vld [vmem:[%s1 + $0xb40] sm:$0xff]
    %v395 = vld [vmem:[%s1 + $0xb48] sm:$0xff]
    %v396 = vld [vmem:[%s1 + $0xb50] sm:$0xff]
    %v397 = vld [vmem:[%s1 + $0xb58] sm:$0xff]
    %v398 = vld [vmem:[%s1 + $0xb60] sm:$0xff]
    %v399 = vld [vmem:[%s1 + $0xb68] sm:$0xff]
    %v400 = vld [vmem:[%s1 + $0xb70] sm:$0xff]
    %v401 = vld [vmem:[%s1 + $0xb78] sm:$0xff]
    %v402 = vld [vmem:[%s1 + $0xb80] sm:$0xff]
    %v403 = vld [vmem:[%s1 + $0xb88] sm:$0xff]
    %v404 = vld [vmem:[%s1 + $0xb90] sm:$0xff]
    %v405 = vld [vmem:[%s1 + $0xb98] sm:$0xff]
    %v406 = vld [vmem:[%s1 + $0xba0] sm:$0xff]
    %v407 = vld [vmem:[%s1 + $0xba8] sm:$0xff]
    %v408 = vld [vmem:[%s1 + $0xbb0] sm:$0xff]
    %v409 = vld [vmem:[%s1 + $0xbb8] sm:$0xff]
    %v410 = vld [vmem:[%s1 + $0xbc0] sm:$0xff]
    %v411 = vld [vmem:[%s1 + $0xbc8] sm:$0xff]
    %v412 = vld [vmem:[%s1 + $0xbd0] sm:$0xff]
    %v413 = vld [vmem:[%s1 + $0xbd8] sm:$0xff]
    %v414 = vld [vmem:[%s1 + $0xbe0] sm:$0xff]
    %v415 = vld [vmem:[%s1 + $0xbe8] sm:$0xff]
    %v416 = vld [vmem:[%s1 + $0xbf0] sm:$0xff]
    %v417 = vld [vmem:[%s1 + $0xbf8] sm:$0xff]
    %v418 = vld [vmem:[%s1 + $0xc00] sm:$0xff]
    %v419 = vld [vmem:[%s1 + $0xc08] sm:$0xff]
    %v420 = vld [vmem:[%s1 + $0xc10] sm:$0xff]
    %v421 = vld [vmem:[%s1 + $0xc18] sm:$0xff]
    %v422 = vld [vmem:[%s1 + $0xc20] sm:$0xff]
    %v423 = vld [vmem:[%s1 + $0xc28] sm:$0xff]
    %v424 = vld [vmem:[%s1 + $0xc30] sm:$0xff]
    %v425 = vld [vmem:[%s1 + $0xc38] sm:$0xff]
    %v426 = vld [vmem:[%s1 + $0xc40] sm:$0xff]
    %v427 = vld [vmem:[%s1 + $0xc48] sm:$0xff]
    %v428 = vld [vmem:[%s1 + $0xc50] sm:$0xff]
    %v429 = vld [vmem:[%s1 + $0xc58] sm:$0xff]
    %v430 = vld [vmem:[%s1 + $0xc60] sm:$0xff]
    %v431 = vld [vmem:[%s1 + $0xc68] sm:$0xff]
    %v432 = vld [vmem:[%s1 + $0xc70] sm:$0xff]
    %v433 = vld [vmem:[%s1 + $0xc78] sm:$0xff]
    %v434 = vld [vmem:[%s2] sm:$0x1]
    %v436 = vlaneseq
    %v437 = vshrl.u32 %v436, 7
    %v438 = vsub.s32 0, %v437
    %v439 = vrot.slane %v434, %v438
    %v448 = vcombine.high %v27, %v27
    %v450 = vunpack.c.l.s4 1983009808
    %v451 = vunpack.c.0.s8 %v450
    %v452 = vlaneseq
    %v453 = vshrl.u32 %v452, 7
    %v454 = vsub.s32 %v451, %v453
    %v455 = vrot.slane %v27, %v454
    %v457 = vunpack.c.l.s4 1983009808
    %v458 = vunpack.c.0.s8 %v457
    %v459 = vlaneseq
    %v460 = vshrl.u32 %v459, 7
    %v461 = vsub.s32 %v458, %v460
    %v462 = vrot.slane %v448, %v461
    %v463 = vcombine.high %v455, %v455
    %v464 = vcombine.high %v462, %v462
    %v465 = vcombine.high %v28, %v28
    %v467 = vunpack.c.l.s4 1983009808
    %v468 = vunpack.c.0.s8 %v467
    %v469 = vlaneseq
    %v470 = vshrl.u32 %v469, 7
    %v471 = vsub.s32 %v468, %v470
    %v472 = vrot.slane %v28, %v471
    %v474 = vunpack.c.l.s4 1983009808
    %v475 = vunpack.c.0.s8 %v474
    %v476 = vlaneseq
    %v477 = vshrl.u32 %v476, 7
    %v478 = vsub.s32 %v475, %v477
    %v479 = vrot.slane %v465, %v478
    %v480 = vcombine.high %v472, %v472
    %v481 = vcombine.high %v479, %v479
    %v482 = vcombine.high %v29, %v29
    %v484 = vunpack.c.l.s4 1983009808
    %v485 = vunpack.c.0.s8 %v484
    %v486 = vlaneseq
    %v487 = vshrl.u32 %v486, 7
    %v488 = vsub.s32 %v485, %v487
    %v489 = vrot.slane %v29, %v488
    %v491 = vunpack.c.l.s4 1983009808
    %v492 = vunpack.c.0.s8 %v491
    %v493 = vlaneseq
    %v494 = vshrl.u32 %v493, 7
    %v495 = vsub.s32 %v492, %v494
    %v496 = vrot.slane %v482, %v495
    %v497 = vcombine.high %v489, %v489
    %v498 = vcombine.high %v496, %v496
    %v499 = vcombine.high %v30, %v30
    %v501 = vunpack.c.l.s4 1983009808
    %v502 = vunpack.c.0.s8 %v501
    %v503 = vlaneseq
    %v504 = vshrl.u32 %v503, 7
    %v505 = vsub.s32 %v502, %v504
    %v506 = vrot.slane %v30, %v505
    %v508 = vunpack.c.l.s4 1983009808
    %v509 = vunpack.c.0.s8 %v508
    %v510 = vlaneseq
    %v511 = vshrl.u32 %v510, 7
    %v512 = vsub.s32 %v509, %v511
    %v513 = vrot.slane %v499, %v512
    %v514 = vcombine.high %v506, %v506
    %v515 = vcombine.high %v513, %v513
    %v516 = vcombine.high %v31, %v31
    %v518 = vunpack.c.l.s4 1983009808
    %v519 = vunpack.c.0.s8 %v518
    %v520 = vlaneseq
    %v521 = vshrl.u32 %v520, 7
    %v522 = vsub.s32 %v519, %v521
    %v523 = vrot.slane %v31, %v522
    %v525 = vunpack.c.l.s4 1983009808
    %v526 = vunpack.c.0.s8 %v525
    %v527 = vlaneseq
    %v528 = vshrl.u32 %v527, 7
    %v529 = vsub.s32 %v526, %v528
    %v530 = vrot.slane %v516, %v529
    %v531 = vcombine.high %v523, %v523
    %v532 = vcombine.high %v530, %v530
    %v533 = vcombine.high %v32, %v32
    %v535 = vunpack.c.l.s4 1983009808
    %v536 = vunpack.c.0.s8 %v535
    %v537 = vlaneseq
    %v538 = vshrl.u32 %v537, 7
    %v539 = vsub.s32 %v536, %v538
    %v540 = vrot.slane %v32, %v539
    %v542 = vunpack.c.l.s4 1983009808
    %v543 = vunpack.c.0.s8 %v542
    %v544 = vlaneseq
    %v545 = vshrl.u32 %v544, 7
    %v546 = vsub.s32 %v543, %v545
    %v547 = vrot.slane %v533, %v546
    %v548 = vcombine.high %v540, %v540
    %v549 = vcombine.high %v547, %v547
    %v551 = vunpack.c.l.s4 1983009808
    %v552 = vunpack.c.0.s8 %v551
    %v553 = vlaneseq
    %v554 = vshrl.u32 %v553, 7
    %v555 = vsub.s32 %v552, %v554
    %v556 = vrot.slane %v33, %v555
    %582 = vmatprep.subr.mxu0 0.0
    %583 = vmatpush1.msra.mxu0 %v49
    %584 = vmatprep.subr.mxu0 0.0
    %585 = vmatpush1.msra.mxu0 %v48
    %586 = vmatprep.subr.mxu0 0.0
    %587 = vmatpush1.msra.mxu0 %v47
    %588 = vmatprep.subr.mxu0 0.0
    %589 = vmatpush1.msra.mxu0 %v46
    %590 = vmatprep.subr.mxu0 0.0
    %591 = vmatpush1.msra.mxu0 %v45
    %592 = vmatprep.subr.mxu0 0.0
    %593 = vmatpush1.msra.mxu0 %v44
    %594 = vmatprep.subr.mxu0 0.0
    %595 = vmatpush1.msra.mxu0 %v43
    %596 = vmatprep.subr.mxu0 0.0
    %597 = vmatpush1.msra.mxu0 %v42
    %598 = vmatprep.subr.mxu0 0.0
    %599 = vmatpush1.msra.mxu0 %v41
    %600 = vmatprep.subr.mxu0 0.0
    %601 = vmatpush1.msra.mxu0 %v40
    %602 = vmatprep.subr.mxu0 0.0
    %603 = vmatpush1.msra.mxu0 %v39
    %604 = vmatprep.subr.mxu0 0.0
    %605 = vmatpush1.msra.mxu0 %v38
    %606 = vmatprep.subr.mxu0 0.0
    %607 = vmatpush1.msra.mxu0 %v37
    %608 = vmatprep.subr.mxu0 0.0
    %609 = vmatpush1.msra.mxu0 %v36
    %610 = vmatprep.subr.mxu0 0.0
    %611 = vmatpush1.msra.mxu0 %v35
    %612 = vmatprep.subr.mxu0 0.0
    %613 = vmatpush1.msra.mxu0 %v34
    %614 = vmatprep.subr.mxu0 0.0
    %615 = vmatpush2.msra.mxu0 %v65
    %616 = vmatprep.subr.mxu0 0.0
    %617 = vmatpush2.msra.mxu0 %v64
    %618 = vmatprep.subr.mxu0 0.0
    %619 = vmatpush2.msra.mxu0 %v63
    %620 = vmatprep.subr.mxu0 0.0
    %621 = vmatpush2.msra.mxu0 %v62
    %622 = vmatprep.subr.mxu0 0.0
    %623 = vmatpush2.msra.mxu0 %v61
    %624 = vmatprep.subr.mxu0 0.0
    %625 = vmatpush2.msra.mxu0 %v60
    %626 = vmatprep.subr.mxu0 0.0
    %627 = vmatpush2.msra.mxu0 %v59
    %628 = vmatprep.subr.mxu0 0.0
    %629 = vmatpush2.msra.mxu0 %v58
    %630 = vmatprep.subr.mxu0 0.0
    %631 = vmatpush2.msra.mxu0 %v57
    %632 = vmatprep.subr.mxu0 0.0
    %633 = vmatpush2.msra.mxu0 %v56
    %634 = vmatprep.subr.mxu0 0.0
    %635 = vmatpush2.msra.mxu0 %v55
    %636 = vmatprep.subr.mxu0 0.0
    %637 = vmatpush2.msra.mxu0 %v54
    %638 = vmatprep.subr.mxu0 0.0
    %639 = vmatpush2.msra.mxu0 %v53
    %640 = vmatprep.subr.mxu0 0.0
    %641 = vmatpush2.msra.mxu0 %v52
    %642 = vmatprep.subr.mxu0 0.0
    %643 = vmatpush2.msra.mxu0 %v51
    %644 = vmatprep.subr.mxu0 0.0
    %645 = vmatpush2.msra.mxu0 %v50
    %646 = vmatprep.mubr.f32.mxu0 %v463
    %647 = vmatmul.mubr.f32.gmra.mxu0 %v455
    %v648 = vpop.f32.mrf.mxu0
    %v649 = vadd.f32 %v439, %v648
    %v650 = vpop.f32.mrf.mxu0
    %651 = vdwg.mxu0
    %652 = vmatprep.subr.mxu0 0.0
    %653 = vmatpush1.msra.mxu0 %v81
    %654 = vmatprep.subr.mxu0 0.0
    %655 = vmatpush1.msra.mxu0 %v80
    %656 = vmatprep.subr.mxu0 0.0
    %657 = vmatpush1.msra.mxu0 %v79
    %658 = vmatprep.subr.mxu0 0.0
    %659 = vmatpush1.msra.mxu0 %v78
    %660 = vmatprep.subr.mxu0 0.0
    %661 = vmatpush1.msra.mxu0 %v77
    %662 = vmatprep.subr.mxu0 0.0
    %663 = vmatpush1.msra.mxu0 %v76
    %664 = vmatprep.subr.mxu0 0.0
    %665 = vmatpush1.msra.mxu0 %v75
    %666 = vmatprep.subr.mxu0 0.0
    %667 = vmatpush1.msra.mxu0 %v74
    %668 = vmatprep.subr.mxu0 0.0
    %669 = vmatpush1.msra.mxu0 %v73
    %670 = vmatprep.subr.mxu0 0.0
    %671 = vmatpush1.msra.mxu0 %v72
    %672 = vmatprep.subr.mxu0 0.0
    %673 = vmatpush1.msra.mxu0 %v71
    %674 = vmatprep.subr.mxu0 0.0
    %675 = vmatpush1.msra.mxu0 %v70
    %676 = vmatprep.subr.mxu0 0.0
    %677 = vmatpush1.msra.mxu0 %v69
    %678 = vmatprep.subr.mxu0 0.0
    %679 = vmatpush1.msra.mxu0 %v68
    %680 = vmatprep.subr.mxu0 0.0
    %681 = vmatpush1.msra.mxu0 %v67
    %682 = vmatprep.subr.mxu0 0.0
    %683 = vmatpush1.msra.mxu0 %v66
    %684 = vmatprep.subr.mxu0 0.0
    %685 = vmatpush2.msra.mxu0 %v97
    %686 = vmatprep.subr.mxu0 0.0
    %687 = vmatpush2.msra.mxu0 %v96
    %688 = vmatprep.subr.mxu0 0.0
    %689 = vmatpush2.msra.mxu0 %v95
    %690 = vmatprep.subr.mxu0 0.0
    %691 = vmatpush2.msra.mxu0 %v94
    %692 = vmatprep.subr.mxu0 0.0
    %693 = vmatpush2.msra.mxu0 %v93
    %694 = vmatprep.subr.mxu0 0.0
    %695 = vmatpush2.msra.mxu0 %v92
    %696 = vmatprep.subr.mxu0 0.0
    %697 = vmatpush2.msra.mxu0 %v91
    %698 = vmatprep.subr.mxu0 0.0
    %699 = vmatpush2.msra.mxu0 %v90
    %700 = vmatprep.subr.mxu0 0.0
    %701 = vmatpush2.msra.mxu0 %v89
    %702 = vmatprep.subr.mxu0 0.0
    %703 = vmatpush2.msra.mxu0 %v88
    %704 = vmatprep.subr.mxu0 0.0
    %705 = vmatpush2.msra.mxu0 %v87
    %706 = vmatprep.subr.mxu0 0.0
    %707 = vmatpush2.msra.mxu0 %v86
    %708 = vmatprep.subr.mxu0 0.0
    %709 = vmatpush2.msra.mxu0 %v85
    %710 = vmatprep.subr.mxu0 0.0
    %711 = vmatpush2.msra.mxu0 %v84
    %712 = vmatprep.subr.mxu0 0.0
    %713 = vmatpush2.msra.mxu0 %v83
    %714 = vmatprep.subr.mxu0 0.0
    %715 = vmatpush2.msra.mxu0 %v82
    %716 = vmatprep.mubr.f32.mxu0 %v464
    %717 = vmatmul.mubr.f32.gmra.mxu0 %v462
    %v718 = vpop.f32.mrf.mxu0
    %v719 = vadd.f32 %v649, %v718
    %v720 = vpop.f32.mrf.mxu0
    %721 = vdwg.mxu0
    %722 = vmatprep.subr.mxu0 0.0
    %723 = vmatpush1.msra.mxu0 %v113
    %724 = vmatprep.subr.mxu0 0.0
    %725 = vmatpush1.msra.mxu0 %v112
    %726 = vmatprep.subr.mxu0 0.0
    %727 = vmatpush1.msra.mxu0 %v111
    %728 = vmatprep.subr.mxu0 0.0
    %729 = vmatpush1.msra.mxu0 %v110
    %730 = vmatprep.subr.mxu0 0.0
    %731 = vmatpush1.msra.mxu0 %v109
    %732 = vmatprep.subr.mxu0 0.0
    %733 = vmatpush1.msra.mxu0 %v108
    %734 = vmatprep.subr.mxu0 0.0
    %735 = vmatpush1.msra.mxu0 %v107
    %736 = vmatprep.subr.mxu0 0.0
    %737 = vmatpush1.msra.mxu0 %v106
    %738 = vmatprep.subr.mxu0 0.0
    %739 = vmatpush1.msra.mxu0 %v105
    %740 = vmatprep.subr.mxu0 0.0
    %741 = vmatpush1.msra.mxu0 %v104
    %742 = vmatprep.subr.mxu0 0.0
    %743 = vmatpush1.msra.mxu0 %v103
    %744 = vmatprep.subr.mxu0 0.0
    %745 = vmatpush1.msra.mxu0 %v102
    %746 = vmatprep.subr.mxu0 0.0
    %747 = vmatpush1.msra.mxu0 %v101
    %748 = vmatprep.subr.mxu0 0.0
    %749 = vmatpush1.msra.mxu0 %v100
    %750 = vmatprep.subr.mxu0 0.0
    %751 = vmatpush1.msra.mxu0 %v99
    %752 = vmatprep.subr.mxu0 0.0
    %753 = vmatpush1.msra.mxu0 %v98
    %754 = vmatprep.subr.mxu0 0.0
    %755 = vmatpush2.msra.mxu0 %v129
    %756 = vmatprep.subr.mxu0 0.0
    %757 = vmatpush2.msra.mxu0 %v128
    %758 = vmatprep.subr.mxu0 0.0
    %759 = vmatpush2.msra.mxu0 %v127
    %760 = vmatprep.subr.mxu0 0.0
    %761 = vmatpush2.msra.mxu0 %v126
    %762 = vmatprep.subr.mxu0 0.0
    %763 = vmatpush2.msra.mxu0 %v125
    %764 = vmatprep.subr.mxu0 0.0
    %765 = vmatpush2.msra.mxu0 %v124
    %766 = vmatprep.subr.mxu0 0.0
    %767 = vmatpush2.msra.mxu0 %v123
    %768 = vmatprep.subr.mxu0 0.0
    %769 = vmatpush2.msra.mxu0 %v122
    %770 = vmatprep.subr.mxu0 0.0
    %771 = vmatpush2.msra.mxu0 %v121
    %772 = vmatprep.subr.mxu0 0.0
    %773 = vmatpush2.msra.mxu0 %v120
    %774 = vmatprep.subr.mxu0 0.0
    %775 = vmatpush2.msra.mxu0 %v119
    %776 = vmatprep.subr.mxu0 0.0
    %777 = vmatpush2.msra.mxu0 %v118
    %778 = vmatprep.subr.mxu0 0.0
    %779 = vmatpush2.msra.mxu0 %v117
    %780 = vmatprep.subr.mxu0 0.0
    %781 = vmatpush2.msra.mxu0 %v116
    %782 = vmatprep.subr.mxu0 0.0
    %783 = vmatpush2.msra.mxu0 %v115
    %784 = vmatprep.subr.mxu0 0.0
    %785 = vmatpush2.msra.mxu0 %v114
    %786 = vmatprep.mubr.f32.mxu0 %v480
    %787 = vmatmul.mubr.f32.gmra.mxu0 %v472
    %v788 = vpop.f32.mrf.mxu0
    %v789 = vadd.f32 %v719, %v788
    %v790 = vpop.f32.mrf.mxu0
    %791 = vdwg.mxu0
    %792 = vmatprep.subr.mxu0 0.0
    %793 = vmatpush1.msra.mxu0 %v145
    %794 = vmatprep.subr.mxu0 0.0
    %795 = vmatpush1.msra.mxu0 %v144
    %796 = vmatprep.subr.mxu0 0.0
    %797 = vmatpush1.msra.mxu0 %v143
    %798 = vmatprep.subr.mxu0 0.0
    %799 = vmatpush1.msra.mxu0 %v142
    %800 = vmatprep.subr.mxu0 0.0
    %801 = vmatpush1.msra.mxu0 %v141
    %802 = vmatprep.subr.mxu0 0.0
    %803 = vmatpush1.msra.mxu0 %v140
    %804 = vmatprep.subr.mxu0 0.0
    %805 = vmatpush1.msra.mxu0 %v139
    %806 = vmatprep.subr.mxu0 0.0
    %807 = vmatpush1.msra.mxu0 %v138
    %808 = vmatprep.subr.mxu0 0.0
    %809 = vmatpush1.msra.mxu0 %v137
    %810 = vmatprep.subr.mxu0 0.0
    %811 = vmatpush1.msra.mxu0 %v136
    %812 = vmatprep.subr.mxu0 0.0
    %813 = vmatpush1.msra.mxu0 %v135
    %814 = vmatprep.subr.mxu0 0.0
    %815 = vmatpush1.msra.mxu0 %v134
    %816 = vmatprep.subr.mxu0 0.0
    %817 = vmatpush1.msra.mxu0 %v133
    %818 = vmatprep.subr.mxu0 0.0
    %819 = vmatpush1.msra.mxu0 %v132
    %820 = vmatprep.subr.mxu0 0.0
    %821 = vmatpush1.msra.mxu0 %v131
    %822 = vmatprep.subr.mxu0 0.0
    %823 = vmatpush1.msra.mxu0 %v130
    %824 = vmatprep.subr.mxu0 0.0
    %825 = vmatpush2.msra.mxu0 %v161
    %826 = vmatprep.subr.mxu0 0.0
    %827 = vmatpush2.msra.mxu0 %v160
    %828 = vmatprep.subr.mxu0 0.0
    %829 = vmatpush2.msra.mxu0 %v159
    %830 = vmatprep.subr.mxu0 0.0
    %831 = vmatpush2.msra.mxu0 %v158
    %832 = vmatprep.subr.mxu0 0.0
    %833 = vmatpush2.msra.mxu0 %v157
    %834 = vmatprep.subr.mxu0 0.0
    %835 = vmatpush2.msra.mxu0 %v156
    %836 = vmatprep.subr.mxu0 0.0
    %837 = vmatpush2.msra.mxu0 %v155
    %838 = vmatprep.subr.mxu0 0.0
    %839 = vmatpush2.msra.mxu0 %v154
    %840 = vmatprep.subr.mxu0 0.0
    %841 = vmatpush2.msra.mxu0 %v153
    %842 = vmatprep.subr.mxu0 0.0
    %843 = vmatpush2.msra.mxu0 %v152
    %844 = vmatprep.subr.mxu0 0.0
    %845 = vmatpush2.msra.mxu0 %v151
    %846 = vmatprep.subr.mxu0 0.0
    %847 = vmatpush2.msra.mxu0 %v150
    %848 = vmatprep.subr.mxu0 0.0
    %849 = vmatpush2.msra.mxu0 %v149
    %850 = vmatprep.subr.mxu0 0.0
    %851 = vmatpush2.msra.mxu0 %v148
    %852 = vmatprep.subr.mxu0 0.0
    %853 = vmatpush2.msra.mxu0 %v147
    %854 = vmatprep.subr.mxu0 0.0
    %855 = vmatpush2.msra.mxu0 %v146
    %856 = vmatprep.mubr.f32.mxu0 %v481
    %857 = vmatmul.mubr.f32.gmra.mxu0 %v479
    %v858 = vpop.f32.mrf.mxu0
    %v859 = vadd.f32 %v789, %v858
    %v860 = vpop.f32.mrf.mxu0
    %861 = vdwg.mxu0
    %862 = vmatprep.subr.mxu0 0.0
    %863 = vmatpush1.msra.mxu0 %v177
    %864 = vmatprep.subr.mxu0 0.0
    %865 = vmatpush1.msra.mxu0 %v176
    %866 = vmatprep.subr.mxu0 0.0
    %867 = vmatpush1.msra.mxu0 %v175
    %868 = vmatprep.subr.mxu0 0.0
    %869 = vmatpush1.msra.mxu0 %v174
    %870 = vmatprep.subr.mxu0 0.0
    %871 = vmatpush1.msra.mxu0 %v173
    %872 = vmatprep.subr.mxu0 0.0
    %873 = vmatpush1.msra.mxu0 %v172
    %874 = vmatprep.subr.mxu0 0.0
    %875 = vmatpush1.msra.mxu0 %v171
    %876 = vmatprep.subr.mxu0 0.0
    %877 = vmatpush1.msra.mxu0 %v170
    %878 = vmatprep.subr.mxu0 0.0
    %879 = vmatpush1.msra.mxu0 %v169
    %880 = vmatprep.subr.mxu0 0.0
    %881 = vmatpush1.msra.mxu0 %v168
    %882 = vmatprep.subr.mxu0 0.0
    %883 = vmatpush1.msra.mxu0 %v167
    %884 = vmatprep.subr.mxu0 0.0
    %885 = vmatpush1.msra.mxu0 %v166
    %886 = vmatprep.subr.mxu0 0.0
    %887 = vmatpush1.msra.mxu0 %v165
    %888 = vmatprep.subr.mxu0 0.0
    %889 = vmatpush1.msra.mxu0 %v164
    %890 = vmatprep.subr.mxu0 0.0
    %891 = vmatpush1.msra.mxu0 %v163
    %892 = vmatprep.subr.mxu0 0.0
    %893 = vmatpush1.msra.mxu0 %v162
    %894 = vmatprep.subr.mxu0 0.0
    %895 = vmatpush2.msra.mxu0 %v193
    %896 = vmatprep.subr.mxu0 0.0
    %897 = vmatpush2.msra.mxu0 %v192
    %898 = vmatprep.subr.mxu0 0.0
    %899 = vmatpush2.msra.mxu0 %v191
    %900 = vmatprep.subr.mxu0 0.0
    %901 = vmatpush2.msra.mxu0 %v190
    %902 = vmatprep.subr.mxu0 0.0
    %903 = vmatpush2.msra.mxu0 %v189
    %904 = vmatprep.subr.mxu0 0.0
    %905 = vmatpush2.msra.mxu0 %v188
    %906 = vmatprep.subr.mxu0 0.0
    %907 = vmatpush2.msra.mxu0 %v187
    %908 = vmatprep.subr.mxu0 0.0
    %909 = vmatpush2.msra.mxu0 %v186
    %910 = vmatprep.subr.mxu0 0.0
    %911 = vmatpush2.msra.mxu0 %v185
    %912 = vmatprep.subr.mxu0 0.0
    %913 = vmatpush2.msra.mxu0 %v184
    %914 = vmatprep.subr.mxu0 0.0
    %915 = vmatpush2.msra.mxu0 %v183
    %916 = vmatprep.subr.mxu0 0.0
    %917 = vmatpush2.msra.mxu0 %v182
    %918 = vmatprep.subr.mxu0 0.0
    %919 = vmatpush2.msra.mxu0 %v181
    %920 = vmatprep.subr.mxu0 0.0
    %921 = vmatpush2.msra.mxu0 %v180
    %922 = vmatprep.subr.mxu0 0.0
    %923 = vmatpush2.msra.mxu0 %v179
    %924 = vmatprep.subr.mxu0 0.0
    %925 = vmatpush2.msra.mxu0 %v178
    %926 = vmatprep.mubr.f32.mxu0 %v497
    %927 = vmatmul.mubr.f32.gmra.mxu0 %v489
    %v928 = vpop.f32.mrf.mxu0
    %v929 = vadd.f32 %v859, %v928
    %v930 = vpop.f32.mrf.mxu0
    %931 = vdwg.mxu0
    %932 = vmatprep.subr.mxu0 0.0
    %933 = vmatpush1.msra.mxu0 %v209
    %934 = vmatprep.subr.mxu0 0.0
    %935 = vmatpush1.msra.mxu0 %v208
    %936 = vmatprep.subr.mxu0 0.0
    %937 = vmatpush1.msra.mxu0 %v207
    %938 = vmatprep.subr.mxu0 0.0
    %939 = vmatpush1.msra.mxu0 %v206
    %940 = vmatprep.subr.mxu0 0.0
    %941 = vmatpush1.msra.mxu0 %v205
    %942 = vmatprep.subr.mxu0 0.0
    %943 = vmatpush1.msra.mxu0 %v204
    %944 = vmatprep.subr.mxu0 0.0
    %945 = vmatpush1.msra.mxu0 %v203
    %946 = vmatprep.subr.mxu0 0.0
    %947 = vmatpush1.msra.mxu0 %v202
    %948 = vmatprep.subr.mxu0 0.0
    %949 = vmatpush1.msra.mxu0 %v201
    %950 = vmatprep.subr.mxu0 0.0
    %951 = vmatpush1.msra.mxu0 %v200
    %952 = vmatprep.subr.mxu0 0.0
    %953 = vmatpush1.msra.mxu0 %v199
    %954 = vmatprep.subr.mxu0 0.0
    %955 = vmatpush1.msra.mxu0 %v198
    %956 = vmatprep.subr.mxu0 0.0
    %957 = vmatpush1.msra.mxu0 %v197
    %958 = vmatprep.subr.mxu0 0.0
    %959 = vmatpush1.msra.mxu0 %v196
    %960 = vmatprep.subr.mxu0 0.0
    %961 = vmatpush1.msra.mxu0 %v195
    %962 = vmatprep.subr.mxu0 0.0
    %963 = vmatpush1.msra.mxu0 %v194
    %964 = vmatprep.subr.mxu0 0.0
    %965 = vmatpush2.msra.mxu0 %v225
    %966 = vmatprep.subr.mxu0 0.0
    %967 = vmatpush2.msra.mxu0 %v224
    %968 = vmatprep.subr.mxu0 0.0
    %969 = vmatpush2.msra.mxu0 %v223
    %970 = vmatprep.subr.mxu0 0.0
    %971 = vmatpush2.msra.mxu0 %v222
    %972 = vmatprep.subr.mxu0 0.0
    %973 = vmatpush2.msra.mxu0 %v221
    %974 = vmatprep.subr.mxu0 0.0
    %975 = vmatpush2.msra.mxu0 %v220
    %976 = vmatprep.subr.mxu0 0.0
    %977 = vmatpush2.msra.mxu0 %v219
    %978 = vmatprep.subr.mxu0 0.0
    %979 = vmatpush2.msra.mxu0 %v218
    %980 = vmatprep.subr.mxu0 0.0
    %981 = vmatpush2.msra.mxu0 %v217
    %982 = vmatprep.subr.mxu0 0.0
    %983 = vmatpush2.msra.mxu0 %v216
    %984 = vmatprep.subr.mxu0 0.0
    %985 = vmatpush2.msra.mxu0 %v215
    %986 = vmatprep.subr.mxu0 0.0
    %987 = vmatpush2.msra.mxu0 %v214
    %988 = vmatprep.subr.mxu0 0.0
    %989 = vmatpush2.msra.mxu0 %v213
    %990 = vmatprep.subr.mxu0 0.0
    %991 = vmatpush2.msra.mxu0 %v212
    %992 = vmatprep.subr.mxu0 0.0
    %993 = vmatpush2.msra.mxu0 %v211
    %994 = vmatprep.subr.mxu0 0.0
    %995 = vmatpush2.msra.mxu0 %v210
    %996 = vmatprep.mubr.f32.mxu0 %v498
    %997 = vmatmul.mubr.f32.gmra.mxu0 %v496
    %v998 = vpop.f32.mrf.mxu0
    %v999 = vadd.f32 %v929, %v998
    %v1000 = vpop.f32.mrf.mxu0
    %1001 = vdwg.mxu0
    %1002 = vmatprep.subr.mxu0 0.0
    %1003 = vmatpush1.msra.mxu0 %v241
    %1004 = vmatprep.subr.mxu0 0.0
    %1005 = vmatpush1.msra.mxu0 %v240
    %1006 = vmatprep.subr.mxu0 0.0
    %1007 = vmatpush1.msra.mxu0 %v239
    %1008 = vmatprep.subr.mxu0 0.0
    %1009 = vmatpush1.msra.mxu0 %v238
    %1010 = vmatprep.subr.mxu0 0.0
    %1011 = vmatpush1.msra.mxu0 %v237
    %1012 = vmatprep.subr.mxu0 0.0
    %1013 = vmatpush1.msra.mxu0 %v236
    %1014 = vmatprep.subr.mxu0 0.0
    %1015 = vmatpush1.msra.mxu0 %v235
    %1016 = vmatprep.subr.mxu0 0.0
    %1017 = vmatpush1.msra.mxu0 %v234
    %1018 = vmatprep.subr.mxu0 0.0
    %1019 = vmatpush1.msra.mxu0 %v233
    %1020 = vmatprep.subr.mxu0 0.0
    %1021 = vmatpush1.msra.mxu0 %v232
    %1022 = vmatprep.subr.mxu0 0.0
    %1023 = vmatpush1.msra.mxu0 %v231
    %1024 = vmatprep.subr.mxu0 0.0
    %1025 = vmatpush1.msra.mxu0 %v230
    %1026 = vmatprep.subr.mxu0 0.0
    %1027 = vmatpush1.msra.mxu0 %v229
    %1028 = vmatprep.subr.mxu0 0.0
    %1029 = vmatpush1.msra.mxu0 %v228
    %1030 = vmatprep.subr.mxu0 0.0
    %1031 = vmatpush1.msra.mxu0 %v227
    %1032 = vmatprep.subr.mxu0 0.0
    %1033 = vmatpush1.msra.mxu0 %v226
    %1034 = vmatprep.subr.mxu0 0.0
    %1035 = vmatpush2.msra.mxu0 %v257
    %1036 = vmatprep.subr.mxu0 0.0
    %1037 = vmatpush2.msra.mxu0 %v256
    %1038 = vmatprep.subr.mxu0 0.0
    %1039 = vmatpush2.msra.mxu0 %v255
    %1040 = vmatprep.subr.mxu0 0.0
    %1041 = vmatpush2.msra.mxu0 %v254
    %1042 = vmatprep.subr.mxu0 0.0
    %1043 = vmatpush2.msra.mxu0 %v253
    %1044 = vmatprep.subr.mxu0 0.0
    %1045 = vmatpush2.msra.mxu0 %v252
    %1046 = vmatprep.subr.mxu0 0.0
    %1047 = vmatpush2.msra.mxu0 %v251
    %1048 = vmatprep.subr.mxu0 0.0
    %1049 = vmatpush2.msra.mxu0 %v250
    %1050 = vmatprep.subr.mxu0 0.0
    %1051 = vmatpush2.msra.mxu0 %v249
    %1052 = vmatprep.subr.mxu0 0.0
    %1053 = vmatpush2.msra.mxu0 %v248
    %1054 = vmatprep.subr.mxu0 0.0
    %1055 = vmatpush2.msra.mxu0 %v247
    %1056 = vmatprep.subr.mxu0 0.0
    %1057 = vmatpush2.msra.mxu0 %v246
    %1058 = vmatprep.subr.mxu0 0.0
    %1059 = vmatpush2.msra.mxu0 %v245
    %1060 = vmatprep.subr.mxu0 0.0
    %1061 = vmatpush2.msra.mxu0 %v244
    %1062 = vmatprep.subr.mxu0 0.0
    %1063 = vmatpush2.msra.mxu0 %v243
    %1064 = vmatprep.subr.mxu0 0.0
    %1065 = vmatpush2.msra.mxu0 %v242
    %1066 = vmatprep.mubr.f32.mxu0 %v514
    %1067 = vmatmul.mubr.f32.gmra.mxu0 %v506
    %v1068 = vpop.f32.mrf.mxu0
    %v1069 = vadd.f32 %v999, %v1068
    %v1070 = vpop.f32.mrf.mxu0
    %1071 = vdwg.mxu0
    %1072 = vmatprep.subr.mxu0 0.0
    %1073 = vmatpush1.msra.mxu0 %v273
    %1074 = vmatprep.subr.mxu0 0.0
    %1075 = vmatpush1.msra.mxu0 %v272
    %1076 = vmatprep.subr.mxu0 0.0
    %1077 = vmatpush1.msra.mxu0 %v271
    %1078 = vmatprep.subr.mxu0 0.0
    %1079 = vmatpush1.msra.mxu0 %v270
    %1080 = vmatprep.subr.mxu0 0.0
    %1081 = vmatpush1.msra.mxu0 %v269
    %1082 = vmatprep.subr.mxu0 0.0
    %1083 = vmatpush1.msra.mxu0 %v268
    %1084 = vmatprep.subr.mxu0 0.0
    %1085 = vmatpush1.msra.mxu0 %v267
    %1086 = vmatprep.subr.mxu0 0.0
    %1087 = vmatpush1.msra.mxu0 %v266
    %1088 = vmatprep.subr.mxu0 0.0
    %1089 = vmatpush1.msra.mxu0 %v265
    %1090 = vmatprep.subr.mxu0 0.0
    %1091 = vmatpush1.msra.mxu0 %v264
    %1092 = vmatprep.subr.mxu0 0.0
    %1093 = vmatpush1.msra.mxu0 %v263
    %1094 = vmatprep.subr.mxu0 0.0
    %1095 = vmatpush1.msra.mxu0 %v262
    %1096 = vmatprep.subr.mxu0 0.0
    %1097 = vmatpush1.msra.mxu0 %v261
    %1098 = vmatprep.subr.mxu0 0.0
    %1099 = vmatpush1.msra.mxu0 %v260
    %1100 = vmatprep.subr.mxu0 0.0
    %1101 = vmatpush1.msra.mxu0 %v259
    %1102 = vmatprep.subr.mxu0 0.0
    %1103 = vmatpush1.msra.mxu0 %v258
    %1104 = vmatprep.subr.mxu0 0.0
    %1105 = vmatpush2.msra.mxu0 %v289
    %1106 = vmatprep.subr.mxu0 0.0
    %1107 = vmatpush2.msra.mxu0 %v288
    %1108 = vmatprep.subr.mxu0 0.0
    %1109 = vmatpush2.msra.mxu0 %v287
    %1110 = vmatprep.subr.mxu0 0.0
    %1111 = vmatpush2.msra.mxu0 %v286
    %1112 = vmatprep.subr.mxu0 0.0
    %1113 = vmatpush2.msra.mxu0 %v285
    %1114 = vmatprep.subr.mxu0 0.0
    %1115 = vmatpush2.msra.mxu0 %v284
    %1116 = vmatprep.subr.mxu0 0.0
    %1117 = vmatpush2.msra.mxu0 %v283
    %1118 = vmatprep.subr.mxu0 0.0
    %1119 = vmatpush2.msra.mxu0 %v282
    %1120 = vmatprep.subr.mxu0 0.0
    %1121 = vmatpush2.msra.mxu0 %v281
    %1122 = vmatprep.subr.mxu0 0.0
    %1123 = vmatpush2.msra.mxu0 %v280
    %1124 = vmatprep.subr.mxu0 0.0
    %1125 = vmatpush2.msra.mxu0 %v279
    %1126 = vmatprep.subr.mxu0 0.0
    %1127 = vmatpush2.msra.mxu0 %v278
    %1128 = vmatprep.subr.mxu0 0.0
    %1129 = vmatpush2.msra.mxu0 %v277
    %1130 = vmatprep.subr.mxu0 0.0
    %1131 = vmatpush2.msra.mxu0 %v276
    %1132 = vmatprep.subr.mxu0 0.0
    %1133 = vmatpush2.msra.mxu0 %v275
    %1134 = vmatprep.subr.mxu0 0.0
    %1135 = vmatpush2.msra.mxu0 %v274
    %1136 = vmatprep.mubr.f32.mxu0 %v515
    %1137 = vmatmul.mubr.f32.gmra.mxu0 %v513
    %v1138 = vpop.f32.mrf.mxu0
    %v1139 = vadd.f32 %v1069, %v1138
    %v1140 = vpop.f32.mrf.mxu0
    %1141 = vdwg.mxu0
    %1142 = vmatprep.subr.mxu0 0.0
    %1143 = vmatpush1.msra.mxu0 %v305
    %1144 = vmatprep.subr.mxu0 0.0
    %1145 = vmatpush1.msra.mxu0 %v304
    %1146 = vmatprep.subr.mxu0 0.0
    %1147 = vmatpush1.msra.mxu0 %v303
    %1148 = vmatprep.subr.mxu0 0.0
    %1149 = vmatpush1.msra.mxu0 %v302
    %1150 = vmatprep.subr.mxu0 0.0
    %1151 = vmatpush1.msra.mxu0 %v301
    %1152 = vmatprep.subr.mxu0 0.0
    %1153 = vmatpush1.msra.mxu0 %v300
    %1154 = vmatprep.subr.mxu0 0.0
    %1155 = vmatpush1.msra.mxu0 %v299
    %1156 = vmatprep.subr.mxu0 0.0
    %1157 = vmatpush1.msra.mxu0 %v298
    %1158 = vmatprep.subr.mxu0 0.0
    %1159 = vmatpush1.msra.mxu0 %v297
    %1160 = vmatprep.subr.mxu0 0.0
    %1161 = vmatpush1.msra.mxu0 %v296
    %1162 = vmatprep.subr.mxu0 0.0
    %1163 = vmatpush1.msra.mxu0 %v295
    %1164 = vmatprep.subr.mxu0 0.0
    %1165 = vmatpush1.msra.mxu0 %v294
    %1166 = vmatprep.subr.mxu0 0.0
    %1167 = vmatpush1.msra.mxu0 %v293
    %1168 = vmatprep.subr.mxu0 0.0
    %1169 = vmatpush1.msra.mxu0 %v292
    %1170 = vmatprep.subr.mxu0 0.0
    %1171 = vmatpush1.msra.mxu0 %v291
    %1172 = vmatprep.subr.mxu0 0.0
    %1173 = vmatpush1.msra.mxu0 %v290
    %1174 = vmatprep.subr.mxu0 0.0
    %1175 = vmatpush2.msra.mxu0 %v321
    %1176 = vmatprep.subr.mxu0 0.0
    %1177 = vmatpush2.msra.mxu0 %v320
    %1178 = vmatprep.subr.mxu0 0.0
    %1179 = vmatpush2.msra.mxu0 %v319
    %1180 = vmatprep.subr.mxu0 0.0
    %1181 = vmatpush2.msra.mxu0 %v318
    %1182 = vmatprep.subr.mxu0 0.0
    %1183 = vmatpush2.msra.mxu0 %v317
    %1184 = vmatprep.subr.mxu0 0.0
    %1185 = vmatpush2.msra.mxu0 %v316
    %1186 = vmatprep.subr.mxu0 0.0
    %1187 = vmatpush2.msra.mxu0 %v315
    %1188 = vmatprep.subr.mxu0 0.0
    %1189 = vmatpush2.msra.mxu0 %v314
    %1190 = vmatprep.subr.mxu0 0.0
    %1191 = vmatpush2.msra.mxu0 %v313
    %1192 = vmatprep.subr.mxu0 0.0
    %1193 = vmatpush2.msra.mxu0 %v312
    %1194 = vmatprep.subr.mxu0 0.0
    %1195 = vmatpush2.msra.mxu0 %v311
    %1196 = vmatprep.subr.mxu0 0.0
    %1197 = vmatpush2.msra.mxu0 %v310
    %1198 = vmatprep.subr.mxu0 0.0
    %1199 = vmatpush2.msra.mxu0 %v309
    %1200 = vmatprep.subr.mxu0 0.0
    %1201 = vmatpush2.msra.mxu0 %v308
    %1202 = vmatprep.subr.mxu0 0.0
    %1203 = vmatpush2.msra.mxu0 %v307
    %1204 = vmatprep.subr.mxu0 0.0
    %1205 = vmatpush2.msra.mxu0 %v306
    %1206 = vmatprep.mubr.f32.mxu0 %v531
    %1207 = vmatmul.mubr.f32.gmra.mxu0 %v523
    %v1208 = vpop.f32.mrf.mxu0
    %v1209 = vadd.f32 %v1139, %v1208
    %v1210 = vpop.f32.mrf.mxu0
    %1211 = vdwg.mxu0
    %1212 = vmatprep.subr.mxu0 0.0
    %1213 = vmatpush1.msra.mxu0 %v337
    %1214 = vmatprep.subr.mxu0 0.0
    %1215 = vmatpush1.msra.mxu0 %v336
    %1216 = vmatprep.subr.mxu0 0.0
    %1217 = vmatpush1.msra.mxu0 %v335
    %1218 = vmatprep.subr.mxu0 0.0
    %1219 = vmatpush1.msra.mxu0 %v334
    %1220 = vmatprep.subr.mxu0 0.0
    %1221 = vmatpush1.msra.mxu0 %v333
    %1222 = vmatprep.subr.mxu0 0.0
    %1223 = vmatpush1.msra.mxu0 %v332
    %1224 = vmatprep.subr.mxu0 0.0
    %1225 = vmatpush1.msra.mxu0 %v331
    %1226 = vmatprep.subr.mxu0 0.0
    %1227 = vmatpush1.msra.mxu0 %v330
    %1228 = vmatprep.subr.mxu0 0.0
    %1229 = vmatpush1.msra.mxu0 %v329
    %1230 = vmatprep.subr.mxu0 0.0
    %1231 = vmatpush1.msra.mxu0 %v328
    %1232 = vmatprep.subr.mxu0 0.0
    %1233 = vmatpush1.msra.mxu0 %v327
    %1234 = vmatprep.subr.mxu0 0.0
    %1235 = vmatpush1.msra.mxu0 %v326
    %1236 = vmatprep.subr.mxu0 0.0
    %1237 = vmatpush1.msra.mxu0 %v325
    %1238 = vmatprep.subr.mxu0 0.0
    %1239 = vmatpush1.msra.mxu0 %v324
    %1240 = vmatprep.subr.mxu0 0.0
    %1241 = vmatpush1.msra.mxu0 %v323
    %1242 = vmatprep.subr.mxu0 0.0
    %1243 = vmatpush1.msra.mxu0 %v322
    %1244 = vmatprep.subr.mxu0 0.0
    %1245 = vmatpush2.msra.mxu0 %v353
    %1246 = vmatprep.subr.mxu0 0.0
    %1247 = vmatpush2.msra.mxu0 %v352
    %1248 = vmatprep.subr.mxu0 0.0
    %1249 = vmatpush2.msra.mxu0 %v351
    %1250 = vmatprep.subr.mxu0 0.0
    %1251 = vmatpush2.msra.mxu0 %v350
    %1252 = vmatprep.subr.mxu0 0.0
    %1253 = vmatpush2.msra.mxu0 %v349
    %1254 = vmatprep.subr.mxu0 0.0
    %1255 = vmatpush2.msra.mxu0 %v348
    %1256 = vmatprep.subr.mxu0 0.0
    %1257 = vmatpush2.msra.mxu0 %v347
    %1258 = vmatprep.subr.mxu0 0.0
    %1259 = vmatpush2.msra.mxu0 %v346
    %1260 = vmatprep.subr.mxu0 0.0
    %1261 = vmatpush2.msra.mxu0 %v345
    %1262 = vmatprep.subr.mxu0 0.0
    %1263 = vmatpush2.msra.mxu0 %v344
    %1264 = vmatprep.subr.mxu0 0.0
    %1265 = vmatpush2.msra.mxu0 %v343
    %1266 = vmatprep.subr.mxu0 0.0
    %1267 = vmatpush2.msra.mxu0 %v342
    %1268 = vmatprep.subr.mxu0 0.0
    %1269 = vmatpush2.msra.mxu0 %v341
    %1270 = vmatprep.subr.mxu0 0.0
    %1271 = vmatpush2.msra.mxu0 %v340
    %1272 = vmatprep.subr.mxu0 0.0
    %1273 = vmatpush2.msra.mxu0 %v339
    %1274 = vmatprep.subr.mxu0 0.0
    %1275 = vmatpush2.msra.mxu0 %v338
    %1276 = vmatprep.mubr.f32.mxu0 %v532
    %1277 = vmatmul.mubr.f32.gmra.mxu0 %v530
    %v1278 = vpop.f32.mrf.mxu0
    %v1279 = vadd.f32 %v1209, %v1278
    %v1280 = vpop.f32.mrf.mxu0
    %1281 = vdwg.mxu0
    %1282 = vmatprep.subr.mxu0 0.0
    %1283 = vmatpush1.msra.mxu0 %v369
    %1284 = vmatprep.subr.mxu0 0.0
    %1285 = vmatpush1.msra.mxu0 %v368
    %1286 = vmatprep.subr.mxu0 0.0
    %1287 = vmatpush1.msra.mxu0 %v367
    %1288 = vmatprep.subr.mxu0 0.0
    %1289 = vmatpush1.msra.mxu0 %v366
    %1290 = vmatprep.subr.mxu0 0.0
    %1291 = vmatpush1.msra.mxu0 %v365
    %1292 = vmatprep.subr.mxu0 0.0
    %1293 = vmatpush1.msra.mxu0 %v364
    %1294 = vmatprep.subr.mxu0 0.0
    %1295 = vmatpush1.msra.mxu0 %v363
    %1296 = vmatprep.subr.mxu0 0.0
    %1297 = vmatpush1.msra.mxu0 %v362
    %1298 = vmatprep.subr.mxu0 0.0
    %1299 = vmatpush1.msra.mxu0 %v361
    %1300 = vmatprep.subr.mxu0 0.0
    %1301 = vmatpush1.msra.mxu0 %v360
    %1302 = vmatprep.subr.mxu0 0.0
    %1303 = vmatpush1.msra.mxu0 %v359
    %1304 = vmatprep.subr.mxu0 0.0
    %1305 = vmatpush1.msra.mxu0 %v358
    %1306 = vmatprep.subr.mxu0 0.0
    %1307 = vmatpush1.msra.mxu0 %v357
    %1308 = vmatprep.subr.mxu0 0.0
    %1309 = vmatpush1.msra.mxu0 %v356
    %1310 = vmatprep.subr.mxu0 0.0
    %1311 = vmatpush1.msra.mxu0 %v355
    %1312 = vmatprep.subr.mxu0 0.0
    %1313 = vmatpush1.msra.mxu0 %v354
    %1314 = vmatprep.subr.mxu0 0.0
    %1315 = vmatpush2.msra.mxu0 %v385
    %1316 = vmatprep.subr.mxu0 0.0
    %1317 = vmatpush2.msra.mxu0 %v384
    %1318 = vmatprep.subr.mxu0 0.0
    %1319 = vmatpush2.msra.mxu0 %v383
    %1320 = vmatprep.subr.mxu0 0.0
    %1321 = vmatpush2.msra.mxu0 %v382
    %1322 = vmatprep.subr.mxu0 0.0
    %1323 = vmatpush2.msra.mxu0 %v381
    %1324 = vmatprep.subr.mxu0 0.0
    %1325 = vmatpush2.msra.mxu0 %v380
    %1326 = vmatprep.subr.mxu0 0.0
    %1327 = vmatpush2.msra.mxu0 %v379
    %1328 = vmatprep.subr.mxu0 0.0
    %1329 = vmatpush2.msra.mxu0 %v378
    %1330 = vmatprep.subr.mxu0 0.0
    %1331 = vmatpush2.msra.mxu0 %v377
    %1332 = vmatprep.subr.mxu0 0.0
    %1333 = vmatpush2.msra.mxu0 %v376
    %1334 = vmatprep.subr.mxu0 0.0
    %1335 = vmatpush2.msra.mxu0 %v375
    %1336 = vmatprep.subr.mxu0 0.0
    %1337 = vmatpush2.msra.mxu0 %v374
    %1338 = vmatprep.subr.mxu0 0.0
    %1339 = vmatpush2.msra.mxu0 %v373
    %1340 = vmatprep.subr.mxu0 0.0
    %1341 = vmatpush2.msra.mxu0 %v372
    %1342 = vmatprep.subr.mxu0 0.0
    %1343 = vmatpush2.msra.mxu0 %v371
    %1344 = vmatprep.subr.mxu0 0.0
    %1345 = vmatpush2.msra.mxu0 %v370
    %1346 = vmatprep.mubr.f32.mxu0 %v548
    %1347 = vmatmul.mubr.f32.gmra.mxu0 %v540
    %v1348 = vpop.f32.mrf.mxu0
    %v1349 = vadd.f32 %v1279, %v1348
    %v1350 = vpop.f32.mrf.mxu0
    %1351 = vdwg.mxu0
    %1352 = vmatprep.subr.mxu0 0.0
    %1353 = vmatpush1.msra.mxu0 %v401
    %1354 = vmatprep.subr.mxu0 0.0
    %1355 = vmatpush1.msra.mxu0 %v400
    %1356 = vmatprep.subr.mxu0 0.0
    %1357 = vmatpush1.msra.mxu0 %v399
    %1358 = vmatprep.subr.mxu0 0.0
    %1359 = vmatpush1.msra.mxu0 %v398
    %1360 = vmatprep.subr.mxu0 0.0
    %1361 = vmatpush1.msra.mxu0 %v397
    %1362 = vmatprep.subr.mxu0 0.0
    %1363 = vmatpush1.msra.mxu0 %v396
    %1364 = vmatprep.subr.mxu0 0.0
    %1365 = vmatpush1.msra.mxu0 %v395
    %1366 = vmatprep.subr.mxu0 0.0
    %1367 = vmatpush1.msra.mxu0 %v394
    %1368 = vmatprep.subr.mxu0 0.0
    %1369 = vmatpush1.msra.mxu0 %v393
    %1370 = vmatprep.subr.mxu0 0.0
    %1371 = vmatpush1.msra.mxu0 %v392
    %1372 = vmatprep.subr.mxu0 0.0
    %1373 = vmatpush1.msra.mxu0 %v391
    %1374 = vmatprep.subr.mxu0 0.0
    %1375 = vmatpush1.msra.mxu0 %v390
    %1376 = vmatprep.subr.mxu0 0.0
    %1377 = vmatpush1.msra.mxu0 %v389
    %1378 = vmatprep.subr.mxu0 0.0
    %1379 = vmatpush1.msra.mxu0 %v388
    %1380 = vmatprep.subr.mxu0 0.0
    %1381 = vmatpush1.msra.mxu0 %v387
    %1382 = vmatprep.subr.mxu0 0.0
    %1383 = vmatpush1.msra.mxu0 %v386
    %1384 = vmatprep.subr.mxu0 0.0
    %1385 = vmatpush2.msra.mxu0 %v417
    %1386 = vmatprep.subr.mxu0 0.0
    %1387 = vmatpush2.msra.mxu0 %v416
    %1388 = vmatprep.subr.mxu0 0.0
    %1389 = vmatpush2.msra.mxu0 %v415
    %1390 = vmatprep.subr.mxu0 0.0
    %1391 = vmatpush2.msra.mxu0 %v414
    %1392 = vmatprep.subr.mxu0 0.0
    %1393 = vmatpush2.msra.mxu0 %v413
    %1394 = vmatprep.subr.mxu0 0.0
    %1395 = vmatpush2.msra.mxu0 %v412
    %1396 = vmatprep.subr.mxu0 0.0
    %1397 = vmatpush2.msra.mxu0 %v411
    %1398 = vmatprep.subr.mxu0 0.0
    %1399 = vmatpush2.msra.mxu0 %v410
    %1400 = vmatprep.subr.mxu0 0.0
    %1401 = vmatpush2.msra.mxu0 %v409
    %1402 = vmatprep.subr.mxu0 0.0
    %1403 = vmatpush2.msra.mxu0 %v408
    %1404 = vmatprep.subr.mxu0 0.0
    %1405 = vmatpush2.msra.mxu0 %v407
    %1406 = vmatprep.subr.mxu0 0.0
    %1407 = vmatpush2.msra.mxu0 %v406
    %1408 = vmatprep.subr.mxu0 0.0
    %1409 = vmatpush2.msra.mxu0 %v405
    %1410 = vmatprep.subr.mxu0 0.0
    %1411 = vmatpush2.msra.mxu0 %v404
    %1412 = vmatprep.subr.mxu0 0.0
    %1413 = vmatpush2.msra.mxu0 %v403
    %1414 = vmatprep.subr.mxu0 0.0
    %1415 = vmatpush2.msra.mxu0 %v402
    %1416 = vmatprep.mubr.f32.mxu0 %v549
    %1417 = vmatmul.mubr.f32.gmra.mxu0 %v547
    %v1418 = vpop.f32.mrf.mxu0
    %v1419 = vadd.f32 %v1349, %v1418
    %v1420 = vpop.f32.mrf.mxu0
    %1421 = vdwg.mxu0
    %1422 = vmatprep.subr.mxu0 0.0
    %1423 = vmatpush1.msra.mxu0 %v433
    %1424 = vmatprep.subr.mxu0 0.0
    %1425 = vmatpush1.msra.mxu0 %v432
    %1426 = vmatprep.subr.mxu0 0.0
    %1427 = vmatpush1.msra.mxu0 %v431
    %1428 = vmatprep.subr.mxu0 0.0
    %1429 = vmatpush1.msra.mxu0 %v430
    %1430 = vmatprep.subr.mxu0 0.0
    %1431 = vmatpush1.msra.mxu0 %v429
    %1432 = vmatprep.subr.mxu0 0.0
    %1433 = vmatpush1.msra.mxu0 %v428
    %1434 = vmatprep.subr.mxu0 0.0
    %1435 = vmatpush1.msra.mxu0 %v427
    %1436 = vmatprep.subr.mxu0 0.0
    %1437 = vmatpush1.msra.mxu0 %v426
    %1438 = vmatprep.subr.mxu0 0.0
    %1439 = vmatpush1.msra.mxu0 %v425
    %1440 = vmatprep.subr.mxu0 0.0
    %1441 = vmatpush1.msra.mxu0 %v424
    %1442 = vmatprep.subr.mxu0 0.0
    %1443 = vmatpush1.msra.mxu0 %v423
    %1444 = vmatprep.subr.mxu0 0.0
    %1445 = vmatpush1.msra.mxu0 %v422
    %1446 = vmatprep.subr.mxu0 0.0
    %1447 = vmatpush1.msra.mxu0 %v421
    %1448 = vmatprep.subr.mxu0 0.0
    %1449 = vmatpush1.msra.mxu0 %v420
    %1450 = vmatprep.subr.mxu0 0.0
    %1451 = vmatpush1.msra.mxu0 %v419
    %1452 = vmatprep.subr.mxu0 0.0
    %1453 = vmatpush1.msra.mxu0 %v418
    %1454 = vmatprep.subr.mxu0 0.0
    %1455 = vmatpush2.msra.mxu0 0.0
    %1456 = vmatprep.subr.mxu0 0.0
    %1457 = vmatpush2.msra.mxu0 0.0
    %1458 = vmatprep.subr.mxu0 0.0
    %1459 = vmatpush2.msra.mxu0 0.0
    %1460 = vmatprep.subr.mxu0 0.0
    %1461 = vmatpush2.msra.mxu0 0.0
    %1462 = vmatprep.subr.mxu0 0.0
    %1463 = vmatpush2.msra.mxu0 0.0
    %1464 = vmatprep.subr.mxu0 0.0
    %1465 = vmatpush2.msra.mxu0 0.0
    %1466 = vmatprep.subr.mxu0 0.0
    %1467 = vmatpush2.msra.mxu0 0.0
    %1468 = vmatprep.subr.mxu0 0.0
    %1469 = vmatpush2.msra.mxu0 0.0
    %1470 = vmatprep.subr.mxu0 0.0
    %1471 = vmatpush2.msra.mxu0 0.0
    %1472 = vmatprep.subr.mxu0 0.0
    %1473 = vmatpush2.msra.mxu0 0.0
    %1474 = vmatprep.subr.mxu0 0.0
    %1475 = vmatpush2.msra.mxu0 0.0
    %1476 = vmatprep.subr.mxu0 0.0
    %1477 = vmatpush2.msra.mxu0 0.0
    %1478 = vmatprep.subr.mxu0 0.0
    %1479 = vmatpush2.msra.mxu0 0.0
    %1480 = vmatprep.subr.mxu0 0.0
    %1481 = vmatpush2.msra.mxu0 0.0
    %1482 = vmatprep.subr.mxu0 0.0
    %1483 = vmatpush2.msra.mxu0 0.0
    %1484 = vmatprep.subr.mxu0 0.0
    %1485 = vmatpush2.msra.mxu0 0.0
    %1486 = vmatprep.mubr.f32.mxu0 0.0
    %1487 = vmatmul.mubr.f32.gmra.mxu0 %v556
    %v1488 = vpop.f32.mrf.mxu0
    %v1489 = vadd.f32 %v1419, %v1488
    %v1490 = vpop.f32.mrf.mxu0
    %1491 = vdwg.mxu0
    %v1492 = vmax.f32 %v1489, 0.0
    %v1493 = vld [vmem:[%s3] sm:$0xff]
    %v1494 = vld [vmem:[%s3 + $0x8] sm:$0xff]
    %v1495 = vld [vmem:[%s3 + $0x10] sm:$0xff]
    %v1496 = vld [vmem:[%s3 + $0x18] sm:$0xff]
    %v1497 = vld [vmem:[%s3 + $0x20] sm:$0xff]
    %v1498 = vld [vmem:[%s3 + $0x28] sm:$0xff]
    %v1499 = vld [vmem:[%s3 + $0x30] sm:$0xff]
    %v1500 = vld [vmem:[%s3 + $0x38] sm:$0xff]
    %v1501 = vld [vmem:[%s3 + $0x40] sm:$0xff]
    %v1502 = vld [vmem:[%s3 + $0x48] sm:$0xff]
    %v1503 = vld [vmem:[%s3 + $0x50] sm:$0xff]
    %v1504 = vld [vmem:[%s3 + $0x58] sm:$0xff]
    %v1505 = vld [vmem:[%s3 + $0x60] sm:$0xff]
    %v1506 = vld [vmem:[%s3 + $0x68] sm:$0xff]
    %v1507 = vld [vmem:[%s3 + $0x70] sm:$0xff]
    %v1508 = vld [vmem:[%s3 + $0x78] sm:$0xff]
    %v1509 = vld [vmem:[%s4] sm:$0x1]
    %v1511 = vlaneseq
    %v1512 = vshrl.u32 %v1511, 7
    %v1513 = vsub.s32 0, %v1512
    %v1514 = vrot.slane %v1509, %v1513
    %1516 = vmatprep.subr.mxu0 0.0
    %1517 = vmatpush1.msra.mxu0 %v1508
    %1518 = vmatprep.subr.mxu0 0.0
    %1519 = vmatpush1.msra.mxu0 %v1507
    %1520 = vmatprep.subr.mxu0 0.0
    %1521 = vmatpush1.msra.mxu0 %v1506
    %1522 = vmatprep.subr.mxu0 0.0
    %1523 = vmatpush1.msra.mxu0 %v1505
    %1524 = vmatprep.subr.mxu0 0.0
    %1525 = vmatpush1.msra.mxu0 %v1504
    %1526 = vmatprep.subr.mxu0 0.0
    %1527 = vmatpush1.msra.mxu0 %v1503
    %1528 = vmatprep.subr.mxu0 0.0
    %1529 = vmatpush1.msra.mxu0 %v1502
    %1530 = vmatprep.subr.mxu0 0.0
    %1531 = vmatpush1.msra.mxu0 %v1501
    %1532 = vmatprep.subr.mxu0 0.0
    %1533 = vmatpush1.msra.mxu0 %v1500
    %1534 = vmatprep.subr.mxu0 0.0
    %1535 = vmatpush1.msra.mxu0 %v1499
    %1536 = vmatprep.subr.mxu0 0.0
    %1537 = vmatpush1.msra.mxu0 %v1498
    %1538 = vmatprep.subr.mxu0 0.0
    %1539 = vmatpush1.msra.mxu0 %v1497
    %1540 = vmatprep.subr.mxu0 0.0
    %1541 = vmatpush1.msra.mxu0 %v1496
    %1542 = vmatprep.subr.mxu0 0.0
    %1543 = vmatpush1.msra.mxu0 %v1495
    %1544 = vmatprep.subr.mxu0 0.0
    %1545 = vmatpush1.msra.mxu0 %v1494
    %1546 = vmatprep.subr.mxu0 0.0
    %1547 = vmatpush1.msra.mxu0 %v1493
    %1548 = vmatprep.subr.mxu0 0.0
    %1549 = vmatpush2.msra.mxu0 0.0
    %1550 = vmatprep.subr.mxu0 0.0
    %1551 = vmatpush2.msra.mxu0 0.0
    %1552 = vmatprep.subr.mxu0 0.0
    %1553 = vmatpush2.msra.mxu0 0.0
    %1554 = vmatprep.subr.mxu0 0.0
    %1555 = vmatpush2.msra.mxu0 0.0
    %1556 = vmatprep.subr.mxu0 0.0
    %1557 = vmatpush2.msra.mxu0 0.0
    %1558 = vmatprep.subr.mxu0 0.0
    %1559 = vmatpush2.msra.mxu0 0.0
    %1560 = vmatprep.subr.mxu0 0.0
    %1561 = vmatpush2.msra.mxu0 0.0
    %1562 = vmatprep.subr.mxu0 0.0
    %1563 = vmatpush2.msra.mxu0 0.0
    %1564 = vmatprep.subr.mxu0 0.0
    %1565 = vmatpush2.msra.mxu0 0.0
    %1566 = vmatprep.subr.mxu0 0.0
    %1567 = vmatpush2.msra.mxu0 0.0
    %1568 = vmatprep.subr.mxu0 0.0
    %1569 = vmatpush2.msra.mxu0 0.0
    %1570 = vmatprep.subr.mxu0 0.0
    %1571 = vmatpush2.msra.mxu0 0.0
    %1572 = vmatprep.subr.mxu0 0.0
    %1573 = vmatpush2.msra.mxu0 0.0
    %1574 = vmatprep.subr.mxu0 0.0
    %1575 = vmatpush2.msra.mxu0 0.0
    %1576 = vmatprep.subr.mxu0 0.0
    %1577 = vmatpush2.msra.mxu0 0.0
    %1578 = vmatprep.subr.mxu0 0.0
    %1579 = vmatpush2.msra.mxu0 0.0
    %1580 = vmatprep.mubr.f32.mxu0 0.0
    %1581 = vmatmul.mubr.f32.gmra.mxu0 %v1492
    %v1582 = vpop.f32.mrf.mxu0
    %v1583 = vadd.f32 %v1514, %v1582
    %v1584 = vpop.f32.mrf.mxu0
    %1585 = vdwg.mxu0
    %v1586 = vmax.f32 %v1583, 0.0
    %v1587 = vld [vmem:[%s5] sm:$0xff]
    %v1588 = vld [vmem:[%s5 + $0x8] sm:$0xff]
    %v1589 = vld [vmem:[%s5 + $0x10] sm:$0xff]
    %v1590 = vld [vmem:[%s5 + $0x18] sm:$0xff]
    %v1591 = vld [vmem:[%s5 + $0x20] sm:$0xff]
    %v1592 = vld [vmem:[%s5 + $0x28] sm:$0xff]
    %v1593 = vld [vmem:[%s5 + $0x30] sm:$0xff]
    %v1594 = vld [vmem:[%s5 + $0x38] sm:$0xff]
    %v1595 = vld [vmem:[%s5 + $0x40] sm:$0xff]
    %v1596 = vld [vmem:[%s5 + $0x48] sm:$0xff]
    %v1597 = vld [vmem:[%s5 + $0x50] sm:$0xff]
    %v1598 = vld [vmem:[%s5 + $0x58] sm:$0xff]
    %v1599 = vld [vmem:[%s5 + $0x60] sm:$0xff]
    %v1600 = vld [vmem:[%s5 + $0x68] sm:$0xff]
    %v1601 = vld [vmem:[%s5 + $0x70] sm:$0xff]
    %v1602 = vld [vmem:[%s5 + $0x78] sm:$0xff]
    %v1603 = vld [vmem:[%s6] sm:$0x1]
    %v1605 = vlaneseq
    %v1606 = vshrl.u32 %v1605, 7
    %v1607 = vsub.s32 0, %v1606
    %v1608 = vrot.slane %v1603, %v1607
    %1610 = vmatprep.subr.mxu0 0.0
    %1611 = vmatpush1.msra.mxu0 %v1602
    %1612 = vmatprep.subr.mxu0 0.0
    %1613 = vmatpush1.msra.mxu0 %v1601
    %1614 = vmatprep.subr.mxu0 0.0
    %1615 = vmatpush1.msra.mxu0 %v1600
    %1616 = vmatprep.subr.mxu0 0.0
    %1617 = vmatpush1.msra.mxu0 %v1599
    %1618 = vmatprep.subr.mxu0 0.0
    %1619 = vmatpush1.msra.mxu0 %v1598
    %1620 = vmatprep.subr.mxu0 0.0
    %1621 = vmatpush1.msra.mxu0 %v1597
    %1622 = vmatprep.subr.mxu0 0.0
    %1623 = vmatpush1.msra.mxu0 %v1596
    %1624 = vmatprep.subr.mxu0 0.0
    %1625 = vmatpush1.msra.mxu0 %v1595
    %1626 = vmatprep.subr.mxu0 0.0
    %1627 = vmatpush1.msra.mxu0 %v1594
    %1628 = vmatprep.subr.mxu0 0.0
    %1629 = vmatpush1.msra.mxu0 %v1593
    %1630 = vmatprep.subr.mxu0 0.0
    %1631 = vmatpush1.msra.mxu0 %v1592
    %1632 = vmatprep.subr.mxu0 0.0
    %1633 = vmatpush1.msra.mxu0 %v1591
    %1634 = vmatprep.subr.mxu0 0.0
    %1635 = vmatpush1.msra.mxu0 %v1590
    %1636 = vmatprep.subr.mxu0 0.0
    %1637 = vmatpush1.msra.mxu0 %v1589
    %1638 = vmatprep.subr.mxu0 0.0
    %1639 = vmatpush1.msra.mxu0 %v1588
    %1640 = vmatprep.subr.mxu0 0.0
    %1641 = vmatpush1.msra.mxu0 %v1587
    %1642 = vmatprep.subr.mxu0 0.0
    %1643 = vmatpush2.msra.mxu0 0.0
    %1644 = vmatprep.subr.mxu0 0.0
    %1645 = vmatpush2.msra.mxu0 0.0
    %1646 = vmatprep.subr.mxu0 0.0
    %1647 = vmatpush2.msra.mxu0 0.0
    %1648 = vmatprep.subr.mxu0 0.0
    %1649 = vmatpush2.msra.mxu0 0.0
    %1650 = vmatprep.subr.mxu0 0.0
    %1651 = vmatpush2.msra.mxu0 0.0
    %1652 = vmatprep.subr.mxu0 0.0
    %1653 = vmatpush2.msra.mxu0 0.0
    %1654 = vmatprep.subr.mxu0 0.0
    %1655 = vmatpush2.msra.mxu0 0.0
    %1656 = vmatprep.subr.mxu0 0.0
    %1657 = vmatpush2.msra.mxu0 0.0
    %1658 = vmatprep.subr.mxu0 0.0
    %1659 = vmatpush2.msra.mxu0 0.0
    %1660 = vmatprep.subr.mxu0 0.0
    %1661 = vmatpush2.msra.mxu0 0.0
    %1662 = vmatprep.subr.mxu0 0.0
    %1663 = vmatpush2.msra.mxu0 0.0
    %1664 = vmatprep.subr.mxu0 0.0
    %1665 = vmatpush2.msra.mxu0 0.0
    %1666 = vmatprep.subr.mxu0 0.0
    %1667 = vmatpush2.msra.mxu0 0.0
    %1668 = vmatprep.subr.mxu0 0.0
    %1669 = vmatpush2.msra.mxu0 0.0
    %1670 = vmatprep.subr.mxu0 0.0
    %1671 = vmatpush2.msra.mxu0 0.0
    %1672 = vmatprep.subr.mxu0 0.0
    %1673 = vmatpush2.msra.mxu0 0.0
    %1674 = vmatprep.mubr.f32.mxu0 0.0
    %1675 = vmatmul.mubr.f32.gmra.mxu0 %v1586
    %v1676 = vpop.f32.mrf.mxu0
    %v1677 = vadd.f32 %v1608, %v1676
    %v1678 = vpop.f32.mrf.mxu0
    %1679 = vdwg.mxu0
    %1680 = vst [vmem:[#allocation2] sm:$0x3] %v1677
    // Predicated region
    $region30: #{net_forward.5} parent=1 // pred_check
      _
    $region31: #{net_forward.5} parent=1 // pred_check_branch
      %1682 = sbr.rel (0) target = $region33
    $region32: #{net_forward.5} parent=1 // pred_region
      %s1684 = ssub.s32 32, 32
      %1685 = vsyncadd [#allocation3], %s1684
      %s1687 = sshll.u32 [#allocation2], 4
      %s1688 = int_to_ptr.vmem [resolvable:$true] %s1687
      %1690 = dma.vmem_to_hbm [thread:$0]  %s1688, 32, %s7, [#allocation3]
    $region33: #{net_forward.5} parent=1 // pred_fallthru
      _
    // Predicated region
    $region34: #{net_forward.5} parent=1 // pred_check
      _
    $region35: #{net_forward.5} parent=1 // pred_check_branch
      %1692 = sbr.rel (0) target = $region37
    $region36: #{net_forward.5} parent=1 // pred_region
      %1693 = dma.done [#allocation3], 32
    $region37: #{net_forward.5} parent=1 // pred_fallthru
      _
    %1694 = vsyncpa [#allocation3], 1

</llo_original>
